<compile_context>
chip_gen: v6e
topology: v6e:2x2x1
jax: 0.10.0
libtpu: 0.0.40
codegen_flags: <defaults>
</compile_context>

<pallas_src>
from collections import OrderedDict

import numpy as np
import jax
import jax.numpy as jnp
from jax import lax
from jax.experimental import pallas as pl
from jax.experimental.pallas import tpu as pltpu


# ----------------------------------------------------------------------------
# VMEM sizing helpers (per-generation)
# ----------------------------------------------------------------------------
def _vmem_limit_bytes():
    """Scoped VMEM limit: ~3/4 of physical capacity, v7x-safe fallback (64 MiB)."""
    info = None
    try:
        info = pltpu.get_tpu_info()
    except Exception:
        pass
    cap = getattr(info, "vmem_capacity_bytes", None) or (64 * 1024 * 1024)
    return int(min(cap * 3 // 4, 96 * 1024 * 1024))


def _choose_tile_rows(H, W, Cin, Hc, Ncls_tot, vmem_budget):
    """Largest even H-tile whose per-step working set fits the VMEM budget.

    Prefers tiles with (TH*W) % 128 == 0 so the output block is lane-dense.
    """
    def step_bytes(th):
        hw = th * W
        pad_tile = (th + 4) * (W + 4) * Cin                  # halo'd scratch
        shifted = 5 * (th + 4) * W * Cin                     # 5 W-shifted views
        in_blk = 2 * (hw * Cin + 2 * (2 * W * Cin))          # dbl-buffered tile+slivers
        inter = hw * (2 * Cin + Hc)                          # acc/y + z_t live values
        out_blk = 2 * Ncls_tot * hw                          # dbl-buffered output
        return 4 * (pad_tile + shifted + in_blk + inter + out_blk)

    cands = [t for t in range(2, H + 1, 2) if H % t == 0]
    lane_dense = [t for t in cands if (t * W) % 128 == 0]
    pool = lane_dense if lane_dense else cands
    fits = [t for t in pool if step_bytes(t) <= vmem_budget]
    th = max(fits) if fits else min(pool)
    # Prefer >=2 H-tiles per image so the auto-pipeliner / megacore have steps.
    while H // th < 2:
        smaller = [t for t in pool if t < th]
        if not smaller:
            break
        th = max(smaller)
    return th


# ----------------------------------------------------------------------------
# Fused multi-head Pallas kernel
# ----------------------------------------------------------------------------
def make_fused_head_kernel(TH, W, Cin, Hc, ncls_list, n_htiles):
    offs, o = [], 0
    for nc in ncls_list:
        offs.append(o)
        o += nc
    HW_t = TH * W
    NH = len(ncls_list)

    def kernel(curr_ref, top_ref, bot_ref, wdw_ref, b1_ref, wpw_ref, b2_ref,
               wcls_ref, bcls_ref, out_ref, xpad_ref):
        h = pl.program_id(1)

        # ---- assemble zero-padded (TH+4, W+4, Cin) input tile in VMEM scratch ----
        zcol = jnp.zeros((TH + 4, 2, Cin), jnp.float32)
        xpad_ref[:, 0:2, :] = zcol                       # left W-halo (always zero)
        xpad_ref[:, W + 2:W + 4, :] = zcol               # right W-halo (always zero)
        xpad_ref[2:TH + 2, 2:W + 2, :] = curr_ref[...]   # interior rows

        @pl.when(h == 0)
        def _():                                         # image top border: zeros
            xpad_ref[0:2, 2:W + 2, :] = jnp.zeros((2, W, Cin), jnp.float32)

        @pl.when(h > 0)
        def _():                                         # real rows above the tile
            xpad_ref[0:2, 2:W + 2, :] = top_ref[...]

        @pl.when(h == n_htiles - 1)
        def _():                                         # image bottom border: zeros
            xpad_ref[TH + 2:TH + 4, 2:W + 2, :] = jnp.zeros((2, W, Cin), jnp.float32)

        @pl.when(h < n_htiles - 1)
        def _():                                         # real rows below the tile
            xpad_ref[TH + 2:TH + 4, 2:W + 2, :] = bot_ref[...]

        # ---- 5 W-shifted views loaded once; 25-tap loop only slices rows ----
        # Shared by every head.
        xs = [xpad_ref[:, dw:dw + W, :] for dw in range(5)]   # each (TH+4, W, Cin)

        for i in range(NH):
            nc, off = ncls_list[i], offs[i]
            wdw = wdw_ref[i]                             # (5, 5, Cin), BN1-scale folded
            acc = jnp.zeros((TH, W, Cin), jnp.float32)
            for dh in range(5):
                for dw in range(5):
                    acc = acc + xs[dw][dh:dh + TH] * wdw[dh, dw]
            y = jnp.maximum(acc + b1_ref[i], 0.0)        # BN1 bias + ReLU  (TH, W, Cin)

            # channel-leading (transposed) matmul chain: outputs are lane-dense (HW_t)
            y_t = y.reshape(HW_t, Cin).T                 # (Cin, HW_t) -- one XLU xpose
            z_t = jnp.dot(wpw_ref[i], y_t,
                          preferred_element_type=jnp.float32)   # (Hc, HW_t), MXU
            z_t = jnp.maximum(z_t + b2_ref[i], 0.0)      # BN2 bias + ReLU
            logits_t = jnp.dot(wcls_ref[off:off + nc, :], z_t,
                               preferred_element_type=jnp.float32)  # (nc, HW_t), MXU
            out_ref[off:off + nc, :] = logits_t + bcls_ref[off:off + nc, :]

    return kernel


def run_fused_heads(x_nhwc, fp):
    """x_nhwc: (N, H, W, Cin) f32.  Returns logits (N, sum(num_classes), H*W)."""
    N, H, W, Cin = x_nhwc.shape
    NH = fp["wdw"].shape[0]
    Hc = fp["wpw_t"].shape[1]
    ncls_list = fp["ncls_list"]
    Ncls_tot = int(sum(ncls_list))
    assert H % 2 == 0, "H-tiling with 2-row halo slivers needs even H"
    assert W % 8 == 0, "sublane-exact W keeps the (TH,W,Cin)->(TH*W,Cin) reshape free"

    vmem_limit = _vmem_limit_bytes()
    TH = _choose_tile_rows(H, W, Cin, Hc, Ncls_tot, vmem_limit // 2)
    n_htiles = H // TH
    half = TH // 2
    HW_t = TH * W

    kernel = make_fused_head_kernel(TH, W, Cin, Hc, ncls_list, n_htiles)

    # The SAME activation array is passed three times with different BlockSpecs:
    # the TH-row tile plus two 2-row halo slivers (top / bottom neighbours).
    curr_idx = lambda n, h: (n, h, 0, 0)
    top_idx = lambda n, h: (n, jnp.maximum(h * half - 1, 0), 0, 0)
    bot_idx = lambda n, h: (n, jnp.minimum(h * half + half, H // 2 - 1), 0, 0)
    const2 = lambda n, h: (0, 0)
    const3 = lambda n, h: (0, 0, 0)
    const4 = lambda n, h: (0, 0, 0, 0)

    out_flat = pl.pallas_call(
        kernel,
        out_shape=jax.ShapeDtypeStruct((N, Ncls_tot, H * W), jnp.float32),
        grid=(N, n_htiles),
        in_specs=[
            pl.BlockSpec((None, TH, W, Cin), curr_idx),     # current tile rows
            pl.BlockSpec((None, 2, W, Cin), top_idx),       # 2-row top halo sliver
            pl.BlockSpec((None, 2, W, Cin), bot_idx),       # 2-row bottom halo sliver
            pl.BlockSpec((NH, 5, 5, Cin), const4),          # dw weights (BN1 scale folded)
            pl.BlockSpec((NH, Cin), const2),                # BN1 bias
            pl.BlockSpec((NH, Hc, Cin), const3),            # pw weights^T (BN2 scale folded)
            pl.BlockSpec((NH, Hc, 1), const3),              # BN2 bias (column)
            pl.BlockSpec((Ncls_tot, Hc), const2),           # classifier weights^T (concat)
            pl.BlockSpec((Ncls_tot, 1), const2),            # classifier bias (column, concat)
        ],
        out_specs=pl.BlockSpec((None, Ncls_tot, HW_t), lambda n, h: (n, 0, h)),
        scratch_shapes=[pltpu.VMEM((TH + 4, W + 4, Cin), jnp.float32)],
        compiler_params=pltpu.CompilerParams(
            dimension_semantics=("parallel", "parallel"),
            vmem_limit_bytes=vmem_limit),
    )(x_nhwc, x_nhwc, x_nhwc, fp["wdw"], fp["b1"], fp["wpw_t"], fp["b2"],
      fp["wcls_t"], fp["bcls"])
    return out_flat


# ----------------------------------------------------------------------------
# Module-level wrapper (matches SinglePanopticDeepLabHead.forward)
# ----------------------------------------------------------------------------
def single_panoptic_deeplab_head(x_nchw, fused_params, class_key):
    # One NCHW->NHWC transpose on the input (channels on lanes for the depthwise);
    # the kernel already emits channel-leading (N, C, H*W) logits, so the output
    # side needs only a per-head channel slice + metadata-light reshape.
    x_nhwc = jnp.transpose(x_nchw, (0, 2, 3, 1)).astype(jnp.float32)
    N, H, W, _ = x_nhwc.shape
    out_flat = run_fused_heads(x_nhwc, fused_params)      # (N, sum Ncls, H*W)
    pred = OrderedDict()
    off = 0
    for key, nc in zip(class_key, fused_params["ncls_list"]):
        pred[key] = out_flat[:, off:off + nc, :].reshape(N, nc, H, W)   # NCHW
        off += nc
    return pred


# ----------------------------------------------------------------------------
# Parameter construction (deterministic, synthetic) + BN folding / head fusion
# ----------------------------------------------------------------------------
def init_raw_head_params(key, Cin, Hc, Ncls):
    ks = jax.random.split(key, 12)
    return {
        "wdw": jax.random.normal(ks[0], (5, 5, Cin), jnp.float32) * 0.2,
        "g1": 1.0 + 0.1 * jax.random.normal(ks[1], (Cin,), jnp.float32),
        "be1": 0.1 * jax.random.normal(ks[2], (Cin,), jnp.float32),
        "m1": 0.1 * jax.random.normal(ks[3], (Cin,), jnp.float32),
        "v1": 1.0 + 0.1 * jnp.abs(jax.random.normal(ks[4], (Cin,), jnp.float32)),
        "wpw": jax.random.normal(ks[5], (Cin, Hc), jnp.float32) * 0.2,
        "g2": 1.0 + 0.1 * jax.random.normal(ks[6], (Hc,), jnp.float32),
        "be2": 0.1 * jax.random.normal(ks[7], (Hc,), jnp.float32),
        "m2": 0.1 * jax.random.normal(ks[8], (Hc,), jnp.float32),
        "v2": 1.0 + 0.1 * jnp.abs(jax.random.normal(ks[9], (Hc,), jnp.float32)),
        "wcls": jax.random.normal(ks[10], (Hc, Ncls), jnp.float32) * 0.2,
        "bcls": 0.1 * jax.random.normal(ks[11], (Ncls,), jnp.float32),
    }


def fold_and_fuse_params(raw_list, eps=1e-5):
    """One-time prep: fold BN scales into conv weights, transpose the 1x1 convs to
    channel-leading form, stack/concat across heads."""
    wdw, b1, wpw_t, b2, wcls_t, bcls, ncls = [], [], [], [], [], [], []
    for rp in raw_list:
        s1 = rp["g1"] / jnp.sqrt(rp["v1"] + eps)
        s2 = rp["g2"] / jnp.sqrt(rp["v2"] + eps)
        wdw.append(rp["wdw"] * s1)                     # fold BN1 scale into dw weights
        b1.append(rp["be1"] - rp["m1"] * s1)
        wpw_t.append((rp["wpw"] * s2[None, :]).T)      # fold BN2 scale, (Hc, Cin)
        b2.append(rp["be2"] - rp["m2"] * s2)
        wcls_t.append(rp["wcls"].T)                    # (Ncls, Hc)
        bcls.append(rp["bcls"])
        ncls.append(int(rp["wcls"].shape[1]))
    return {
        "wdw": jnp.stack(wdw),                         # (NH, 5, 5, Cin)
        "b1": jnp.stack(b1),                           # (NH, Cin)
        "wpw_t": jnp.stack(wpw_t),                     # (NH, Hc, Cin)
        "b2": jnp.stack(b2)[..., None],                # (NH, Hc, 1)
        "wcls_t": jnp.concatenate(wcls_t, axis=0),     # (sum Ncls, Hc)
        "bcls": jnp.concatenate(bcls)[:, None],        # (sum Ncls, 1)
        "ncls_list": ncls,
    }


# ----------------------------------------------------------------------------
# Pure-JAX reference (unfolded BN math, lax convs) for verification
# ----------------------------------------------------------------------------
def ref_head(x_nhwc, rp, eps=1e-5):
    Cin = x_nhwc.shape[-1]
    dw_k = rp["wdw"].reshape(5, 5, 1, Cin)          # HWIO depthwise
    y = lax.conv_general_dilated(
        x_nhwc, dw_k, window_strides=(1, 1), padding=((2, 2), (2, 2)),
        dimension_numbers=("NHWC", "HWIO", "NHWC"), feature_group_count=Cin)
    y = (y - rp["m1"]) * (rp["g1"] / jnp.sqrt(rp["v1"] + eps)) + rp["be1"]
    y = jnp.maximum(y, 0.0)
    z = jnp.einsum("nhwc,ck->nhwk", y, rp["wpw"])
    z = (z - rp["m2"]) * (rp["g2"] / jnp.sqrt(rp["v2"] + eps)) + rp["be2"]
    z = jnp.maximum(z, 0.0)
    return jnp.einsum("nhwk,ke->nhwe", z, rp["wcls"]) + rp["bcls"]


if __name__ == "__main__":
    # Small synthetic config consistent with the module:
    N, decoder_channels, H, W = 2, 8, 16, 16
    head_channels = 16
    num_classes = [3, 2]
    class_key = ["center", "offset"]

    key = jax.random.PRNGKey(0)
    kx, kp = jax.random.split(key)
    x = jax.random.normal(kx, (N, decoder_channels, H, W), jnp.float32)  # NCHW

    pkeys = jax.random.split(kp, len(class_key))
    raw = [init_raw_head_params(pkeys[i], decoder_channels, head_channels,
                                num_classes[i]) for i in range(len(class_key))]
    fused = fold_and_fuse_params(raw)

    pred = single_panoptic_deeplab_head(x, fused, class_key)
    jax.block_until_ready(pred)

    # verify against the pure-JAX reference (unfolded BN math)
    x_nhwc = jnp.transpose(x, (0, 2, 3, 1))
    for i, ck in enumerate(class_key):
        ref = jnp.transpose(ref_head(x_nhwc, raw[i]), (0, 3, 1, 2))
        assert pred[ck].shape == (N, num_classes[i], H, W)
        np.testing.assert_allclose(np.asarray(pred[ck]), np.asarray(ref),
                                   rtol=1e-4, atol=1e-4)

    print("KERNEL_OK")
</pallas_src>

<mosaic_0001>
module attributes {stable_mosaic.version = 11 : i64} {
  func.func @kernel(%arg0: i32, %arg1: i32, %arg2: memref<1x8x16x8xf32, #tpu.memory_space<vmem>>, %arg3: memref<1x2x16x8xf32, #tpu.memory_space<vmem>>, %arg4: memref<1x2x16x8xf32, #tpu.memory_space<vmem>>, %arg5: memref<2x5x5x8xf32, #tpu.memory_space<vmem>>, %arg6: memref<2x8xf32, #tpu.memory_space<vmem>>, %arg7: memref<2x16x8xf32, #tpu.memory_space<vmem>>, %arg8: memref<2x16x1xf32, #tpu.memory_space<vmem>>, %arg9: memref<5x16xf32, #tpu.memory_space<vmem>>, %arg10: memref<5x1xf32, #tpu.memory_space<vmem>>, %arg11: memref<1x5x128xf32, #tpu.memory_space<vmem>>, %arg12: memref<12x20x8xf32, #tpu.memory_space<vmem>>) attributes {dimension_semantics = [#tpu.dimension_semantics<parallel>, #tpu.dimension_semantics<parallel>], iteration_bounds = array<i64: 2, 2>, scalar_prefetch = 0 : i64, scratch_operands = 1 : i64, tpu.core_type = #tpu.core_type<tc>, window_params = [{transform_indices = @transform_0, window_bounds = array<i64: 1, 8, 16, 8>}, {transform_indices = @transform_1, window_bounds = array<i64: 1, 2, 16, 8>}, {transform_indices = @transform_2, window_bounds = array<i64: 1, 2, 16, 8>}, {pipeline_mode = #tpu.pipeline_mode<synchronous>, transform_indices = @transform_3, window_bounds = array<i64: 2, 5, 5, 8>}, {pipeline_mode = #tpu.pipeline_mode<synchronous>, transform_indices = @transform_4, window_bounds = array<i64: 2, 8>}, {pipeline_mode = #tpu.pipeline_mode<synchronous>, transform_indices = @transform_5, window_bounds = array<i64: 2, 16, 8>}, {pipeline_mode = #tpu.pipeline_mode<synchronous>, transform_indices = @transform_6, window_bounds = array<i64: 2, 16, 1>}, {pipeline_mode = #tpu.pipeline_mode<synchronous>, transform_indices = @transform_7, window_bounds = array<i64: 5, 16>}, {pipeline_mode = #tpu.pipeline_mode<synchronous>, transform_indices = @transform_8, window_bounds = array<i64: 5, 1>}, {transform_indices = @transform_9, window_bounds = array<i64: 1, 5, 128>}]} {
    %cst = arith.constant 0.000000e+00 : f32
    %0 = vector.broadcast %cst : f32 to vector<12x2x8xf32>
    %c0 = arith.constant 0 : index
    %c0_0 = arith.constant 0 : index
    %c0_1 = arith.constant 0 : index
    %1 = vector.load %arg12[%c0, %c0_0, %c0_1] : memref<12x20x8xf32, #tpu.memory_space<vmem>>, vector<12x2x8xf32>
    tpu.vector_store %arg12[%c0, %c0_0, %c0_1], %0 {strides = array<i32>} : memref<12x20x8xf32, #tpu.memory_space<vmem>>, vector<12x2x8xf32>,
    %c0_2 = arith.constant 0 : index
    %c18 = arith.constant 18 : index
    %c0_3 = arith.constant 0 : index
    %2 = vector.load %arg12[%c0_2, %c18, %c0_3] : memref<12x20x8xf32, #tpu.memory_space<vmem>>, vector<12x2x8xf32>
    tpu.vector_store %arg12[%c0_2, %c18, %c0_3], %0 {strides = array<i32>} : memref<12x20x8xf32, #tpu.memory_space<vmem>>, vector<12x2x8xf32>,
    %c0_4 = arith.constant 0 : index
    %c0_5 = arith.constant 0 : index
    %c0_6 = arith.constant 0 : index
    %c0_7 = arith.constant 0 : index
    %3 = vector.load %arg2[%c0_4, %c0_5, %c0_6, %c0_7] : memref<1x8x16x8xf32, #tpu.memory_space<vmem>>, vector<1x8x16x8xf32>
    %4 = vector.shape_cast %3 : vector<1x8x16x8xf32> to vector<8x16x8xf32>
    %c2 = arith.constant 2 : index
    %c2_8 = arith.constant 2 : index
    %c0_9 = arith.constant 0 : index
    %5 = vector.load %arg12[%c2, %c2_8, %c0_9] : memref<12x20x8xf32, #tpu.memory_space<vmem>>, vector<8x16x8xf32>
    tpu.vector_store %arg12[%c2, %c2_8, %c0_9], %4 {strides = array<i32>} : memref<12x20x8xf32, #tpu.memory_space<vmem>>, vector<8x16x8xf32>,
    %c0_i32 = arith.constant 0 : i32
    %6 = arith.cmpi eq, %arg1, %c0_i32 : i32
    %7 = arith.extui %6 : i1 to i32
    %c0_i32_10 = arith.constant 0 : i32
    %8 = arith.cmpi ne, %7, %c0_i32_10 : i32
    scf.if %8 {
      %cst_76 = arith.constant 0.000000e+00 : f32
      %431 = vector.broadcast %cst_76 : f32 to vector<2x16x8xf32>
      %c0_77 = arith.constant 0 : index
      %c2_78 = arith.constant 2 : index
      %c0_79 = arith.constant 0 : index
      %432 = vector.load %arg12[%c0_77, %c2_78, %c0_79] : memref<12x20x8xf32, #tpu.memory_space<vmem>>, vector<2x16x8xf32>
      tpu.vector_store %arg12[%c0_77, %c2_78, %c0_79], %431 {strides = array<i32>} : memref<12x20x8xf32, #tpu.memory_space<vmem>>, vector<2x16x8xf32>,
    } else {
    }
    %c0_i32_11 = arith.constant 0 : i32
    %9 = arith.cmpi sgt, %arg1, %c0_i32_11 : i32
    %10 = arith.extui %9 : i1 to i32
    %c0_i32_12 = arith.constant 0 : i32
    %11 = arith.cmpi ne, %10, %c0_i32_12 : i32
    scf.if %11 {
      %c0_76 = arith.constant 0 : index
      %c0_77 = arith.constant 0 : index
      %c0_78 = arith.constant 0 : index
      %c0_79 = arith.constant 0 : index
      %431 = vector.load %arg3[%c0_76, %c0_77, %c0_78, %c0_79] : memref<1x2x16x8xf32, #tpu.memory_space<vmem>>, vector<1x2x16x8xf32>
      %432 = vector.shape_cast %431 : vector<1x2x16x8xf32> to vector<2x16x8xf32>
      %c0_80 = arith.constant 0 : index
      %c2_81 = arith.constant 2 : index
      %c0_82 = arith.constant 0 : index
      %433 = vector.load %arg12[%c0_80, %c2_81, %c0_82] : memref<12x20x8xf32, #tpu.memory_space<vmem>>, vector<2x16x8xf32>
      tpu.vector_store %arg12[%c0_80, %c2_81, %c0_82], %432 {strides = array<i32>} : memref<12x20x8xf32, #tpu.memory_space<vmem>>, vector<2x16x8xf32>,
    } else {
    }
    %c1_i32 = arith.constant 1 : i32
    %12 = arith.cmpi eq, %arg1, %c1_i32 : i32
    %13 = arith.extui %12 : i1 to i32
    %c0_i32_13 = arith.constant 0 : i32
    %14 = arith.cmpi ne, %13, %c0_i32_13 : i32
    scf.if %14 {
      %cst_76 = arith.constant 0.000000e+00 : f32
      %431 = vector.broadcast %cst_76 : f32 to vector<2x16x8xf32>
      %c10 = arith.constant 10 : index
      %c2_77 = arith.constant 2 : index
      %c0_78 = arith.constant 0 : index
      %432 = vector.load %arg12[%c10, %c2_77, %c0_78] : memref<12x20x8xf32, #tpu.memory_space<vmem>>, vector<2x16x8xf32>
      tpu.vector_store %arg12[%c10, %c2_77, %c0_78], %431 {strides = array<i32>} : memref<12x20x8xf32, #tpu.memory_space<vmem>>, vector<2x16x8xf32>,
    } else {
    }
    %c1_i32_14 = arith.constant 1 : i32
    %15 = arith.cmpi slt, %arg1, %c1_i32_14 : i32
    %16 = arith.extui %15 : i1 to i32
    %c0_i32_15 = arith.constant 0 : i32
    %17 = arith.cmpi ne, %16, %c0_i32_15 : i32
    scf.if %17 {
      %c0_76 = arith.constant 0 : index
      %c0_77 = arith.constant 0 : index
      %c0_78 = arith.constant 0 : index
      %c0_79 = arith.constant 0 : index
      %431 = vector.load %arg4[%c0_76, %c0_77, %c0_78, %c0_79] : memref<1x2x16x8xf32, #tpu.memory_space<vmem>>, vector<1x2x16x8xf32>
      %432 = vector.shape_cast %431 : vector<1x2x16x8xf32> to vector<2x16x8xf32>
      %c10 = arith.constant 10 : index
      %c2_80 = arith.constant 2 : index
      %c0_81 = arith.constant 0 : index
      %433 = vector.load %arg12[%c10, %c2_80, %c0_81] : memref<12x20x8xf32, #tpu.memory_space<vmem>>, vector<2x16x8xf32>
      tpu.vector_store %arg12[%c10, %c2_80, %c0_81], %432 {strides = array<i32>} : memref<12x20x8xf32, #tpu.memory_space<vmem>>, vector<2x16x8xf32>,
    } else {
    }
    %c0_16 = arith.constant 0 : index
    %c0_17 = arith.constant 0 : index
    %c0_18 = arith.constant 0 : index
    %18 = vector.load %arg12[%c0_16, %c0_17, %c0_18] : memref<12x20x8xf32, #tpu.memory_space<vmem>>, vector<12x16x8xf32>
    %c0_19 = arith.constant 0 : index
    %c1 = arith.constant 1 : index
    %c0_20 = arith.constant 0 : index
    %19 = vector.load %arg12[%c0_19, %c1, %c0_20] : memref<12x20x8xf32, #tpu.memory_space<vmem>>, vector<12x16x8xf32>
    %c0_21 = arith.constant 0 : index
    %c2_22 = arith.constant 2 : index
    %c0_23 = arith.constant 0 : index
    %20 = vector.load %arg12[%c0_21, %c2_22, %c0_23] : memref<12x20x8xf32, #tpu.memory_space<vmem>>, vector<12x16x8xf32>
    %c0_24 = arith.constant 0 : index
    %c3 = arith.constant 3 : index
    %c0_25 = arith.constant 0 : index
    %21 = vector.load %arg12[%c0_24, %c3, %c0_25] : memref<12x20x8xf32, #tpu.memory_space<vmem>>, vector<12x16x8xf32>
    %c0_26 = arith.constant 0 : index
    %c4 = arith.constant 4 : index
    %c0_27 = arith.constant 0 : index
    %22 = vector.load %arg12[%c0_26, %c4, %c0_27] : memref<12x20x8xf32, #tpu.memory_space<vmem>>, vector<12x16x8xf32>
    %c0_28 = arith.constant 0 : index
    %c0_29 = arith.constant 0 : index
    %c0_30 = arith.constant 0 : index
    %c0_31 = arith.constant 0 : index
    %23 = vector.load %arg5[%c0_28, %c0_29, %c0_30, %c0_31] : memref<2x5x5x8xf32, #tpu.memory_space<vmem>>, vector<1x5x5x8xf32>
    %24 = vector.shape_cast %23 : vector<1x5x5x8xf32> to vector<5x5x8xf32>
    %cst_32 = arith.constant 0.000000e+00 : f32
    %25 = vector.broadcast %cst_32 : f32 to vector<8x16x8xf32>
    %26 = vector.extract_strided_slice %18 {offsets = [0, 0, 0], sizes = [8, 16, 8], strides = [1, 1, 1]} : vector<12x16x8xf32> to vector<8x16x8xf32>
    %27 = vector.extract_strided_slice %24 {offsets = [0, 0, 0], sizes = [1, 1, 8], strides = [1, 1, 1]} : vector<5x5x8xf32> to vector<1x1x8xf32>
    %28 = vector.shape_cast %27 : vector<1x1x8xf32> to vector<8xf32>
    %29 = vector.shape_cast %28 : vector<8xf32> to vector<1x1x8xf32>
    %30 = vector.broadcast %29 : vector<1x1x8xf32> to vector<8x16x8xf32>
    %31 = arith.mulf %26, %30 : vector<8x16x8xf32>
    %32 = arith.addf %25, %31 : vector<8x16x8xf32>
    %33 = vector.extract_strided_slice %19 {offsets = [0, 0, 0], sizes = [8, 16, 8], strides = [1, 1, 1]} : vector<12x16x8xf32> to vector<8x16x8xf32>
    %34 = vector.extract_strided_slice %24 {offsets = [0, 1, 0], sizes = [1, 1, 8], strides = [1, 1, 1]} : vector<5x5x8xf32> to vector<1x1x8xf32>
    %35 = vector.shape_cast %34 : vector<1x1x8xf32> to vector<8xf32>
    %36 = vector.shape_cast %35 : vector<8xf32> to vector<1x1x8xf32>
    %37 = vector.broadcast %36 : vector<1x1x8xf32> to vector<8x16x8xf32>
    %38 = arith.mulf %33, %37 : vector<8x16x8xf32>
    %39 = arith.addf %32, %38 : vector<8x16x8xf32>
    %40 = vector.extract_strided_slice %20 {offsets = [0, 0, 0], sizes = [8, 16, 8], strides = [1, 1, 1]} : vector<12x16x8xf32> to vector<8x16x8xf32>
    %41 = vector.extract_strided_slice %24 {offsets = [0, 2, 0], sizes = [1, 1, 8], strides = [1, 1, 1]} : vector<5x5x8xf32> to vector<1x1x8xf32>
    %42 = vector.shape_cast %41 : vector<1x1x8xf32> to vector<8xf32>
    %43 = vector.shape_cast %42 : vector<8xf32> to vector<1x1x8xf32>
    %44 = vector.broadcast %43 : vector<1x1x8xf32> to vector<8x16x8xf32>
    %45 = arith.mulf %40, %44 : vector<8x16x8xf32>
    %46 = arith.addf %39, %45 : vector<8x16x8xf32>
    %47 = vector.extract_strided_slice %21 {offsets = [0, 0, 0], sizes = [8, 16, 8], strides = [1, 1, 1]} : vector<12x16x8xf32> to vector<8x16x8xf32>
    %48 = vector.extract_strided_slice %24 {offsets = [0, 3, 0], sizes = [1, 1, 8], strides = [1, 1, 1]} : vector<5x5x8xf32> to vector<1x1x8xf32>
    %49 = vector.shape_cast %48 : vector<1x1x8xf32> to vector<8xf32>
    %50 = vector.shape_cast %49 : vector<8xf32> to vector<1x1x8xf32>
    %51 = vector.broadcast %50 : vector<1x1x8xf32> to vector<8x16x8xf32>
    %52 = arith.mulf %47, %51 : vector<8x16x8xf32>
    %53 = arith.addf %46, %52 : vector<8x16x8xf32>
    %54 = vector.extract_strided_slice %22 {offsets = [0, 0, 0], sizes = [8, 16, 8], strides = [1, 1, 1]} : vector<12x16x8xf32> to vector<8x16x8xf32>
    %55 = vector.extract_strided_slice %24 {offsets = [0, 4, 0], sizes = [1, 1, 8], strides = [1, 1, 1]} : vector<5x5x8xf32> to vector<1x1x8xf32>
    %56 = vector.shape_cast %55 : vector<1x1x8xf32> to vector<8xf32>
    %57 = vector.shape_cast %56 : vector<8xf32> to vector<1x1x8xf32>
    %58 = vector.broadcast %57 : vector<1x1x8xf32> to vector<8x16x8xf32>
    %59 = arith.mulf %54, %58 : vector<8x16x8xf32>
    %60 = arith.addf %53, %59 : vector<8x16x8xf32>
    %61 = vector.extract_strided_slice %18 {offsets = [1, 0, 0], sizes = [8, 16, 8], strides = [1, 1, 1]} : vector<12x16x8xf32> to vector<8x16x8xf32>
    %62 = vector.extract_strided_slice %24 {offsets = [1, 0, 0], sizes = [1, 1, 8], strides = [1, 1, 1]} : vector<5x5x8xf32> to vector<1x1x8xf32>
    %63 = vector.shape_cast %62 : vector<1x1x8xf32> to vector<8xf32>
    %64 = vector.shape_cast %63 : vector<8xf32> to vector<1x1x8xf32>
    %65 = vector.broadcast %64 : vector<1x1x8xf32> to vector<8x16x8xf32>
    %66 = arith.mulf %61, %65 : vector<8x16x8xf32>
    %67 = arith.addf %60, %66 : vector<8x16x8xf32>
    %68 = vector.extract_strided_slice %19 {offsets = [1, 0, 0], sizes = [8, 16, 8], strides = [1, 1, 1]} : vector<12x16x8xf32> to vector<8x16x8xf32>
    %69 = vector.extract_strided_slice %24 {offsets = [1, 1, 0], sizes = [1, 1, 8], strides = [1, 1, 1]} : vector<5x5x8xf32> to vector<1x1x8xf32>
    %70 = vector.shape_cast %69 : vector<1x1x8xf32> to vector<8xf32>
    %71 = vector.shape_cast %70 : vector<8xf32> to vector<1x1x8xf32>
    %72 = vector.broadcast %71 : vector<1x1x8xf32> to vector<8x16x8xf32>
    %73 = arith.mulf %68, %72 : vector<8x16x8xf32>
    %74 = arith.addf %67, %73 : vector<8x16x8xf32>
    %75 = vector.extract_strided_slice %20 {offsets = [1, 0, 0], sizes = [8, 16, 8], strides = [1, 1, 1]} : vector<12x16x8xf32> to vector<8x16x8xf32>
    %76 = vector.extract_strided_slice %24 {offsets = [1, 2, 0], sizes = [1, 1, 8], strides = [1, 1, 1]} : vector<5x5x8xf32> to vector<1x1x8xf32>
    %77 = vector.shape_cast %76 : vector<1x1x8xf32> to vector<8xf32>
    %78 = vector.shape_cast %77 : vector<8xf32> to vector<1x1x8xf32>
    %79 = vector.broadcast %78 : vector<1x1x8xf32> to vector<8x16x8xf32>
    %80 = arith.mulf %75, %79 : vector<8x16x8xf32>
    %81 = arith.addf %74, %80 : vector<8x16x8xf32>
    %82 = vector.extract_strided_slice %21 {offsets = [1, 0, 0], sizes = [8, 16, 8], strides = [1, 1, 1]} : vector<12x16x8xf32> to vector<8x16x8xf32>
    %83 = vector.extract_strided_slice %24 {offsets = [1, 3, 0], sizes = [1, 1, 8], strides = [1, 1, 1]} : vector<5x5x8xf32> to vector<1x1x8xf32>
    %84 = vector.shape_cast %83 : vector<1x1x8xf32> to vector<8xf32>
    %85 = vector.shape_cast %84 : vector<8xf32> to vector<1x1x8xf32>
    %86 = vector.broadcast %85 : vector<1x1x8xf32> to vector<8x16x8xf32>
    %87 = arith.mulf %82, %86 : vector<8x16x8xf32>
    %88 = arith.addf %81, %87 : vector<8x16x8xf32>
    %89 = vector.extract_strided_slice %22 {offsets = [1, 0, 0], sizes = [8, 16, 8], strides = [1, 1, 1]} : vector<12x16x8xf32> to vector<8x16x8xf32>
    %90 = vector.extract_strided_slice %24 {offsets = [1, 4, 0], sizes = [1, 1, 8], strides = [1, 1, 1]} : vector<5x5x8xf32> to vector<1x1x8xf32>
    %91 = vector.shape_cast %90 : vector<1x1x8xf32> to vector<8xf32>
    %92 = vector.shape_cast %91 : vector<8xf32> to vector<1x1x8xf32>
    %93 = vector.broadcast %92 : vector<1x1x8xf32> to vector<8x16x8xf32>
    %94 = arith.mulf %89, %93 : vector<8x16x8xf32>
    %95 = arith.addf %88, %94 : vector<8x16x8xf32>
    %96 = vector.extract_strided_slice %18 {offsets = [2, 0, 0], sizes = [8, 16, 8], strides = [1, 1, 1]} : vector<12x16x8xf32> to vector<8x16x8xf32>
    %97 = vector.extract_strided_slice %24 {offsets = [2, 0, 0], sizes = [1, 1, 8], strides = [1, 1, 1]} : vector<5x5x8xf32> to vector<1x1x8xf32>
    %98 = vector.shape_cast %97 : vector<1x1x8xf32> to vector<8xf32>
    %99 = vector.shape_cast %98 : vector<8xf32> to vector<1x1x8xf32>
    %100 = vector.broadcast %99 : vector<1x1x8xf32> to vector<8x16x8xf32>
    %101 = arith.mulf %96, %100 : vector<8x16x8xf32>
    %102 = arith.addf %95, %101 : vector<8x16x8xf32>
    %103 = vector.extract_strided_slice %19 {offsets = [2, 0, 0], sizes = [8, 16, 8], strides = [1, 1, 1]} : vector<12x16x8xf32> to vector<8x16x8xf32>
    %104 = vector.extract_strided_slice %24 {offsets = [2, 1, 0], sizes = [1, 1, 8], strides = [1, 1, 1]} : vector<5x5x8xf32> to vector<1x1x8xf32>
    %105 = vector.shape_cast %104 : vector<1x1x8xf32> to vector<8xf32>
    %106 = vector.shape_cast %105 : vector<8xf32> to vector<1x1x8xf32>
    %107 = vector.broadcast %106 : vector<1x1x8xf32> to vector<8x16x8xf32>
    %108 = arith.mulf %103, %107 : vector<8x16x8xf32>
    %109 = arith.addf %102, %108 : vector<8x16x8xf32>
    %110 = vector.extract_strided_slice %20 {offsets = [2, 0, 0], sizes = [8, 16, 8], strides = [1, 1, 1]} : vector<12x16x8xf32> to vector<8x16x8xf32>
    %111 = vector.extract_strided_slice %24 {offsets = [2, 2, 0], sizes = [1, 1, 8], strides = [1, 1, 1]} : vector<5x5x8xf32> to vector<1x1x8xf32>
    %112 = vector.shape_cast %111 : vector<1x1x8xf32> to vector<8xf32>
    %113 = vector.shape_cast %112 : vector<8xf32> to vector<1x1x8xf32>
    %114 = vector.broadcast %113 : vector<1x1x8xf32> to vector<8x16x8xf32>
    %115 = arith.mulf %110, %114 : vector<8x16x8xf32>
    %116 = arith.addf %109, %115 : vector<8x16x8xf32>
    %117 = vector.extract_strided_slice %21 {offsets = [2, 0, 0], sizes = [8, 16, 8], strides = [1, 1, 1]} : vector<12x16x8xf32> to vector<8x16x8xf32>
    %118 = vector.extract_strided_slice %24 {offsets = [2, 3, 0], sizes = [1, 1, 8], strides = [1, 1, 1]} : vector<5x5x8xf32> to vector<1x1x8xf32>
    %119 = vector.shape_cast %118 : vector<1x1x8xf32> to vector<8xf32>
    %120 = vector.shape_cast %119 : vector<8xf32> to vector<1x1x8xf32>
    %121 = vector.broadcast %120 : vector<1x1x8xf32> to vector<8x16x8xf32>
    %122 = arith.mulf %117, %121 : vector<8x16x8xf32>
    %123 = arith.addf %116, %122 : vector<8x16x8xf32>
    %124 = vector.extract_strided_slice %22 {offsets = [2, 0, 0], sizes = [8, 16, 8], strides = [1, 1, 1]} : vector<12x16x8xf32> to vector<8x16x8xf32>
    %125 = vector.extract_strided_slice %24 {offsets = [2, 4, 0], sizes = [1, 1, 8], strides = [1, 1, 1]} : vector<5x5x8xf32> to vector<1x1x8xf32>
    %126 = vector.shape_cast %125 : vector<1x1x8xf32> to vector<8xf32>
    %127 = vector.shape_cast %126 : vector<8xf32> to vector<1x1x8xf32>
    %128 = vector.broadcast %127 : vector<1x1x8xf32> to vector<8x16x8xf32>
    %129 = arith.mulf %124, %128 : vector<8x16x8xf32>
    %130 = arith.addf %123, %129 : vector<8x16x8xf32>
    %131 = vector.extract_strided_slice %18 {offsets = [3, 0, 0], sizes = [8, 16, 8], strides = [1, 1, 1]} : vector<12x16x8xf32> to vector<8x16x8xf32>
    %132 = vector.extract_strided_slice %24 {offsets = [3, 0, 0], sizes = [1, 1, 8], strides = [1, 1, 1]} : vector<5x5x8xf32> to vector<1x1x8xf32>
    %133 = vector.shape_cast %132 : vector<1x1x8xf32> to vector<8xf32>
    %134 = vector.shape_cast %133 : vector<8xf32> to vector<1x1x8xf32>
    %135 = vector.broadcast %134 : vector<1x1x8xf32> to vector<8x16x8xf32>
    %136 = arith.mulf %131, %135 : vector<8x16x8xf32>
    %137 = arith.addf %130, %136 : vector<8x16x8xf32>
    %138 = vector.extract_strided_slice %19 {offsets = [3, 0, 0], sizes = [8, 16, 8], strides = [1, 1, 1]} : vector<12x16x8xf32> to vector<8x16x8xf32>
    %139 = vector.extract_strided_slice %24 {offsets = [3, 1, 0], sizes = [1, 1, 8], strides = [1, 1, 1]} : vector<5x5x8xf32> to vector<1x1x8xf32>
    %140 = vector.shape_cast %139 : vector<1x1x8xf32> to vector<8xf32>
    %141 = vector.shape_cast %140 : vector<8xf32> to vector<1x1x8xf32>
    %142 = vector.broadcast %141 : vector<1x1x8xf32> to vector<8x16x8xf32>
    %143 = arith.mulf %138, %142 : vector<8x16x8xf32>
    %144 = arith.addf %137, %143 : vector<8x16x8xf32>
    %145 = vector.extract_strided_slice %20 {offsets = [3, 0, 0], sizes = [8, 16, 8], strides = [1, 1, 1]} : vector<12x16x8xf32> to vector<8x16x8xf32>
    %146 = vector.extract_strided_slice %24 {offsets = [3, 2, 0], sizes = [1, 1, 8], strides = [1, 1, 1]} : vector<5x5x8xf32> to vector<1x1x8xf32>
    %147 = vector.shape_cast %146 : vector<1x1x8xf32> to vector<8xf32>
    %148 = vector.shape_cast %147 : vector<8xf32> to vector<1x1x8xf32>
    %149 = vector.broadcast %148 : vector<1x1x8xf32> to vector<8x16x8xf32>
    %150 = arith.mulf %145, %149 : vector<8x16x8xf32>
    %151 = arith.addf %144, %150 : vector<8x16x8xf32>
    %152 = vector.extract_strided_slice %21 {offsets = [3, 0, 0], sizes = [8, 16, 8], strides = [1, 1, 1]} : vector<12x16x8xf32> to vector<8x16x8xf32>
    %153 = vector.extract_strided_slice %24 {offsets = [3, 3, 0], sizes = [1, 1, 8], strides = [1, 1, 1]} : vector<5x5x8xf32> to vector<1x1x8xf32>
    %154 = vector.shape_cast %153 : vector<1x1x8xf32> to vector<8xf32>
    %155 = vector.shape_cast %154 : vector<8xf32> to vector<1x1x8xf32>
    %156 = vector.broadcast %155 : vector<1x1x8xf32> to vector<8x16x8xf32>
    %157 = arith.mulf %152, %156 : vector<8x16x8xf32>
    %158 = arith.addf %151, %157 : vector<8x16x8xf32>
    %159 = vector.extract_strided_slice %22 {offsets = [3, 0, 0], sizes = [8, 16, 8], strides = [1, 1, 1]} : vector<12x16x8xf32> to vector<8x16x8xf32>
    %160 = vector.extract_strided_slice %24 {offsets = [3, 4, 0], sizes = [1, 1, 8], strides = [1, 1, 1]} : vector<5x5x8xf32> to vector<1x1x8xf32>
    %161 = vector.shape_cast %160 : vector<1x1x8xf32> to vector<8xf32>
    %162 = vector.shape_cast %161 : vector<8xf32> to vector<1x1x8xf32>
    %163 = vector.broadcast %162 : vector<1x1x8xf32> to vector<8x16x8xf32>
    %164 = arith.mulf %159, %163 : vector<8x16x8xf32>
    %165 = arith.addf %158, %164 : vector<8x16x8xf32>
    %166 = vector.extract_strided_slice %18 {offsets = [4, 0, 0], sizes = [8, 16, 8], strides = [1, 1, 1]} : vector<12x16x8xf32> to vector<8x16x8xf32>
    %167 = vector.extract_strided_slice %24 {offsets = [4, 0, 0], sizes = [1, 1, 8], strides = [1, 1, 1]} : vector<5x5x8xf32> to vector<1x1x8xf32>
    %168 = vector.shape_cast %167 : vector<1x1x8xf32> to vector<8xf32>
    %169 = vector.shape_cast %168 : vector<8xf32> to vector<1x1x8xf32>
    %170 = vector.broadcast %169 : vector<1x1x8xf32> to vector<8x16x8xf32>
    %171 = arith.mulf %166, %170 : vector<8x16x8xf32>
    %172 = arith.addf %165, %171 : vector<8x16x8xf32>
    %173 = vector.extract_strided_slice %19 {offsets = [4, 0, 0], sizes = [8, 16, 8], strides = [1, 1, 1]} : vector<12x16x8xf32> to vector<8x16x8xf32>
    %174 = vector.extract_strided_slice %24 {offsets = [4, 1, 0], sizes = [1, 1, 8], strides = [1, 1, 1]} : vector<5x5x8xf32> to vector<1x1x8xf32>
    %175 = vector.shape_cast %174 : vector<1x1x8xf32> to vector<8xf32>
    %176 = vector.shape_cast %175 : vector<8xf32> to vector<1x1x8xf32>
    %177 = vector.broadcast %176 : vector<1x1x8xf32> to vector<8x16x8xf32>
    %178 = arith.mulf %173, %177 : vector<8x16x8xf32>
    %179 = arith.addf %172, %178 : vector<8x16x8xf32>
    %180 = vector.extract_strided_slice %20 {offsets = [4, 0, 0], sizes = [8, 16, 8], strides = [1, 1, 1]} : vector<12x16x8xf32> to vector<8x16x8xf32>
    %181 = vector.extract_strided_slice %24 {offsets = [4, 2, 0], sizes = [1, 1, 8], strides = [1, 1, 1]} : vector<5x5x8xf32> to vector<1x1x8xf32>
    %182 = vector.shape_cast %181 : vector<1x1x8xf32> to vector<8xf32>
    %183 = vector.shape_cast %182 : vector<8xf32> to vector<1x1x8xf32>
    %184 = vector.broadcast %183 : vector<1x1x8xf32> to vector<8x16x8xf32>
    %185 = arith.mulf %180, %184 : vector<8x16x8xf32>
    %186 = arith.addf %179, %185 : vector<8x16x8xf32>
    %187 = vector.extract_strided_slice %21 {offsets = [4, 0, 0], sizes = [8, 16, 8], strides = [1, 1, 1]} : vector<12x16x8xf32> to vector<8x16x8xf32>
    %188 = vector.extract_strided_slice %24 {offsets = [4, 3, 0], sizes = [1, 1, 8], strides = [1, 1, 1]} : vector<5x5x8xf32> to vector<1x1x8xf32>
    %189 = vector.shape_cast %188 : vector<1x1x8xf32> to vector<8xf32>
    %190 = vector.shape_cast %189 : vector<8xf32> to vector<1x1x8xf32>
    %191 = vector.broadcast %190 : vector<1x1x8xf32> to vector<8x16x8xf32>
    %192 = arith.mulf %187, %191 : vector<8x16x8xf32>
    %193 = arith.addf %186, %192 : vector<8x16x8xf32>
    %194 = vector.extract_strided_slice %22 {offsets = [4, 0, 0], sizes = [8, 16, 8], strides = [1, 1, 1]} : vector<12x16x8xf32> to vector<8x16x8xf32>
    %195 = vector.extract_strided_slice %24 {offsets = [4, 4, 0], sizes = [1, 1, 8], strides = [1, 1, 1]} : vector<5x5x8xf32> to vector<1x1x8xf32>
    %196 = vector.shape_cast %195 : vector<1x1x8xf32> to vector<8xf32>
    %197 = vector.shape_cast %196 : vector<8xf32> to vector<1x1x8xf32>
    %198 = vector.broadcast %197 : vector<1x1x8xf32> to vector<8x16x8xf32>
    %199 = arith.mulf %194, %198 : vector<8x16x8xf32>
    %200 = arith.addf %193, %199 : vector<8x16x8xf32>
    %c0_33 = arith.constant 0 : index
    %c0_34 = arith.constant 0 : index
    %201 = vector.load %arg6[%c0_33, %c0_34] : memref<2x8xf32, #tpu.memory_space<vmem>>, vector<1x8xf32>
    %202 = vector.shape_cast %201 : vector<1x8xf32> to vector<8xf32>
    %203 = vector.shape_cast %202 : vector<8xf32> to vector<1x1x8xf32>
    %204 = vector.broadcast %203 : vector<1x1x8xf32> to vector<8x16x8xf32>
    %205 = arith.addf %200, %204 : vector<8x16x8xf32>
    %cst_35 = arith.constant 0.000000e+00 : f32
    %206 = vector.broadcast %cst_35 : f32 to vector<8x16x8xf32>
    %207 = arith.maximumf %205, %206 : vector<8x16x8xf32>
    %208 = vector.shape_cast %207 : vector<8x16x8xf32> to vector<128x8xf32>
    %209 = tpu.transpose %208, [1, 0] : vector<128x8xf32> -> vector<8x128xf32>
    %c0_36 = arith.constant 0 : index
    %c0_37 = arith.constant 0 : index
    %c0_38 = arith.constant 0 : index
    %210 = vector.load %arg7[%c0_36, %c0_37, %c0_38] : memref<2x16x8xf32, #tpu.memory_space<vmem>>, vector<1x16x8xf32>
    %211 = vector.shape_cast %210 : vector<1x16x8xf32> to vector<16x8xf32>
    %cst_39 = arith.constant dense<0.000000e+00> : vector<16x128xf32>
    %212 = tpu.matmul %211, %209, %cst_39 {dimension_numbers = #tpu.dot_dimension_numbers<[1], [0], [0], [1], [0, 0, 1, 1], [], []>} : vector<16x8xf32>, vector<8x128xf32>, vector<16x128xf32> -> vector<16x128xf32>
    %c0_40 = arith.constant 0 : index
    %c0_41 = arith.constant 0 : index
    %c0_42 = arith.constant 0 : index
    %213 = vector.load %arg8[%c0_40, %c0_41, %c0_42] : memref<2x16x1xf32, #tpu.memory_space<vmem>>, vector<1x16x1xf32>
    %214 = vector.shape_cast %213 : vector<1x16x1xf32> to vector<16x1xf32>
    %215 = vector.broadcast %214 : vector<16x1xf32> to vector<16x128xf32>
    %216 = arith.addf %212, %215 : vector<16x128xf32>
    %cst_43 = arith.constant 0.000000e+00 : f32
    %217 = vector.broadcast %cst_43 : f32 to vector<16x128xf32>
    %218 = arith.maximumf %216, %217 : vector<16x128xf32>
    %c0_44 = arith.constant 0 : index
    %c0_45 = arith.constant 0 : index
    %219 = vector.load %arg9[%c0_44, %c0_45] : memref<5x16xf32, #tpu.memory_space<vmem>>, vector<3x16xf32>
    %cst_46 = arith.constant dense<0.000000e+00> : vector<3x128xf32>
    %220 = tpu.matmul %219, %218, %cst_46 {dimension_numbers = #tpu.dot_dimension_numbers<[1], [0], [0], [1], [0, 0, 1, 1], [], []>} : vector<3x16xf32>, vector<16x128xf32>, vector<3x128xf32> -> vector<3x128xf32>
    %c0_47 = arith.constant 0 : index
    %c0_48 = arith.constant 0 : index
    %221 = vector.load %arg10[%c0_47, %c0_48] : memref<5x1xf32, #tpu.memory_space<vmem>>, vector<3x1xf32>
    %222 = vector.broadcast %221 : vector<3x1xf32> to vector<3x128xf32>
    %223 = arith.addf %220, %222 : vector<3x128xf32>
    %c0_49 = arith.constant 0 : index
    %c0_50 = arith.constant 0 : index
    %c0_51 = arith.constant 0 : index
    %224 = vector.load %arg11[%c0_49, %c0_50, %c0_51] : memref<1x5x128xf32, #tpu.memory_space<vmem>>, vector<1x3x128xf32>
    %225 = vector.shape_cast %224 : vector<1x3x128xf32> to vector<3x128xf32>
    %226 = vector.shape_cast %223 : vector<3x128xf32> to vector<1x3x128xf32>
    tpu.vector_store %arg11[%c0_49, %c0_50, %c0_51], %226 {strides = array<i32>} : memref<1x5x128xf32, #tpu.memory_space<vmem>>, vector<1x3x128xf32>,
    %c1_52 = arith.constant 1 : index
    %c0_53 = arith.constant 0 : index
    %c0_54 = arith.constant 0 : index
    %c0_55 = arith.constant 0 : index
    %227 = vector.load %arg5[%c1_52, %c0_53, %c0_54, %c0_55] : memref<2x5x5x8xf32, #tpu.memory_space<vmem>>, vector<1x5x5x8xf32>
    %228 = vector.shape_cast %227 : vector<1x5x5x8xf32> to vector<5x5x8xf32>
    %cst_56 = arith.constant 0.000000e+00 : f32
    %229 = vector.broadcast %cst_56 : f32 to vector<8x16x8xf32>
    %230 = vector.extract_strided_slice %18 {offsets = [0, 0, 0], sizes = [8, 16, 8], strides = [1, 1, 1]} : vector<12x16x8xf32> to vector<8x16x8xf32>
    %231 = vector.extract_strided_slice %228 {offsets = [0, 0, 0], sizes = [1, 1, 8], strides = [1, 1, 1]} : vector<5x5x8xf32> to vector<1x1x8xf32>
    %232 = vector.shape_cast %231 : vector<1x1x8xf32> to vector<8xf32>
    %233 = vector.shape_cast %232 : vector<8xf32> to vector<1x1x8xf32>
    %234 = vector.broadcast %233 : vector<1x1x8xf32> to vector<8x16x8xf32>
    %235 = arith.mulf %230, %234 : vector<8x16x8xf32>
    %236 = arith.addf %229, %235 : vector<8x16x8xf32>
    %237 = vector.extract_strided_slice %19 {offsets = [0, 0, 0], sizes = [8, 16, 8], strides = [1, 1, 1]} : vector<12x16x8xf32> to vector<8x16x8xf32>
    %238 = vector.extract_strided_slice %228 {offsets = [0, 1, 0], sizes = [1, 1, 8], strides = [1, 1, 1]} : vector<5x5x8xf32> to vector<1x1x8xf32>
    %239 = vector.shape_cast %238 : vector<1x1x8xf32> to vector<8xf32>
    %240 = vector.shape_cast %239 : vector<8xf32> to vector<1x1x8xf32>
    %241 = vector.broadcast %240 : vector<1x1x8xf32> to vector<8x16x8xf32>
    %242 = arith.mulf %237, %241 : vector<8x16x8xf32>
    %243 = arith.addf %236, %242 : vector<8x16x8xf32>
    %244 = vector.extract_strided_slice %20 {offsets = [0, 0, 0], sizes = [8, 16, 8], strides = [1, 1, 1]} : vector<12x16x8xf32> to vector<8x16x8xf32>
    %245 = vector.extract_strided_slice %228 {offsets = [0, 2, 0], sizes = [1, 1, 8], strides = [1, 1, 1]} : vector<5x5x8xf32> to vector<1x1x8xf32>
    %246 = vector.shape_cast %245 : vector<1x1x8xf32> to vector<8xf32>
    %247 = vector.shape_cast %246 : vector<8xf32> to vector<1x1x8xf32>
    %248 = vector.broadcast %247 : vector<1x1x8xf32> to vector<8x16x8xf32>
    %249 = arith.mulf %244, %248 : vector<8x16x8xf32>
    %250 = arith.addf %243, %249 : vector<8x16x8xf32>
    %251 = vector.extract_strided_slice %21 {offsets = [0, 0, 0], sizes = [8, 16, 8], strides = [1, 1, 1]} : vector<12x16x8xf32> to vector<8x16x8xf32>
    %252 = vector.extract_strided_slice %228 {offsets = [0, 3, 0], sizes = [1, 1, 8], strides = [1, 1, 1]} : vector<5x5x8xf32> to vector<1x1x8xf32>
    %253 = vector.shape_cast %252 : vector<1x1x8xf32> to vector<8xf32>
    %254 = vector.shape_cast %253 : vector<8xf32> to vector<1x1x8xf32>
    %255 = vector.broadcast %254 : vector<1x1x8xf32> to vector<8x16x8xf32>
    %256 = arith.mulf %251, %255 : vector<8x16x8xf32>
    %257 = arith.addf %250, %256 : vector<8x16x8xf32>
    %258 = vector.extract_strided_slice %22 {offsets = [0, 0, 0], sizes = [8, 16, 8], strides = [1, 1, 1]} : vector<12x16x8xf32> to vector<8x16x8xf32>
    %259 = vector.extract_strided_slice %228 {offsets = [0, 4, 0], sizes = [1, 1, 8], strides = [1, 1, 1]} : vector<5x5x8xf32> to vector<1x1x8xf32>
    %260 = vector.shape_cast %259 : vector<1x1x8xf32> to vector<8xf32>
    %261 = vector.shape_cast %260 : vector<8xf32> to vector<1x1x8xf32>
    %262 = vector.broadcast %261 : vector<1x1x8xf32> to vector<8x16x8xf32>
    %263 = arith.mulf %258, %262 : vector<8x16x8xf32>
    %264 = arith.addf %257, %263 : vector<8x16x8xf32>
    %265 = vector.extract_strided_slice %18 {offsets = [1, 0, 0], sizes = [8, 16, 8], strides = [1, 1, 1]} : vector<12x16x8xf32> to vector<8x16x8xf32>
    %266 = vector.extract_strided_slice %228 {offsets = [1, 0, 0], sizes = [1, 1, 8], strides = [1, 1, 1]} : vector<5x5x8xf32> to vector<1x1x8xf32>
    %267 = vector.shape_cast %266 : vector<1x1x8xf32> to vector<8xf32>
    %268 = vector.shape_cast %267 : vector<8xf32> to vector<1x1x8xf32>
    %269 = vector.broadcast %268 : vector<1x1x8xf32> to vector<8x16x8xf32>
    %270 = arith.mulf %265, %269 : vector<8x16x8xf32>
    %271 = arith.addf %264, %270 : vector<8x16x8xf32>
    %272 = vector.extract_strided_slice %19 {offsets = [1, 0, 0], sizes = [8, 16, 8], strides = [1, 1, 1]} : vector<12x16x8xf32> to vector<8x16x8xf32>
    %273 = vector.extract_strided_slice %228 {offsets = [1, 1, 0], sizes = [1, 1, 8], strides = [1, 1, 1]} : vector<5x5x8xf32> to vector<1x1x8xf32>
    %274 = vector.shape_cast %273 : vector<1x1x8xf32> to vector<8xf32>
    %275 = vector.shape_cast %274 : vector<8xf32> to vector<1x1x8xf32>
    %276 = vector.broadcast %275 : vector<1x1x8xf32> to vector<8x16x8xf32>
    %277 = arith.mulf %272, %276 : vector<8x16x8xf32>
    %278 = arith.addf %271, %277 : vector<8x16x8xf32>
    %279 = vector.extract_strided_slice %20 {offsets = [1, 0, 0], sizes = [8, 16, 8], strides = [1, 1, 1]} : vector<12x16x8xf32> to vector<8x16x8xf32>
    %280 = vector.extract_strided_slice %228 {offsets = [1, 2, 0], sizes = [1, 1, 8], strides = [1, 1, 1]} : vector<5x5x8xf32> to vector<1x1x8xf32>
    %281 = vector.shape_cast %280 : vector<1x1x8xf32> to vector<8xf32>
    %282 = vector.shape_cast %281 : vector<8xf32> to vector<1x1x8xf32>
    %283 = vector.broadcast %282 : vector<1x1x8xf32> to vector<8x16x8xf32>
    %284 = arith.mulf %279, %283 : vector<8x16x8xf32>
    %285 = arith.addf %278, %284 : vector<8x16x8xf32>
    %286 = vector.extract_strided_slice %21 {offsets = [1, 0, 0], sizes = [8, 16, 8], strides = [1, 1, 1]} : vector<12x16x8xf32> to vector<8x16x8xf32>
    %287 = vector.extract_strided_slice %228 {offsets = [1, 3, 0], sizes = [1, 1, 8], strides = [1, 1, 1]} : vector<5x5x8xf32> to vector<1x1x8xf32>
    %288 = vector.shape_cast %287 : vector<1x1x8xf32> to vector<8xf32>
    %289 = vector.shape_cast %288 : vector<8xf32> to vector<1x1x8xf32>
    %290 = vector.broadcast %289 : vector<1x1x8xf32> to vector<8x16x8xf32>
    %291 = arith.mulf %286, %290 : vector<8x16x8xf32>
    %292 = arith.addf %285, %291 : vector<8x16x8xf32>
    %293 = vector.extract_strided_slice %22 {offsets = [1, 0, 0], sizes = [8, 16, 8], strides = [1, 1, 1]} : vector<12x16x8xf32> to vector<8x16x8xf32>
    %294 = vector.extract_strided_slice %228 {offsets = [1, 4, 0], sizes = [1, 1, 8], strides = [1, 1, 1]} : vector<5x5x8xf32> to vector<1x1x8xf32>
    %295 = vector.shape_cast %294 : vector<1x1x8xf32> to vector<8xf32>
    %296 = vector.shape_cast %295 : vector<8xf32> to vector<1x1x8xf32>
    %297 = vector.broadcast %296 : vector<1x1x8xf32> to vector<8x16x8xf32>
    %298 = arith.mulf %293, %297 : vector<8x16x8xf32>
    %299 = arith.addf %292, %298 : vector<8x16x8xf32>
    %300 = vector.extract_strided_slice %18 {offsets = [2, 0, 0], sizes = [8, 16, 8], strides = [1, 1, 1]} : vector<12x16x8xf32> to vector<8x16x8xf32>
    %301 = vector.extract_strided_slice %228 {offsets = [2, 0, 0], sizes = [1, 1, 8], strides = [1, 1, 1]} : vector<5x5x8xf32> to vector<1x1x8xf32>
    %302 = vector.shape_cast %301 : vector<1x1x8xf32> to vector<8xf32>
    %303 = vector.shape_cast %302 : vector<8xf32> to vector<1x1x8xf32>
    %304 = vector.broadcast %303 : vector<1x1x8xf32> to vector<8x16x8xf32>
    %305 = arith.mulf %300, %304 : vector<8x16x8xf32>
    %306 = arith.addf %299, %305 : vector<8x16x8xf32>
    %307 = vector.extract_strided_slice %19 {offsets = [2, 0, 0], sizes = [8, 16, 8], strides = [1, 1, 1]} : vector<12x16x8xf32> to vector<8x16x8xf32>
    %308 = vector.extract_strided_slice %228 {offsets = [2, 1, 0], sizes = [1, 1, 8], strides = [1, 1, 1]} : vector<5x5x8xf32> to vector<1x1x8xf32>
    %309 = vector.shape_cast %308 : vector<1x1x8xf32> to vector<8xf32>
    %310 = vector.shape_cast %309 : vector<8xf32> to vector<1x1x8xf32>
    %311 = vector.broadcast %310 : vector<1x1x8xf32> to vector<8x16x8xf32>
    %312 = arith.mulf %307, %311 : vector<8x16x8xf32>
    %313 = arith.addf %306, %312 : vector<8x16x8xf32>
    %314 = vector.extract_strided_slice %20 {offsets = [2, 0, 0], sizes = [8, 16, 8], strides = [1, 1, 1]} : vector<12x16x8xf32> to vector<8x16x8xf32>
    %315 = vector.extract_strided_slice %228 {offsets = [2, 2, 0], sizes = [1, 1, 8], strides = [1, 1, 1]} : vector<5x5x8xf32> to vector<1x1x8xf32>
    %316 = vector.shape_cast %315 : vector<1x1x8xf32> to vector<8xf32>
    %317 = vector.shape_cast %316 : vector<8xf32> to vector<1x1x8xf32>
    %318 = vector.broadcast %317 : vector<1x1x8xf32> to vector<8x16x8xf32>
    %319 = arith.mulf %314, %318 : vector<8x16x8xf32>
    %320 = arith.addf %313, %319 : vector<8x16x8xf32>
    %321 = vector.extract_strided_slice %21 {offsets = [2, 0, 0], sizes = [8, 16, 8], strides = [1, 1, 1]} : vector<12x16x8xf32> to vector<8x16x8xf32>
    %322 = vector.extract_strided_slice %228 {offsets = [2, 3, 0], sizes = [1, 1, 8], strides = [1, 1, 1]} : vector<5x5x8xf32> to vector<1x1x8xf32>
    %323 = vector.shape_cast %322 : vector<1x1x8xf32> to vector<8xf32>
    %324 = vector.shape_cast %323 : vector<8xf32> to vector<1x1x8xf32>
    %325 = vector.broadcast %324 : vector<1x1x8xf32> to vector<8x16x8xf32>
    %326 = arith.mulf %321, %325 : vector<8x16x8xf32>
    %327 = arith.addf %320, %326 : vector<8x16x8xf32>
    %328 = vector.extract_strided_slice %22 {offsets = [2, 0, 0], sizes = [8, 16, 8], strides = [1, 1, 1]} : vector<12x16x8xf32> to vector<8x16x8xf32>
    %329 = vector.extract_strided_slice %228 {offsets = [2, 4, 0], sizes = [1, 1, 8], strides = [1, 1, 1]} : vector<5x5x8xf32> to vector<1x1x8xf32>
    %330 = vector.shape_cast %329 : vector<1x1x8xf32> to vector<8xf32>
    %331 = vector.shape_cast %330 : vector<8xf32> to vector<1x1x8xf32>
    %332 = vector.broadcast %331 : vector<1x1x8xf32> to vector<8x16x8xf32>
    %333 = arith.mulf %328, %332 : vector<8x16x8xf32>
    %334 = arith.addf %327, %333 : vector<8x16x8xf32>
    %335 = vector.extract_strided_slice %18 {offsets = [3, 0, 0], sizes = [8, 16, 8], strides = [1, 1, 1]} : vector<12x16x8xf32> to vector<8x16x8xf32>
    %336 = vector.extract_strided_slice %228 {offsets = [3, 0, 0], sizes = [1, 1, 8], strides = [1, 1, 1]} : vector<5x5x8xf32> to vector<1x1x8xf32>
    %337 = vector.shape_cast %336 : vector<1x1x8xf32> to vector<8xf32>
    %338 = vector.shape_cast %337 : vector<8xf32> to vector<1x1x8xf32>
    %339 = vector.broadcast %338 : vector<1x1x8xf32> to vector<8x16x8xf32>
    %340 = arith.mulf %335, %339 : vector<8x16x8xf32>
    %341 = arith.addf %334, %340 : vector<8x16x8xf32>
    %342 = vector.extract_strided_slice %19 {offsets = [3, 0, 0], sizes = [8, 16, 8], strides = [1, 1, 1]} : vector<12x16x8xf32> to vector<8x16x8xf32>
    %343 = vector.extract_strided_slice %228 {offsets = [3, 1, 0], sizes = [1, 1, 8], strides = [1, 1, 1]} : vector<5x5x8xf32> to vector<1x1x8xf32>
    %344 = vector.shape_cast %343 : vector<1x1x8xf32> to vector<8xf32>
    %345 = vector.shape_cast %344 : vector<8xf32> to vector<1x1x8xf32>
    %346 = vector.broadcast %345 : vector<1x1x8xf32> to vector<8x16x8xf32>
    %347 = arith.mulf %342, %346 : vector<8x16x8xf32>
    %348 = arith.addf %341, %347 : vector<8x16x8xf32>
    %349 = vector.extract_strided_slice %20 {offsets = [3, 0, 0], sizes = [8, 16, 8], strides = [1, 1, 1]} : vector<12x16x8xf32> to vector<8x16x8xf32>
    %350 = vector.extract_strided_slice %228 {offsets = [3, 2, 0], sizes = [1, 1, 8], strides = [1, 1, 1]} : vector<5x5x8xf32> to vector<1x1x8xf32>
    %351 = vector.shape_cast %350 : vector<1x1x8xf32> to vector<8xf32>
    %352 = vector.shape_cast %351 : vector<8xf32> to vector<1x1x8xf32>
    %353 = vector.broadcast %352 : vector<1x1x8xf32> to vector<8x16x8xf32>
    %354 = arith.mulf %349, %353 : vector<8x16x8xf32>
    %355 = arith.addf %348, %354 : vector<8x16x8xf32>
    %356 = vector.extract_strided_slice %21 {offsets = [3, 0, 0], sizes = [8, 16, 8], strides = [1, 1, 1]} : vector<12x16x8xf32> to vector<8x16x8xf32>
    %357 = vector.extract_strided_slice %228 {offsets = [3, 3, 0], sizes = [1, 1, 8], strides = [1, 1, 1]} : vector<5x5x8xf32> to vector<1x1x8xf32>
    %358 = vector.shape_cast %357 : vector<1x1x8xf32> to vector<8xf32>
    %359 = vector.shape_cast %358 : vector<8xf32> to vector<1x1x8xf32>
    %360 = vector.broadcast %359 : vector<1x1x8xf32> to vector<8x16x8xf32>
    %361 = arith.mulf %356, %360 : vector<8x16x8xf32>
    %362 = arith.addf %355, %361 : vector<8x16x8xf32>
    %363 = vector.extract_strided_slice %22 {offsets = [3, 0, 0], sizes = [8, 16, 8], strides = [1, 1, 1]} : vector<12x16x8xf32> to vector<8x16x8xf32>
    %364 = vector.extract_strided_slice %228 {offsets = [3, 4, 0], sizes = [1, 1, 8], strides = [1, 1, 1]} : vector<5x5x8xf32> to vector<1x1x8xf32>
    %365 = vector.shape_cast %364 : vector<1x1x8xf32> to vector<8xf32>
    %366 = vector.shape_cast %365 : vector<8xf32> to vector<1x1x8xf32>
    %367 = vector.broadcast %366 : vector<1x1x8xf32> to vector<8x16x8xf32>
    %368 = arith.mulf %363, %367 : vector<8x16x8xf32>
    %369 = arith.addf %362, %368 : vector<8x16x8xf32>
    %370 = vector.extract_strided_slice %18 {offsets = [4, 0, 0], sizes = [8, 16, 8], strides = [1, 1, 1]} : vector<12x16x8xf32> to vector<8x16x8xf32>
    %371 = vector.extract_strided_slice %228 {offsets = [4, 0, 0], sizes = [1, 1, 8], strides = [1, 1, 1]} : vector<5x5x8xf32> to vector<1x1x8xf32>
    %372 = vector.shape_cast %371 : vector<1x1x8xf32> to vector<8xf32>
    %373 = vector.shape_cast %372 : vector<8xf32> to vector<1x1x8xf32>
    %374 = vector.broadcast %373 : vector<1x1x8xf32> to vector<8x16x8xf32>
    %375 = arith.mulf %370, %374 : vector<8x16x8xf32>
    %376 = arith.addf %369, %375 : vector<8x16x8xf32>
    %377 = vector.extract_strided_slice %19 {offsets = [4, 0, 0], sizes = [8, 16, 8], strides = [1, 1, 1]} : vector<12x16x8xf32> to vector<8x16x8xf32>
    %378 = vector.extract_strided_slice %228 {offsets = [4, 1, 0], sizes = [1, 1, 8], strides = [1, 1, 1]} : vector<5x5x8xf32> to vector<1x1x8xf32>
    %379 = vector.shape_cast %378 : vector<1x1x8xf32> to vector<8xf32>
    %380 = vector.shape_cast %379 : vector<8xf32> to vector<1x1x8xf32>
    %381 = vector.broadcast %380 : vector<1x1x8xf32> to vector<8x16x8xf32>
    %382 = arith.mulf %377, %381 : vector<8x16x8xf32>
    %383 = arith.addf %376, %382 : vector<8x16x8xf32>
    %384 = vector.extract_strided_slice %20 {offsets = [4, 0, 0], sizes = [8, 16, 8], strides = [1, 1, 1]} : vector<12x16x8xf32> to vector<8x16x8xf32>
    %385 = vector.extract_strided_slice %228 {offsets = [4, 2, 0], sizes = [1, 1, 8], strides = [1, 1, 1]} : vector<5x5x8xf32> to vector<1x1x8xf32>
    %386 = vector.shape_cast %385 : vector<1x1x8xf32> to vector<8xf32>
    %387 = vector.shape_cast %386 : vector<8xf32> to vector<1x1x8xf32>
    %388 = vector.broadcast %387 : vector<1x1x8xf32> to vector<8x16x8xf32>
    %389 = arith.mulf %384, %388 : vector<8x16x8xf32>
    %390 = arith.addf %383, %389 : vector<8x16x8xf32>
    %391 = vector.extract_strided_slice %21 {offsets = [4, 0, 0], sizes = [8, 16, 8], strides = [1, 1, 1]} : vector<12x16x8xf32> to vector<8x16x8xf32>
    %392 = vector.extract_strided_slice %228 {offsets = [4, 3, 0], sizes = [1, 1, 8], strides = [1, 1, 1]} : vector<5x5x8xf32> to vector<1x1x8xf32>
    %393 = vector.shape_cast %392 : vector<1x1x8xf32> to vector<8xf32>
    %394 = vector.shape_cast %393 : vector<8xf32> to vector<1x1x8xf32>
    %395 = vector.broadcast %394 : vector<1x1x8xf32> to vector<8x16x8xf32>
    %396 = arith.mulf %391, %395 : vector<8x16x8xf32>
    %397 = arith.addf %390, %396 : vector<8x16x8xf32>
    %398 = vector.extract_strided_slice %22 {offsets = [4, 0, 0], sizes = [8, 16, 8], strides = [1, 1, 1]} : vector<12x16x8xf32> to vector<8x16x8xf32>
    %399 = vector.extract_strided_slice %228 {offsets = [4, 4, 0], sizes = [1, 1, 8], strides = [1, 1, 1]} : vector<5x5x8xf32> to vector<1x1x8xf32>
    %400 = vector.shape_cast %399 : vector<1x1x8xf32> to vector<8xf32>
    %401 = vector.shape_cast %400 : vector<8xf32> to vector<1x1x8xf32>
    %402 = vector.broadcast %401 : vector<1x1x8xf32> to vector<8x16x8xf32>
    %403 = arith.mulf %398, %402 : vector<8x16x8xf32>
    %404 = arith.addf %397, %403 : vector<8x16x8xf32>
    %c1_57 = arith.constant 1 : index
    %c0_58 = arith.constant 0 : index
    %405 = vector.load %arg6[%c1_57, %c0_58] : memref<2x8xf32, #tpu.memory_space<vmem>>, vector<1x8xf32>
    %406 = vector.shape_cast %405 : vector<1x8xf32> to vector<8xf32>
    %407 = vector.shape_cast %406 : vector<8xf32> to vector<1x1x8xf32>
    %408 = vector.broadcast %407 : vector<1x1x8xf32> to vector<8x16x8xf32>
    %409 = arith.addf %404, %408 : vector<8x16x8xf32>
    %cst_59 = arith.constant 0.000000e+00 : f32
    %410 = vector.broadcast %cst_59 : f32 to vector<8x16x8xf32>
    %411 = arith.maximumf %409, %410 : vector<8x16x8xf32>
    %412 = vector.shape_cast %411 : vector<8x16x8xf32> to vector<128x8xf32>
    %413 = tpu.transpose %412, [1, 0] : vector<128x8xf32> -> vector<8x128xf32>
    %c1_60 = arith.constant 1 : index
    %c0_61 = arith.constant 0 : index
    %c0_62 = arith.constant 0 : index
    %414 = vector.load %arg7[%c1_60, %c0_61, %c0_62] : memref<2x16x8xf32, #tpu.memory_space<vmem>>, vector<1x16x8xf32>
    %415 = vector.shape_cast %414 : vector<1x16x8xf32> to vector<16x8xf32>
    %cst_63 = arith.constant dense<0.000000e+00> : vector<16x128xf32>
    %416 = tpu.matmul %415, %413, %cst_63 {dimension_numbers = #tpu.dot_dimension_numbers<[1], [0], [0], [1], [0, 0, 1, 1], [], []>} : vector<16x8xf32>, vector<8x128xf32>, vector<16x128xf32> -> vector<16x128xf32>
    %c1_64 = arith.constant 1 : index
    %c0_65 = arith.constant 0 : index
    %c0_66 = arith.constant 0 : index
    %417 = vector.load %arg8[%c1_64, %c0_65, %c0_66] : memref<2x16x1xf32, #tpu.memory_space<vmem>>, vector<1x16x1xf32>
    %418 = vector.shape_cast %417 : vector<1x16x1xf32> to vector<16x1xf32>
    %419 = vector.broadcast %418 : vector<16x1xf32> to vector<16x128xf32>
    %420 = arith.addf %416, %419 : vector<16x128xf32>
    %cst_67 = arith.constant 0.000000e+00 : f32
    %421 = vector.broadcast %cst_67 : f32 to vector<16x128xf32>
    %422 = arith.maximumf %420, %421 : vector<16x128xf32>
    %c3_68 = arith.constant 3 : index
    %c0_69 = arith.constant 0 : index
    %423 = vector.load %arg9[%c3_68, %c0_69] : memref<5x16xf32, #tpu.memory_space<vmem>>, vector<2x16xf32>
    %cst_70 = arith.constant dense<0.000000e+00> : vector<2x128xf32>
    %424 = tpu.matmul %423, %422, %cst_70 {dimension_numbers = #tpu.dot_dimension_numbers<[1], [0], [0], [1], [0, 0, 1, 1], [], []>} : vector<2x16xf32>, vector<16x128xf32>, vector<2x128xf32> -> vector<2x128xf32>
    %c3_71 = arith.constant 3 : index
    %c0_72 = arith.constant 0 : index
    %425 = vector.load %arg10[%c3_71, %c0_72] : memref<5x1xf32, #tpu.memory_space<vmem>>, vector<2x1xf32>
    %426 = vector.broadcast %425 : vector<2x1xf32> to vector<2x128xf32>
    %427 = arith.addf %424, %426 : vector<2x128xf32>
    %c0_73 = arith.constant 0 : index
    %c3_74 = arith.constant 3 : index
    %c0_75 = arith.constant 0 : index
    %428 = vector.load %arg11[%c0_73, %c3_74, %c0_75] : memref<1x5x128xf32, #tpu.memory_space<vmem>>, vector<1x2x128xf32>
    %429 = vector.shape_cast %428 : vector<1x2x128xf32> to vector<2x128xf32>
    %430 = vector.shape_cast %427 : vector<2x128xf32> to vector<1x2x128xf32>
    tpu.vector_store %arg11[%c0_73, %c3_74, %c0_75], %430 {strides = array<i32>} : memref<1x5x128xf32, #tpu.memory_space<vmem>>, vector<1x2x128xf32>,
    return
  }
  func.func @transform_0(%arg0: i32, %arg1: i32) -> (i32, i32, i32, i32) {
    %c0_i32 = arith.constant 0 : i32
    %c0_i32_0 = arith.constant 0 : i32
    %c0_i32_1 = arith.constant 0 : i32
    return %arg0, %arg1, %c0_i32, %c0_i32_0 : i32, i32, i32, i32
  }
  func.func @transform_1(%arg0: i32, %arg1: i32) -> (i32, i32, i32, i32) {
    %c4_i32 = arith.constant 4 : i32
    %0 = arith.muli %arg1, %c4_i32 : i32
    %c1_i32 = arith.constant 1 : i32
    %1 = arith.subi %0, %c1_i32 : i32
    %c0_i32 = arith.constant 0 : i32
    %2 = arith.maxsi %1, %c0_i32 : i32
    %c0_i32_0 = arith.constant 0 : i32
    %c0_i32_1 = arith.constant 0 : i32
    %c0_i32_2 = arith.constant 0 : i32
    return %arg0, %2, %c0_i32_0, %c0_i32_1 : i32, i32, i32, i32
  }
  func.func @transform_2(%arg0: i32, %arg1: i32) -> (i32, i32, i32, i32) {
    %c4_i32 = arith.constant 4 : i32
    %0 = arith.muli %arg1, %c4_i32 : i32
    %c4_i32_0 = arith.constant 4 : i32
    %1 = arith.addi %0, %c4_i32_0 : i32
    %c7_i32 = arith.constant 7 : i32
    %2 = arith.minsi %1, %c7_i32 : i32
    %c0_i32 = arith.constant 0 : i32
    %c0_i32_1 = arith.constant 0 : i32
    %c0_i32_2 = arith.constant 0 : i32
    return %arg0, %2, %c0_i32, %c0_i32_1 : i32, i32, i32, i32
  }
  func.func @transform_3(%arg0: i32, %arg1: i32) -> (i32, i32, i32, i32) {
    %c0_i32 = arith.constant 0 : i32
    %c0_i32_0 = arith.constant 0 : i32
    %c0_i32_1 = arith.constant 0 : i32
    %c0_i32_2 = arith.constant 0 : i32
    %c0_i32_3 = arith.constant 0 : i32
    return %c0_i32, %c0_i32_0, %c0_i32_1, %c0_i32_2 : i32, i32, i32, i32
  }
  func.func @transform_4(%arg0: i32, %arg1: i32) -> (i32, i32) {
    %c0_i32 = arith.constant 0 : i32
    %c0_i32_0 = arith.constant 0 : i32
    %c0_i32_1 = arith.constant 0 : i32
    return %c0_i32, %c0_i32_0 : i32, i32
  }
  func.func @transform_5(%arg0: i32, %arg1: i32) -> (i32, i32, i32) {
    %c0_i32 = arith.constant 0 : i32
    %c0_i32_0 = arith.constant 0 : i32
    %c0_i32_1 = arith.constant 0 : i32
    %c0_i32_2 = arith.constant 0 : i32
    return %c0_i32, %c0_i32_0, %c0_i32_1 : i32, i32, i32
  }
  func.func @transform_6(%arg0: i32, %arg1: i32) -> (i32, i32, i32) {
    %c0_i32 = arith.constant 0 : i32
    %c0_i32_0 = arith.constant 0 : i32
    %c0_i32_1 = arith.constant 0 : i32
    %c0_i32_2 = arith.constant 0 : i32
    return %c0_i32, %c0_i32_0, %c0_i32_1 : i32, i32, i32
  }
  func.func @transform_7(%arg0: i32, %arg1: i32) -> (i32, i32) {
    %c0_i32 = arith.constant 0 : i32
    %c0_i32_0 = arith.constant 0 : i32
    %c0_i32_1 = arith.constant 0 : i32
    return %c0_i32, %c0_i32_0 : i32, i32
  }
  func.func @transform_8(%arg0: i32, %arg1: i32) -> (i32, i32) {
    %c0_i32 = arith.constant 0 : i32
    %c0_i32_0 = arith.constant 0 : i32
    %c0_i32_1 = arith.constant 0 : i32
    return %c0_i32, %c0_i32_0 : i32, i32
  }
  func.func @transform_9(%arg0: i32, %arg1: i32) -> (i32, i32, i32) {
    %c0_i32 = arith.constant 0 : i32
    %c0_i32_0 = arith.constant 0 : i32
    return %arg0, %c0_i32, %arg1 : i32, i32, i32
  }
}

</mosaic_0001>

<llo_original>
// kernel: tpu_custom_call.1
$region0: #{tpu_custom_call.1}
  #allocation0 [shape = 'u32[]', space=smem, size = 0x4, offset = 0x4, fixed_abs, tag = 'smem constant byte address 0x4 - core index']
  #allocation1 [shape = 'u32[144,128]{1,0:T(1,128)}', space=vmem, size = 0x12000, scoped, tag = 'internal scratch']
  #allocation2 [shape = 'f32[12,20,8]{2,1,0:T(8,128)}', space=vmem, size = 0x24000, scoped, tag = 'scratch operand']
  %s0 = inlined_call_operand.vmem [shape: f32[2,16,16,8], index: 0, kind: input, shape index: {}]
  %s1 = inlined_call_operand.vmem [shape: f32[2,16,16,8], index: 1, kind: input, shape index: {}]
  %s2 = inlined_call_operand.vmem [shape: f32[2,16,16,8], index: 2, kind: input, shape index: {}]
  %s3 = inlined_call_operand.vmem [shape: f32[2,5,5,8], index: 3, kind: input, shape index: {}]
  %s4 = inlined_call_operand.vmem [shape: f32[2,8], index: 4, kind: input, shape index: {}]
  %s5 = inlined_call_operand.vmem [shape: f32[2,16,8], index: 5, kind: input, shape index: {}]
  %s6 = inlined_call_operand.vmem [shape: f32[2,16,1], index: 6, kind: input, shape index: {}]
  %s7 = inlined_call_operand.vmem [shape: f32[5,16], index: 7, kind: input, shape index: {}]
  %s8 = inlined_call_operand.vmem [shape: f32[5,1], index: 8, kind: input, shape index: {}]
  %s9 = inlined_call_operand.vmem [shape: f32[2,5,256], index: 9, kind: output, shape index: {}]
  %s10 = sld [smem:[#allocation0]]
  $region85: #{tpu_custom_call.1} parent=0
    _
  %s12 = ssub.s32 1, %s10
  %s13 = scalar_select 0, %s12, %s10
  loop: start=0, step=1, limit=6
  $region2: #{tpu_custom_call.1} parent=0 // loop_pre_header
    _
  $region3: #{tpu_custom_call.1} parent=0 // loop_header
    %s15 = sphi 0, %s19
    %p16 = scmp.ge.s32.totalorder %s15, 6
    %s22 = sphi 0, %s34
    %s23 = sphi 0, %s30
    %s24 = sphi 0, %s22
    %s25 = sphi 0, %s23
    %s26 = sphi 0, %s24
    %s27 = sphi 0, %s25
    %s39 = sphi 0, %s41
    %s42 = sphi 0, %s39
    %s43 = sphi 0, %s42
    %s59 = sphi 0, %s43
    %s75 = sphi 0, %s77
    %s78 = sphi 0, %s75
    %s79 = sphi 0, %s78
    %s95 = sphi 0, %s79
    %s111 = sphi 0, %s113
    %s114 = sphi 0, %s111
    %s115 = sphi 0, %s114
    %s131 = sphi 0, %s115
    %s135 = sphi 0, %s135
    %s137 = sphi 0, %s135
    %s138 = sphi 0, %s137
    %s152 = sphi 0, %s138
    %s156 = sphi 0, %s156
    %s158 = sphi 0, %s156
    %s159 = sphi 0, %s158
    %s173 = sphi 0, %s159
    %s177 = sphi 0, %s177
    %s179 = sphi 0, %s177
    %s180 = sphi 0, %s179
    %s194 = sphi 0, %s180
    %s198 = sphi 0, %s198
    %s200 = sphi 0, %s198
    %s201 = sphi 0, %s200
    %s215 = sphi 0, %s201
    %s219 = sphi 0, %s219
    %s221 = sphi 0, %s219
    %s222 = sphi 0, %s221
    %s236 = sphi 0, %s222
    %s240 = sphi 0, %s240
    %s242 = sphi 0, %s240
    %s243 = sphi 0, %s242
    %s257 = sphi 0, %s243
    %s265 = sphi 0, %s267
    %s268 = sphi 0, %s265
    %s269 = sphi 0, %s268
    %s285 = sphi 0, %s269
  $region4: #{tpu_custom_call.1} parent=0 // loop_header_branch
    %18 = sbr.rel (%p16) target = $region8
  $region5: #{tpu_custom_call.1} parent=0 // loop_body
    %s20 = ssub.s32 %s15, 1
    %s21 = ssub.s32 %s15, 2
    %s28 = sadd.s32 1, %s23
    %p29 = scmp.ge.s32.totalorder %s28, 2
    %s30 = scalar_select %p29, 0, %s28
    %s31 = sadd.s32 1, %s22
    %s32 = scalar_select %p29, %s31, %s22
    %p33 = scmp.ge.s32.totalorder %s32, 2
    %s34 = scalar_select %p33, 0, %s32
    %s35 = ssub.s32 %s22, %s34
    %s36 = ssub.s32 %s23, %s30
    %s37 = sor.u32 %s35, %s36
    %p38 = scmp.eq.s32.totalorder %s37, 0
    %s40 = sadd.s32 %s39, 1
    %s41 = scalar_select %p38, %s39, %s40
    %p44 = pneg %p38
    %p45 = scmp.eq.s32.totalorder %s15, 3
    %p46 = por %p44, %p45
    %p47 = scmp.ne.s32.totalorder %s39, %s42
    %p48 = scmp.eq.s32.totalorder %s15, 0
    %p49 = por %p47, %p48
    %p50 = scmp.ne.s32.totalorder %s39, %s42
    %p51 = scmp.eq.s32.totalorder %s20, 3
    %p52 = por %p50, %p51
    %p53 = scmp.ne.s32.totalorder %s42, %s43
    %p54 = scmp.eq.s32.totalorder %s20, 0
    %p55 = por %p53, %p54
    %p56 = scmp.ne.s32.totalorder %s42, %s43
    %p57 = scmp.eq.s32.totalorder %s21, 3
    %p58 = por %p56, %p57
    %p60 = scmp.ne.s32.totalorder %s43, %s59
    %p61 = scmp.eq.s32.totalorder %s21, 0
    %p62 = por %p60, %p61
    %s63 = smul.u32 %s23, 4
    %s64 = ssub.s32 %s63, 1
    %p65 = scmp.gt.s32.totalorder %s64, 0
    %s66 = scalar_select %p65, %s64, 0
    %s67 = smul.u32 %s30, 4
    %s68 = ssub.s32 %s67, 1
    %p69 = scmp.gt.s32.totalorder %s68, 0
    %s70 = scalar_select %p69, %s68, 0
    %s71 = ssub.s32 %s22, %s34
    %s72 = ssub.s32 %s66, %s70
    %s73 = sor.u32 %s71, %s72
    %p74 = scmp.eq.s32.totalorder %s73, 0
    %s76 = sadd.s32 %s75, 1
    %s77 = scalar_select %p74, %s75, %s76
    %p80 = pneg %p74
    %p81 = scmp.eq.s32.totalorder %s15, 3
    %p82 = por %p80, %p81
    %p83 = scmp.ne.s32.totalorder %s75, %s78
    %p84 = scmp.eq.s32.totalorder %s15, 0
    %p85 = por %p83, %p84
    %p86 = scmp.ne.s32.totalorder %s75, %s78
    %p87 = scmp.eq.s32.totalorder %s20, 3
    %p88 = por %p86, %p87
    %p89 = scmp.ne.s32.totalorder %s78, %s79
    %p90 = scmp.eq.s32.totalorder %s20, 0
    %p91 = por %p89, %p90
    %p92 = scmp.ne.s32.totalorder %s78, %s79
    %p93 = scmp.eq.s32.totalorder %s21, 3
    %p94 = por %p92, %p93
    %p96 = scmp.ne.s32.totalorder %s79, %s95
    %p97 = scmp.eq.s32.totalorder %s21, 0
    %p98 = por %p96, %p97
    %s99 = smul.u32 %s23, 4
    %s100 = sadd.s32 %s99, 4
    %p101 = scmp.lt.s32.totalorder %s100, 7
    %s102 = scalar_select %p101, %s100, 7
    %s103 = smul.u32 %s30, 4
    %s104 = sadd.s32 %s103, 4
    %p105 = scmp.lt.s32.totalorder %s104, 7
    %s106 = scalar_select %p105, %s104, 7
    %s107 = ssub.s32 %s22, %s34
    %s108 = ssub.s32 %s102, %s106
    %s109 = sor.u32 %s107, %s108
    %p110 = scmp.eq.s32.totalorder %s109, 0
    %s112 = sadd.s32 %s111, 1
    %s113 = scalar_select %p110, %s111, %s112
    %p116 = pneg %p110
    %p117 = scmp.eq.s32.totalorder %s15, 3
    %p118 = por %p116, %p117
    %p119 = scmp.ne.s32.totalorder %s111, %s114
    %p120 = scmp.eq.s32.totalorder %s15, 0
    %p121 = por %p119, %p120
    %p122 = scmp.ne.s32.totalorder %s111, %s114
    %p123 = scmp.eq.s32.totalorder %s20, 3
    %p124 = por %p122, %p123
    %p125 = scmp.ne.s32.totalorder %s114, %s115
    %p126 = scmp.eq.s32.totalorder %s20, 0
    %p127 = por %p125, %p126
    %p128 = scmp.ne.s32.totalorder %s114, %s115
    %p129 = scmp.eq.s32.totalorder %s21, 3
    %p130 = por %p128, %p129
    %p132 = scmp.ne.s32.totalorder %s115, %s131
    %p133 = scmp.eq.s32.totalorder %s21, 0
    %p134 = por %p132, %p133
    %s136 = sadd.s32 %s135, 1
    %p139 = scmp.eq.s32.totalorder %s15, 3
    %p140 = scmp.ne.s32.totalorder %s135, %s137
    %p141 = scmp.eq.s32.totalorder %s15, 0
    %p142 = por %p140, %p141
    %p143 = scmp.ne.s32.totalorder %s135, %s137
    %p144 = scmp.eq.s32.totalorder %s20, 3
    %p145 = por %p143, %p144
    %p146 = scmp.ne.s32.totalorder %s137, %s138
    %p147 = scmp.eq.s32.totalorder %s20, 0
    %p148 = por %p146, %p147
    %p149 = scmp.ne.s32.totalorder %s137, %s138
    %p150 = scmp.eq.s32.totalorder %s21, 3
    %p151 = por %p149, %p150
    %p153 = scmp.ne.s32.totalorder %s138, %s152
    %p154 = scmp.eq.s32.totalorder %s21, 0
    %p155 = por %p153, %p154
    %s157 = sadd.s32 %s156, 1
    %p160 = scmp.eq.s32.totalorder %s15, 3
    %p161 = scmp.ne.s32.totalorder %s156, %s158
    %p162 = scmp.eq.s32.totalorder %s15, 0
    %p163 = por %p161, %p162
    %p164 = scmp.ne.s32.totalorder %s156, %s158
    %p165 = scmp.eq.s32.totalorder %s20, 3
    %p166 = por %p164, %p165
    %p167 = scmp.ne.s32.totalorder %s158, %s159
    %p168 = scmp.eq.s32.totalorder %s20, 0
    %p169 = por %p167, %p168
    %p170 = scmp.ne.s32.totalorder %s158, %s159
    %p171 = scmp.eq.s32.totalorder %s21, 3
    %p172 = por %p170, %p171
    %p174 = scmp.ne.s32.totalorder %s159, %s173
    %p175 = scmp.eq.s32.totalorder %s21, 0
    %p176 = por %p174, %p175
    %s178 = sadd.s32 %s177, 1
    %p181 = scmp.eq.s32.totalorder %s15, 3
    %p182 = scmp.ne.s32.totalorder %s177, %s179
    %p183 = scmp.eq.s32.totalorder %s15, 0
    %p184 = por %p182, %p183
    %p185 = scmp.ne.s32.totalorder %s177, %s179
    %p186 = scmp.eq.s32.totalorder %s20, 3
    %p187 = por %p185, %p186
    %p188 = scmp.ne.s32.totalorder %s179, %s180
    %p189 = scmp.eq.s32.totalorder %s20, 0
    %p190 = por %p188, %p189
    %p191 = scmp.ne.s32.totalorder %s179, %s180
    %p192 = scmp.eq.s32.totalorder %s21, 3
    %p193 = por %p191, %p192
    %p195 = scmp.ne.s32.totalorder %s180, %s194
    %p196 = scmp.eq.s32.totalorder %s21, 0
    %p197 = por %p195, %p196
    %s199 = sadd.s32 %s198, 1
    %p202 = scmp.eq.s32.totalorder %s15, 3
    %p203 = scmp.ne.s32.totalorder %s198, %s200
    %p204 = scmp.eq.s32.totalorder %s15, 0
    %p205 = por %p203, %p204
    %p206 = scmp.ne.s32.totalorder %s198, %s200
    %p207 = scmp.eq.s32.totalorder %s20, 3
    %p208 = por %p206, %p207
    %p209 = scmp.ne.s32.totalorder %s200, %s201
    %p210 = scmp.eq.s32.totalorder %s20, 0
    %p211 = por %p209, %p210
    %p212 = scmp.ne.s32.totalorder %s200, %s201
    %p213 = scmp.eq.s32.totalorder %s21, 3
    %p214 = por %p212, %p213
    %p216 = scmp.ne.s32.totalorder %s201, %s215
    %p217 = scmp.eq.s32.totalorder %s21, 0
    %p218 = por %p216, %p217
    %s220 = sadd.s32 %s219, 1
    %p223 = scmp.eq.s32.totalorder %s15, 3
    %p224 = scmp.ne.s32.totalorder %s219, %s221
    %p225 = scmp.eq.s32.totalorder %s15, 0
    %p226 = por %p224, %p225
    %p227 = scmp.ne.s32.totalorder %s219, %s221
    %p228 = scmp.eq.s32.totalorder %s20, 3
    %p229 = por %p227, %p228
    %p230 = scmp.ne.s32.totalorder %s221, %s222
    %p231 = scmp.eq.s32.totalorder %s20, 0
    %p232 = por %p230, %p231
    %p233 = scmp.ne.s32.totalorder %s221, %s222
    %p234 = scmp.eq.s32.totalorder %s21, 3
    %p235 = por %p233, %p234
    %p237 = scmp.ne.s32.totalorder %s222, %s236
    %p238 = scmp.eq.s32.totalorder %s21, 0
    %p239 = por %p237, %p238
    %s241 = sadd.s32 %s240, 1
    %p244 = scmp.eq.s32.totalorder %s15, 3
    %p245 = scmp.ne.s32.totalorder %s240, %s242
    %p246 = scmp.eq.s32.totalorder %s15, 0
    %p247 = por %p245, %p246
    %p248 = scmp.ne.s32.totalorder %s240, %s242
    %p249 = scmp.eq.s32.totalorder %s20, 3
    %p250 = por %p248, %p249
    %p251 = scmp.ne.s32.totalorder %s242, %s243
    %p252 = scmp.eq.s32.totalorder %s20, 0
    %p253 = por %p251, %p252
    %p254 = scmp.ne.s32.totalorder %s242, %s243
    %p255 = scmp.eq.s32.totalorder %s21, 3
    %p256 = por %p254, %p255
    %p258 = scmp.ne.s32.totalorder %s243, %s257
    %p259 = scmp.eq.s32.totalorder %s21, 0
    %p260 = por %p258, %p259
    %s261 = ssub.s32 %s22, %s34
    %s262 = ssub.s32 %s23, %s30
    %s263 = sor.u32 %s261, %s262
    %p264 = scmp.eq.s32.totalorder %s263, 0
    %s266 = sadd.s32 %s265, 1
    %s267 = scalar_select %p264, %s265, %s266
    %p270 = pneg %p264
    %p271 = scmp.eq.s32.totalorder %s15, 3
    %p272 = por %p270, %p271
    %p273 = scmp.ne.s32.totalorder %s265, %s268
    %p274 = scmp.eq.s32.totalorder %s15, 0
    %p275 = por %p273, %p274
    %p276 = scmp.ne.s32.totalorder %s265, %s268
    %p277 = scmp.eq.s32.totalorder %s20, 3
    %p278 = por %p276, %p277
    %p279 = scmp.ne.s32.totalorder %s268, %s269
    %p280 = scmp.eq.s32.totalorder %s20, 0
    %p281 = por %p279, %p280
    %p282 = scmp.ne.s32.totalorder %s268, %s269
    %p283 = scmp.eq.s32.totalorder %s21, 3
    %p284 = por %p282, %p283
    %p286 = scmp.ne.s32.totalorder %s269, %s285
    %p287 = scmp.eq.s32.totalorder %s21, 0
    %p288 = por %p286, %p287
    %p289 = scmp.le.s32.totalorder 1, %s15
    %p290 = scmp.lt.s32.totalorder %s15, 5
    %p291 = pnand %p289, %p290
    %p292 = pneg %p291
    // Predicated region
    $region9: #{tpu_custom_call.1} parent=5 // pred_check
      _
    $region10: #{tpu_custom_call.1} parent=5 // pred_check_branch
      %294 = sbr.rel (%p291) target = $region12
    $region11: #{tpu_custom_call.1} parent=5 // pred_region
      %s295 = ssub.s32 %s15, 1
      // Predicated region
      $region13: #{tpu_custom_call.1} parent=11 // pred_check
        %p296 = pneg %p148
      $region14: #{tpu_custom_call.1} parent=11 // pred_check_branch
        %298 = sbr.rel (%p296) target = $region16
      $region15: #{tpu_custom_call.1} parent=11 // pred_region
        _
      $region16: #{tpu_custom_call.1} parent=11 // pred_fallthru
        _
      // Predicated region
      $region17: #{tpu_custom_call.1} parent=11 // pred_check
        %p299 = pneg %p169
      $region18: #{tpu_custom_call.1} parent=11 // pred_check_branch
        %301 = sbr.rel (%p299) target = $region20
      $region19: #{tpu_custom_call.1} parent=11 // pred_region
        _
      $region20: #{tpu_custom_call.1} parent=11 // pred_fallthru
        _
      // Predicated region
      $region21: #{tpu_custom_call.1} parent=11 // pred_check
        %p302 = pneg %p190
      $region22: #{tpu_custom_call.1} parent=11 // pred_check_branch
        %304 = sbr.rel (%p302) target = $region24
      $region23: #{tpu_custom_call.1} parent=11 // pred_region
        _
      $region24: #{tpu_custom_call.1} parent=11 // pred_fallthru
        _
      // Predicated region
      $region25: #{tpu_custom_call.1} parent=11 // pred_check
        %p305 = pneg %p211
      $region26: #{tpu_custom_call.1} parent=11 // pred_check_branch
        %307 = sbr.rel (%p305) target = $region28
      $region27: #{tpu_custom_call.1} parent=11 // pred_region
        _
      $region28: #{tpu_custom_call.1} parent=11 // pred_fallthru
        _
      // Predicated region
      $region29: #{tpu_custom_call.1} parent=11 // pred_check
        %p308 = pneg %p232
      $region30: #{tpu_custom_call.1} parent=11 // pred_check_branch
        %310 = sbr.rel (%p308) target = $region32
      $region31: #{tpu_custom_call.1} parent=11 // pred_region
        _
      $region32: #{tpu_custom_call.1} parent=11 // pred_fallthru
        _
      // Predicated region
      $region33: #{tpu_custom_call.1} parent=11 // pred_check
        %p311 = pneg %p253
      $region34: #{tpu_custom_call.1} parent=11 // pred_check_branch
        %313 = sbr.rel (%p311) target = $region36
      $region35: #{tpu_custom_call.1} parent=11 // pred_region
        _
      $region36: #{tpu_custom_call.1} parent=11 // pred_fallthru
        _
    $region12: #{tpu_custom_call.1} parent=5 // pred_fallthru
      _
    %p314 = scmp.lt.s32.totalorder %s15, 4
    // Predicated region
    $region37: #{tpu_custom_call.1} parent=5 // pred_check
      %p315 = pneg %p314
    $region38: #{tpu_custom_call.1} parent=5 // pred_check_branch
      %317 = sbr.rel (%p315) target = $region40
    $region39: #{tpu_custom_call.1} parent=5 // pred_region
      // Predicated region
      $region41: #{tpu_custom_call.1} parent=39 // pred_check
        %p318 = pneg %p49
      $region42: #{tpu_custom_call.1} parent=39 // pred_check_branch
        %320 = sbr.rel (%p318) target = $region44
      $region43: #{tpu_custom_call.1} parent=39 // pred_region
        %s321 = smul.u32 8, %s23
        %p322 = scmp.lt.s32.totalorder %s22, 1
        %s323 = scalar_select %p322, %s22, 1
        %p324 = scmp.lt.s32.totalorder %s321, 15
        %s325 = scalar_select %p324, %s321, 15
        %s326 = smul.addr %s325, 2
        %s327 = smul.addr %s323, 32
        %s328 = sadd.s32 %s326, %s327
        %s329 = smul.addr %s328, 8
        %s330 = scalar_lea.vmem %s0, %s329
        %s331 = smul.u32 8, %s23
      $region44: #{tpu_custom_call.1} parent=39 // pred_fallthru
        _
      // Predicated region
      $region45: #{tpu_custom_call.1} parent=39 // pred_check
        %p332 = pneg %p85
      $region46: #{tpu_custom_call.1} parent=39 // pred_check_branch
        %334 = sbr.rel (%p332) target = $region48
      $region47: #{tpu_custom_call.1} parent=39 // pred_region
        %s335 = smul.u32 %s23, 4
        %s336 = ssub.s32 %s335, 1
        %p337 = scmp.gt.s32.totalorder %s336, 0
        %s338 = scalar_select %p337, %s336, 0
        %s339 = smul.u32 2, %s338
        %p340 = scmp.lt.s32.totalorder %s22, 1
        %s341 = scalar_select %p340, %s22, 1
        %p342 = scmp.lt.s32.totalorder %s339, 15
        %s343 = scalar_select %p342, %s339, 15
        %s344 = smul.addr %s343, 2
        %s345 = smul.addr %s341, 32
        %s346 = sadd.s32 %s344, %s345
        %s347 = smul.addr %s346, 8
        %s348 = scalar_lea.vmem %s1, %s347
        %s349 = smul.u32 %s23, 4
        %s350 = ssub.s32 %s349, 1
        %p351 = scmp.gt.s32.totalorder %s350, 0
        %s352 = scalar_select %p351, %s350, 0
        %s353 = smul.u32 2, %s352
      $region48: #{tpu_custom_call.1} parent=39 // pred_fallthru
        _
      // Predicated region
      $region49: #{tpu_custom_call.1} parent=39 // pred_check
        %p354 = pneg %p121
      $region50: #{tpu_custom_call.1} parent=39 // pred_check_branch
        %356 = sbr.rel (%p354) target = $region52
      $region51: #{tpu_custom_call.1} parent=39 // pred_region
        %s357 = smul.u32 %s23, 4
        %s358 = sadd.s32 %s357, 4
        %p359 = scmp.lt.s32.totalorder %s358, 7
        %s360 = scalar_select %p359, %s358, 7
        %s361 = smul.u32 2, %s360
        %p362 = scmp.lt.s32.totalorder %s22, 1
        %s363 = scalar_select %p362, %s22, 1
        %p364 = scmp.lt.s32.totalorder %s361, 15
        %s365 = scalar_select %p364, %s361, 15
        %s366 = smul.addr %s365, 2
        %s367 = smul.addr %s363, 32
        %s368 = sadd.s32 %s366, %s367
        %s369 = smul.addr %s368, 8
        %s370 = scalar_lea.vmem %s2, %s369
        %s371 = smul.u32 %s23, 4
        %s372 = sadd.s32 %s371, 4
        %p373 = scmp.lt.s32.totalorder %s372, 7
        %s374 = scalar_select %p373, %s372, 7
        %s375 = smul.u32 2, %s374
      $region52: #{tpu_custom_call.1} parent=39 // pred_fallthru
        _
    $region40: #{tpu_custom_call.1} parent=5 // pred_fallthru
      _
    %p376 = scmp.le.s32.totalorder 1, %s15
    %p377 = scmp.lt.s32.totalorder %s15, 5
    %p378 = pnand %p376, %p377
    %p379 = pneg %p378
    // Predicated region
    $region53: #{tpu_custom_call.1} parent=5 // pred_check
      _
    $region54: #{tpu_custom_call.1} parent=5 // pred_check_branch
      %381 = sbr.rel (%p378) target = $region56
    $region55: #{tpu_custom_call.1} parent=5 // pred_region
      %s382 = ssub.s32 %s15, 1
      %s383 = smul.u32 8, %s25
      %p384 = scmp.lt.s32.totalorder %s24, 1
      %s385 = scalar_select %p384, %s24, 1
      %p386 = scmp.lt.s32.totalorder %s383, 15
      %s387 = scalar_select %p386, %s383, 15
      %s388 = smul.addr %s387, 2
      %s389 = smul.addr %s385, 32
      %s390 = sadd.s32 %s388, %s389
      %s391 = smul.addr %s390, 8
      %s392 = scalar_lea.vmem %s0, %s391
      %p393 = pneg %p55
      %p394 = pneg %p52
      %s395 = smul.u32 %s25, 4
      %s396 = ssub.s32 %s395, 1
      %p397 = scmp.gt.s32.totalorder %s396, 0
      %s398 = scalar_select %p397, %s396, 0
      %s399 = smul.u32 2, %s398
      %p400 = scmp.lt.s32.totalorder %s24, 1
      %s401 = scalar_select %p400, %s24, 1
      %p402 = scmp.lt.s32.totalorder %s399, 15
      %s403 = scalar_select %p402, %s399, 15
      %s404 = smul.addr %s403, 2
      %s405 = smul.addr %s401, 32
      %s406 = sadd.s32 %s404, %s405
      %s407 = smul.addr %s406, 8
      %s408 = scalar_lea.vmem %s1, %s407
      %p409 = pneg %p91
      %p410 = pneg %p88
      %s411 = smul.u32 %s25, 4
      %s412 = sadd.s32 %s411, 4
      %p413 = scmp.lt.s32.totalorder %s412, 7
      %s414 = scalar_select %p413, %s412, 7
      %s415 = smul.u32 2, %s414
      %p416 = scmp.lt.s32.totalorder %s24, 1
      %s417 = scalar_select %p416, %s24, 1
      %p418 = scmp.lt.s32.totalorder %s415, 15
      %s419 = scalar_select %p418, %s415, 15
      %s420 = smul.addr %s419, 2
      %s421 = smul.addr %s417, 32
      %s422 = sadd.s32 %s420, %s421
      %s423 = smul.addr %s422, 8
      %s424 = scalar_lea.vmem %s2, %s423
      %p425 = pneg %p127
      %p426 = pneg %p124
      %p427 = pneg %p148
      %p428 = pneg %p145
      %p429 = pneg %p169
      %p430 = pneg %p166
      %p431 = pneg %p190
      %p432 = pneg %p187
      %p433 = pneg %p211
      %p434 = pneg %p208
      %p435 = pneg %p232
      %p436 = pneg %p229
      %p437 = pneg %p253
      %p438 = pneg %p250
      %p439 = pneg %p281
      %p440 = pneg %p278
      %p441 = scmp.lt.s32.totalorder %s24, 1
      %s442 = scalar_select %p441, %s24, 1
      %p443 = scmp.lt.s32.totalorder %s25, 1
      %s444 = scalar_select %p443, %s25, 1
      %s445 = smul.addr %s442, 2
      %s446 = sadd.s32 %s444, %s445
      %s447 = smul.addr %s446, 8
      %s448 = scalar_lea.vmem %s9, %s447
      %s449 = smul.u32 8, %s25
      %p450 = scmp.lt.s32.totalorder %s24, 1
      %s451 = scalar_select %p450, %s24, 1
      %p452 = scmp.lt.s32.totalorder %s449, 15
      %s453 = scalar_select %p452, %s449, 15
      %s454 = smul.addr %s453, 2
      %s455 = smul.addr %s451, 32
      %s456 = sadd.s32 %s454, %s455
      %s457 = smul.addr %s456, 8
      %s458 = scalar_lea.vmem %s0, %s457
      %s459 = smul.u32 8, %s25
      %s460 = smul.u32 %s25, 4
      %s461 = ssub.s32 %s460, 1
      %p462 = scmp.gt.s32.totalorder %s461, 0
      %s463 = scalar_select %p462, %s461, 0
      %s464 = smul.u32 2, %s463
      %p465 = scmp.lt.s32.totalorder %s24, 1
      %s466 = scalar_select %p465, %s24, 1
      %p467 = scmp.lt.s32.totalorder %s464, 15
      %s468 = scalar_select %p467, %s464, 15
      %s469 = smul.addr %s468, 2
      %s470 = smul.addr %s466, 32
      %s471 = sadd.s32 %s469, %s470
      %s472 = smul.addr %s471, 8
      %s473 = scalar_lea.vmem %s1, %s472
      %s474 = smul.u32 %s25, 4
      %s475 = ssub.s32 %s474, 1
      %p476 = scmp.gt.s32.totalorder %s475, 0
      %s477 = scalar_select %p476, %s475, 0
      %s478 = smul.u32 2, %s477
      %s479 = smul.u32 %s25, 4
      %s480 = sadd.s32 %s479, 4
      %p481 = scmp.lt.s32.totalorder %s480, 7
      %s482 = scalar_select %p481, %s480, 7
      %s483 = smul.u32 2, %s482
      %p484 = scmp.lt.s32.totalorder %s24, 1
      %s485 = scalar_select %p484, %s24, 1
      %p486 = scmp.lt.s32.totalorder %s483, 15
      %s487 = scalar_select %p486, %s483, 15
      %s488 = smul.addr %s487, 2
      %s489 = smul.addr %s485, 32
      %s490 = sadd.s32 %s488, %s489
      %s491 = smul.addr %s490, 8
      %s492 = scalar_lea.vmem %s2, %s491
      %s493 = smul.u32 %s25, 4
      %s494 = sadd.s32 %s493, 4
      %p495 = scmp.lt.s32.totalorder %s494, 7
      %s496 = scalar_select %p495, %s494, 7
      %s497 = smul.u32 2, %s496
      %p498 = scmp.lt.s32.totalorder %s24, 1
      %s499 = scalar_select %p498, %s24, 1
      %p500 = scmp.lt.s32.totalorder %s25, 1
      %s501 = scalar_select %p500, %s25, 1
      %s502 = smul.addr %s499, 2
      %s503 = sadd.s32 %s501, %s502
      %s504 = smul.addr %s503, 8
      %s505 = scalar_lea.vmem %s9, %s504
      %vm506 = vcmask 58368
      %507 = vst.msk [vmem:[#allocation2] sm:$0x3] %vm506, 0.0
      %508 = vst.msk [vmem:[#allocation2 + $0x18] sm:$0x3] %vm506, 0.0
      %509 = vst.msk [vmem:[#allocation2 + $0x30] sm:$0x3] %vm506, 0.0
      %510 = vst.msk [vmem:[#allocation2 + $0x48] sm:$0x3] %vm506, 0.0
      %511 = vst.msk [vmem:[#allocation2 + $0x60] sm:$0x3] %vm506, 0.0
      %512 = vst.msk [vmem:[#allocation2 + $0x78] sm:$0x3] %vm506, 0.0
      %513 = vst.msk [vmem:[#allocation2 + $0x90] sm:$0x3] %vm506, 0.0
      %514 = vst.msk [vmem:[#allocation2 + $0xa8] sm:$0x3] %vm506, 0.0
      %515 = vst.msk [vmem:[#allocation2 + $0xc0] sm:$0x3] %vm506, 0.0
      %516 = vst.msk [vmem:[#allocation2 + $0xd8] sm:$0x3] %vm506, 0.0
      %517 = vst.msk [vmem:[#allocation2 + $0xf0] sm:$0x3] %vm506, 0.0
      %518 = vst.msk [vmem:[#allocation2 + $0x108] sm:$0x3] %vm506, 0.0
      %519 = vst.msk [vmem:[#allocation2 + $0x12] sm:$0x3] %vm506, 0.0
      %520 = vst.msk [vmem:[#allocation2 + $0x2a] sm:$0x3] %vm506, 0.0
      %521 = vst.msk [vmem:[#allocation2 + $0x42] sm:$0x3] %vm506, 0.0
      %522 = vst.msk [vmem:[#allocation2 + $0x5a] sm:$0x3] %vm506, 0.0
      %523 = vst.msk [vmem:[#allocation2 + $0x72] sm:$0x3] %vm506, 0.0
      %524 = vst.msk [vmem:[#allocation2 + $0x8a] sm:$0x3] %vm506, 0.0
      %525 = vst.msk [vmem:[#allocation2 + $0xa2] sm:$0x3] %vm506, 0.0
      %526 = vst.msk [vmem:[#allocation2 + $0xba] sm:$0x3] %vm506, 0.0
      %527 = vst.msk [vmem:[#allocation2 + $0xd2] sm:$0x3] %vm506, 0.0
      %528 = vst.msk [vmem:[#allocation2 + $0xea] sm:$0x3] %vm506, 0.0
      %529 = vst.msk [vmem:[#allocation2 + $0x102] sm:$0x3] %vm506, 0.0
      %530 = vst.msk [vmem:[#allocation2 + $0x11a] sm:$0x3] %vm506, 0.0
      %v531 = vld [vmem:[%s458] sm:$0xff]
      %v532 = vld [vmem:[%s458 + $0x8] sm:$0xff]
      %v533 = vld [vmem:[%s458 + $0x10] sm:$0xff]
      %v534 = vld [vmem:[%s458 + $0x18] sm:$0xff]
      %v535 = vld [vmem:[%s458 + $0x20] sm:$0xff]
      %v536 = vld [vmem:[%s458 + $0x28] sm:$0xff]
      %v537 = vld [vmem:[%s458 + $0x30] sm:$0xff]
      %v538 = vld [vmem:[%s458 + $0x38] sm:$0xff]
      %v539 = vld [vmem:[%s458 + $0x40] sm:$0xff]
      %v540 = vld [vmem:[%s458 + $0x48] sm:$0xff]
      %v541 = vld [vmem:[%s458 + $0x50] sm:$0xff]
      %v542 = vld [vmem:[%s458 + $0x58] sm:$0xff]
      %v543 = vld [vmem:[%s458 + $0x60] sm:$0xff]
      %v544 = vld [vmem:[%s458 + $0x68] sm:$0xff]
      %v545 = vld [vmem:[%s458 + $0x70] sm:$0xff]
      %v546 = vld [vmem:[%s458 + $0x78] sm:$0xff]
      %s547 = scalar_lea.vmem [#allocation2], 48
      %vm548 = vcmask 64512
      %549 = vst.msk [vmem:[%s547 + $0x2] sm:$0xff] %vm548, %v531
      %550 = vst.msk [vmem:[%s547 + $0xa] sm:$0xff] %vm548, %v532
      %551 = vst.msk [vmem:[%s547 + $0x1a] sm:$0xff] %vm548, %v533
      %552 = vst.msk [vmem:[%s547 + $0x22] sm:$0xff] %vm548, %v534
      %553 = vst.msk [vmem:[%s547 + $0x32] sm:$0xff] %vm548, %v535
      %554 = vst.msk [vmem:[%s547 + $0x3a] sm:$0xff] %vm548, %v536
      %555 = vst.msk [vmem:[%s547 + $0x4a] sm:$0xff] %vm548, %v537
      %556 = vst.msk [vmem:[%s547 + $0x52] sm:$0xff] %vm548, %v538
      %557 = vst.msk [vmem:[%s547 + $0x62] sm:$0xff] %vm548, %v539
      %558 = vst.msk [vmem:[%s547 + $0x6a] sm:$0xff] %vm548, %v540
      %559 = vst.msk [vmem:[%s547 + $0x7a] sm:$0xff] %vm548, %v541
      %560 = vst.msk [vmem:[%s547 + $0x82] sm:$0xff] %vm548, %v542
      %561 = vst.msk [vmem:[%s547 + $0x92] sm:$0xff] %vm548, %v543
      %562 = vst.msk [vmem:[%s547 + $0x9a] sm:$0xff] %vm548, %v544
      %563 = vst.msk [vmem:[%s547 + $0xaa] sm:$0xff] %vm548, %v545
      %564 = vst.msk [vmem:[%s547 + $0xb2] sm:$0xff] %vm548, %v546
      %p565 = scmp.eq.s32.totalorder %s25, 0
      // Predicated region
      $region57: #{tpu_custom_call.1} parent=55 // pred_check
        %p566 = pneg %p565
      $region58: #{tpu_custom_call.1} parent=55 // pred_check_branch
        %568 = sbr.rel (%p566) target = $region60
      $region59: #{tpu_custom_call.1} parent=55 // pred_region
        %569 = vst.msk [vmem:[#allocation2 + $0x2] sm:$0xff] %vm548, 0.0
        %570 = vst.msk [vmem:[#allocation2 + $0xa] sm:$0xff] %vm548, 0.0
        %571 = vst.msk [vmem:[#allocation2 + $0x1a] sm:$0xff] %vm548, 0.0
        %572 = vst.msk [vmem:[#allocation2 + $0x22] sm:$0xff] %vm548, 0.0
      $region60: #{tpu_custom_call.1} parent=55 // pred_fallthru
        _
      %p573 = scmp.gt.s32.totalorder %s25, 0
      // Predicated region
      $region61: #{tpu_custom_call.1} parent=55 // pred_check
        %p574 = pneg %p573
      $region62: #{tpu_custom_call.1} parent=55 // pred_check_branch
        %576 = sbr.rel (%p574) target = $region64
      $region63: #{tpu_custom_call.1} parent=55 // pred_region
        %v577 = vld [vmem:[%s473] sm:$0xff]
        %v578 = vld [vmem:[%s473 + $0x8] sm:$0xff]
        %v579 = vld [vmem:[%s473 + $0x10] sm:$0xff]
        %v580 = vld [vmem:[%s473 + $0x18] sm:$0xff]
        %581 = vst.msk [vmem:[#allocation2 + $0x2] sm:$0xff] %vm548, %v577
        %582 = vst.msk [vmem:[#allocation2 + $0xa] sm:$0xff] %vm548, %v578
        %583 = vst.msk [vmem:[#allocation2 + $0x1a] sm:$0xff] %vm548, %v579
        %584 = vst.msk [vmem:[#allocation2 + $0x22] sm:$0xff] %vm548, %v580
      $region64: #{tpu_custom_call.1} parent=55 // pred_fallthru
        _
      %p585 = scmp.eq.s32.totalorder %s25, 1
      // Predicated region
      $region65: #{tpu_custom_call.1} parent=55 // pred_check
        %p586 = pneg %p585
      $region66: #{tpu_custom_call.1} parent=55 // pred_check_branch
        %588 = sbr.rel (%p586) target = $region68
      $region67: #{tpu_custom_call.1} parent=55 // pred_region
        %s589 = scalar_lea.vmem [#allocation2], 240
        %590 = vst.msk [vmem:[%s589 + $0x2] sm:$0xff] %vm548, 0.0
        %591 = vst.msk [vmem:[%s589 + $0xa] sm:$0xff] %vm548, 0.0
        %592 = vst.msk [vmem:[%s589 + $0x1a] sm:$0xff] %vm548, 0.0
        %593 = vst.msk [vmem:[%s589 + $0x22] sm:$0xff] %vm548, 0.0
      $region68: #{tpu_custom_call.1} parent=55 // pred_fallthru
        _
      %p594 = scmp.lt.s32.totalorder %s25, 1
      // Predicated region
      $region69: #{tpu_custom_call.1} parent=55 // pred_check
        %p595 = pneg %p594
      $region70: #{tpu_custom_call.1} parent=55 // pred_check_branch
        %597 = sbr.rel (%p595) target = $region72
      $region71: #{tpu_custom_call.1} parent=55 // pred_region
        %v598 = vld [vmem:[%s492] sm:$0xff]
        %v599 = vld [vmem:[%s492 + $0x8] sm:$0xff]
        %v600 = vld [vmem:[%s492 + $0x10] sm:$0xff]
        %v601 = vld [vmem:[%s492 + $0x18] sm:$0xff]
        %s602 = scalar_lea.vmem [#allocation2], 240
        %603 = vst.msk [vmem:[%s602 + $0x2] sm:$0xff] %vm548, %v598
        %604 = vst.msk [vmem:[%s602 + $0xa] sm:$0xff] %vm548, %v599
        %605 = vst.msk [vmem:[%s602 + $0x1a] sm:$0xff] %vm548, %v600
        %606 = vst.msk [vmem:[%s602 + $0x22] sm:$0xff] %vm548, %v601
      $region72: #{tpu_custom_call.1} parent=55 // pred_fallthru
        _
      %v607 = vld [vmem:[#allocation2] sm:$0xff]
      %v608 = vld [vmem:[#allocation2 + $0x8] sm:$0xff]
      %v609 = vld [vmem:[#allocation2 + $0x18] sm:$0xff]
      %v610 = vld [vmem:[#allocation2 + $0x20] sm:$0xff]
      %v611 = vld [vmem:[#allocation2 + $0x30] sm:$0xff]
      %v612 = vld [vmem:[#allocation2 + $0x38] sm:$0xff]
      %v613 = vld [vmem:[#allocation2 + $0x48] sm:$0xff]
      %v614 = vld [vmem:[#allocation2 + $0x50] sm:$0xff]
      %v615 = vld [vmem:[#allocation2 + $0x60] sm:$0xff]
      %v616 = vld [vmem:[#allocation2 + $0x68] sm:$0xff]
      %v617 = vld [vmem:[#allocation2 + $0x78] sm:$0xff]
      %v618 = vld [vmem:[#allocation2 + $0x80] sm:$0xff]
      %v619 = vld [vmem:[#allocation2 + $0x90] sm:$0xff]
      %v620 = vld [vmem:[#allocation2 + $0x98] sm:$0xff]
      %v621 = vld [vmem:[#allocation2 + $0xa8] sm:$0xff]
      %v622 = vld [vmem:[#allocation2 + $0xb0] sm:$0xff]
      %v623 = vld [vmem:[#allocation2 + $0xc0] sm:$0xff]
      %v624 = vld [vmem:[#allocation2 + $0xc8] sm:$0xff]
      %v625 = vld [vmem:[#allocation2 + $0xd8] sm:$0xff]
      %v626 = vld [vmem:[#allocation2 + $0xe0] sm:$0xff]
      %v627 = vld [vmem:[#allocation2 + $0xf0] sm:$0xff]
      %v628 = vld [vmem:[#allocation2 + $0xf8] sm:$0xff]
      %v629 = vld [vmem:[#allocation2 + $0x108] sm:$0xff]
      %v630 = vld [vmem:[#allocation2 + $0x110] sm:$0xff]
      %v631 = vld [vmem:[#allocation2 + $0x1] sm:$0xff]
      %v632 = vld [vmem:[#allocation2 + $0x9] sm:$0xff]
      %v633 = vld [vmem:[#allocation2 + $0x19] sm:$0xff]
      %v634 = vld [vmem:[#allocation2 + $0x21] sm:$0xff]
      %v635 = vld [vmem:[#allocation2 + $0x31] sm:$0xff]
      %v636 = vld [vmem:[#allocation2 + $0x39] sm:$0xff]
      %v637 = vld [vmem:[#allocation2 + $0x49] sm:$0xff]
      %v638 = vld [vmem:[#allocation2 + $0x51] sm:$0xff]
      %v639 = vld [vmem:[#allocation2 + $0x61] sm:$0xff]
      %v640 = vld [vmem:[#allocation2 + $0x69] sm:$0xff]
      %v641 = vld [vmem:[#allocation2 + $0x79] sm:$0xff]
      %v642 = vld [vmem:[#allocation2 + $0x81] sm:$0xff]
      %v643 = vld [vmem:[#allocation2 + $0x91] sm:$0xff]
      %v644 = vld [vmem:[#allocation2 + $0x99] sm:$0xff]
      %v645 = vld [vmem:[#allocation2 + $0xa9] sm:$0xff]
      %v646 = vld [vmem:[#allocation2 + $0xb1] sm:$0xff]
      %v647 = vld [vmem:[#allocation2 + $0xc1] sm:$0xff]
      %v648 = vld [vmem:[#allocation2 + $0xc9] sm:$0xff]
      %v649 = vld [vmem:[#allocation2 + $0xd9] sm:$0xff]
      %v650 = vld [vmem:[#allocation2 + $0xe1] sm:$0xff]
      %v651 = vld [vmem:[#allocation2 + $0xf1] sm:$0xff]
      %v652 = vld [vmem:[#allocation2 + $0xf9] sm:$0xff]
      %v653 = vld [vmem:[#allocation2 + $0x109] sm:$0xff]
      %v654 = vld [vmem:[#allocation2 + $0x111] sm:$0xff]
      %v655 = vld [vmem:[#allocation2 + $0x2] sm:$0xff]
      %v656 = vld [vmem:[#allocation2 + $0xa] sm:$0xff]
      %v657 = vld [vmem:[#allocation2 + $0x1a] sm:$0xff]
      %v658 = vld [vmem:[#allocation2 + $0x22] sm:$0xff]
      %v659 = vld [vmem:[#allocation2 + $0x32] sm:$0xff]
      %v660 = vld [vmem:[#allocation2 + $0x3a] sm:$0xff]
      %v661 = vld [vmem:[#allocation2 + $0x4a] sm:$0xff]
      %v662 = vld [vmem:[#allocation2 + $0x52] sm:$0xff]
      %v663 = vld [vmem:[#allocation2 + $0x62] sm:$0xff]
      %v664 = vld [vmem:[#allocation2 + $0x6a] sm:$0xff]
      %v665 = vld [vmem:[#allocation2 + $0x7a] sm:$0xff]
      %v666 = vld [vmem:[#allocation2 + $0x82] sm:$0xff]
      %v667 = vld [vmem:[#allocation2 + $0x92] sm:$0xff]
      %v668 = vld [vmem:[#allocation2 + $0x9a] sm:$0xff]
      %v669 = vld [vmem:[#allocation2 + $0xaa] sm:$0xff]
      %v670 = vld [vmem:[#allocation2 + $0xb2] sm:$0xff]
      %v671 = vld [vmem:[#allocation2 + $0xc2] sm:$0xff]
      %v672 = vld [vmem:[#allocation2 + $0xca] sm:$0xff]
      %v673 = vld [vmem:[#allocation2 + $0xda] sm:$0xff]
      %v674 = vld [vmem:[#allocation2 + $0xe2] sm:$0xff]
      %v675 = vld [vmem:[#allocation2 + $0xf2] sm:$0xff]
      %v676 = vld [vmem:[#allocation2 + $0xfa] sm:$0xff]
      %v677 = vld [vmem:[#allocation2 + $0x10a] sm:$0xff]
      %v678 = vld [vmem:[#allocation2 + $0x112] sm:$0xff]
      %v679 = vld [vmem:[#allocation2 + $0x3] sm:$0xff]
      %v680 = vld [vmem:[#allocation2 + $0xb] sm:$0xff]
      %v681 = vld [vmem:[#allocation2 + $0x1b] sm:$0xff]
      %v682 = vld [vmem:[#allocation2 + $0x23] sm:$0xff]
      %v683 = vld [vmem:[#allocation2 + $0x33] sm:$0xff]
      %v684 = vld [vmem:[#allocation2 + $0x3b] sm:$0xff]
      %v685 = vld [vmem:[#allocation2 + $0x4b] sm:$0xff]
      %v686 = vld [vmem:[#allocation2 + $0x53] sm:$0xff]
      %v687 = vld [vmem:[#allocation2 + $0x63] sm:$0xff]
      %v688 = vld [vmem:[#allocation2 + $0x6b] sm:$0xff]
      %v689 = vld [vmem:[#allocation2 + $0x7b] sm:$0xff]
      %v690 = vld [vmem:[#allocation2 + $0x83] sm:$0xff]
      %v691 = vld [vmem:[#allocation2 + $0x93] sm:$0xff]
      %v692 = vld [vmem:[#allocation2 + $0x9b] sm:$0xff]
      %v693 = vld [vmem:[#allocation2 + $0xab] sm:$0xff]
      %v694 = vld [vmem:[#allocation2 + $0xb3] sm:$0xff]
      %v695 = vld [vmem:[#allocation2 + $0xc3] sm:$0xff]
      %v696 = vld [vmem:[#allocation2 + $0xcb] sm:$0xff]
      %v697 = vld [vmem:[#allocation2 + $0xdb] sm:$0xff]
      %v698 = vld [vmem:[#allocation2 + $0xe3] sm:$0xff]
      %v699 = vld [vmem:[#allocation2 + $0xf3] sm:$0xff]
      %v700 = vld [vmem:[#allocation2 + $0xfb] sm:$0xff]
      %v701 = vld [vmem:[#allocation2 + $0x10b] sm:$0xff]
      %v702 = vld [vmem:[#allocation2 + $0x113] sm:$0xff]
      %v703 = vld [vmem:[#allocation2 + $0x4] sm:$0xff]
      %v704 = vld [vmem:[#allocation2 + $0xc] sm:$0xff]
      %v705 = vld [vmem:[#allocation2 + $0x1c] sm:$0xff]
      %v706 = vld [vmem:[#allocation2 + $0x24] sm:$0xff]
      %v707 = vld [vmem:[#allocation2 + $0x34] sm:$0xff]
      %v708 = vld [vmem:[#allocation2 + $0x3c] sm:$0xff]
      %v709 = vld [vmem:[#allocation2 + $0x4c] sm:$0xff]
      %v710 = vld [vmem:[#allocation2 + $0x54] sm:$0xff]
      %v711 = vld [vmem:[#allocation2 + $0x64] sm:$0xff]
      %v712 = vld [vmem:[#allocation2 + $0x6c] sm:$0xff]
      %v713 = vld [vmem:[#allocation2 + $0x7c] sm:$0xff]
      %v714 = vld [vmem:[#allocation2 + $0x84] sm:$0xff]
      %v715 = vld [vmem:[#allocation2 + $0x94] sm:$0xff]
      %v716 = vld [vmem:[#allocation2 + $0x9c] sm:$0xff]
      %v717 = vld [vmem:[#allocation2 + $0xac] sm:$0xff]
      %v718 = vld [vmem:[#allocation2 + $0xb4] sm:$0xff]
      %v719 = vld [vmem:[#allocation2 + $0xc4] sm:$0xff]
      %v720 = vld [vmem:[#allocation2 + $0xcc] sm:$0xff]
      %v721 = vld [vmem:[#allocation2 + $0xdc] sm:$0xff]
      %v722 = vld [vmem:[#allocation2 + $0xe4] sm:$0xff]
      %v723 = vld [vmem:[#allocation2 + $0xf4] sm:$0xff]
      %v724 = vld [vmem:[#allocation2 + $0xfc] sm:$0xff]
      %v725 = vld [vmem:[#allocation2 + $0x10c] sm:$0xff]
      %v726 = vld [vmem:[#allocation2 + $0x114] sm:$0xff]
      %v727 = vld [vmem:[%s3] sm:$0x1f]
      %v728 = vld [vmem:[%s3 + $0x8] sm:$0x1f]
      %v729 = vld [vmem:[%s3 + $0x10] sm:$0x1f]
      %v730 = vld [vmem:[%s3 + $0x18] sm:$0x1f]
      %v731 = vld [vmem:[%s3 + $0x20] sm:$0x1f]
      %v732 = vlaneseq
      %v733 = vshrl.u32 %v732, 7
      %v734 = vsub.s32 0, %v733
      %v735 = vrot.slane %v727, %v734
      %v736 = vmul.f32 %v607, %v735
      %v737 = vmul.f32 %v608, %v735
      %v738 = vmul.f32 %v609, %v735
      %v739 = vmul.f32 %v610, %v735
      %v740 = vmul.f32 %v611, %v735
      %v741 = vmul.f32 %v612, %v735
      %v742 = vmul.f32 %v613, %v735
      %v743 = vmul.f32 %v614, %v735
      %v744 = vmul.f32 %v615, %v735
      %v745 = vmul.f32 %v616, %v735
      %v746 = vmul.f32 %v617, %v735
      %v747 = vmul.f32 %v618, %v735
      %v748 = vmul.f32 %v619, %v735
      %v749 = vmul.f32 %v620, %v735
      %v750 = vmul.f32 %v621, %v735
      %v751 = vmul.f32 %v622, %v735
      %v752 = vadd.f32 %v736, 0.0
      %v753 = vadd.f32 %v737, 0.0
      %v754 = vadd.f32 %v738, 0.0
      %v755 = vadd.f32 %v739, 0.0
      %v756 = vadd.f32 %v740, 0.0
      %v757 = vadd.f32 %v741, 0.0
      %v758 = vadd.f32 %v742, 0.0
      %v759 = vadd.f32 %v743, 0.0
      %v760 = vadd.f32 %v744, 0.0
      %v761 = vadd.f32 %v745, 0.0
      %v762 = vadd.f32 %v746, 0.0
      %v763 = vadd.f32 %v747, 0.0
      %v764 = vadd.f32 %v748, 0.0
      %v765 = vadd.f32 %v749, 0.0
      %v766 = vadd.f32 %v750, 0.0
      %v767 = vadd.f32 %v751, 0.0
      %v768 = vlaneseq
      %v769 = vshrl.u32 %v768, 7
      %v770 = vsub.s32 1, %v769
      %v771 = vrot.slane %v727, %v770
      %v772 = vmul.f32 %v631, %v771
      %v773 = vmul.f32 %v632, %v771
      %v774 = vmul.f32 %v633, %v771
      %v775 = vmul.f32 %v634, %v771
      %v776 = vmul.f32 %v635, %v771
      %v777 = vmul.f32 %v636, %v771
      %v778 = vmul.f32 %v637, %v771
      %v779 = vmul.f32 %v638, %v771
      %v780 = vmul.f32 %v639, %v771
      %v781 = vmul.f32 %v640, %v771
      %v782 = vmul.f32 %v641, %v771
      %v783 = vmul.f32 %v642, %v771
      %v784 = vmul.f32 %v643, %v771
      %v785 = vmul.f32 %v644, %v771
      %v786 = vmul.f32 %v645, %v771
      %v787 = vmul.f32 %v646, %v771
      %v788 = vadd.f32 %v752, %v772
      %v789 = vadd.f32 %v753, %v773
      %v790 = vadd.f32 %v754, %v774
      %v791 = vadd.f32 %v755, %v775
      %v792 = vadd.f32 %v756, %v776
      %v793 = vadd.f32 %v757, %v777
      %v794 = vadd.f32 %v758, %v778
      %v795 = vadd.f32 %v759, %v779
      %v796 = vadd.f32 %v760, %v780
      %v797 = vadd.f32 %v761, %v781
      %v798 = vadd.f32 %v762, %v782
      %v799 = vadd.f32 %v763, %v783
      %v800 = vadd.f32 %v764, %v784
      %v801 = vadd.f32 %v765, %v785
      %v802 = vadd.f32 %v766, %v786
      %v803 = vadd.f32 %v767, %v787
      %v804 = vlaneseq
      %v805 = vshrl.u32 %v804, 7
      %v806 = vsub.s32 2, %v805
      %v807 = vrot.slane %v727, %v806
      %v808 = vmul.f32 %v655, %v807
      %v809 = vmul.f32 %v656, %v807
      %v810 = vmul.f32 %v657, %v807
      %v811 = vmul.f32 %v658, %v807
      %v812 = vmul.f32 %v659, %v807
      %v813 = vmul.f32 %v660, %v807
      %v814 = vmul.f32 %v661, %v807
      %v815 = vmul.f32 %v662, %v807
      %v816 = vmul.f32 %v663, %v807
      %v817 = vmul.f32 %v664, %v807
      %v818 = vmul.f32 %v665, %v807
      %v819 = vmul.f32 %v666, %v807
      %v820 = vmul.f32 %v667, %v807
      %v821 = vmul.f32 %v668, %v807
      %v822 = vmul.f32 %v669, %v807
      %v823 = vmul.f32 %v670, %v807
      %v824 = vadd.f32 %v788, %v808
      %v825 = vadd.f32 %v789, %v809
      %v826 = vadd.f32 %v790, %v810
      %v827 = vadd.f32 %v791, %v811
      %v828 = vadd.f32 %v792, %v812
      %v829 = vadd.f32 %v793, %v813
      %v830 = vadd.f32 %v794, %v814
      %v831 = vadd.f32 %v795, %v815
      %v832 = vadd.f32 %v796, %v816
      %v833 = vadd.f32 %v797, %v817
      %v834 = vadd.f32 %v798, %v818
      %v835 = vadd.f32 %v799, %v819
      %v836 = vadd.f32 %v800, %v820
      %v837 = vadd.f32 %v801, %v821
      %v838 = vadd.f32 %v802, %v822
      %v839 = vadd.f32 %v803, %v823
      %v840 = vlaneseq
      %v841 = vshrl.u32 %v840, 7
      %v842 = vsub.s32 3, %v841
      %v843 = vrot.slane %v727, %v842
      %v844 = vmul.f32 %v679, %v843
      %v845 = vmul.f32 %v680, %v843
      %v846 = vmul.f32 %v681, %v843
      %v847 = vmul.f32 %v682, %v843
      %v848 = vmul.f32 %v683, %v843
      %v849 = vmul.f32 %v684, %v843
      %v850 = vmul.f32 %v685, %v843
      %v851 = vmul.f32 %v686, %v843
      %v852 = vmul.f32 %v687, %v843
      %v853 = vmul.f32 %v688, %v843
      %v854 = vmul.f32 %v689, %v843
      %v855 = vmul.f32 %v690, %v843
      %v856 = vmul.f32 %v691, %v843
      %v857 = vmul.f32 %v692, %v843
      %v858 = vmul.f32 %v693, %v843
      %v859 = vmul.f32 %v694, %v843
      %v860 = vadd.f32 %v824, %v844
      %v861 = vadd.f32 %v825, %v845
      %v862 = vadd.f32 %v826, %v846
      %v863 = vadd.f32 %v827, %v847
      %v864 = vadd.f32 %v828, %v848
      %v865 = vadd.f32 %v829, %v849
      %v866 = vadd.f32 %v830, %v850
      %v867 = vadd.f32 %v831, %v851
      %v868 = vadd.f32 %v832, %v852
      %v869 = vadd.f32 %v833, %v853
      %v870 = vadd.f32 %v834, %v854
      %v871 = vadd.f32 %v835, %v855
      %v872 = vadd.f32 %v836, %v856
      %v873 = vadd.f32 %v837, %v857
      %v874 = vadd.f32 %v838, %v858
      %v875 = vadd.f32 %v839, %v859
      %v876 = vlaneseq
      %v877 = vshrl.u32 %v876, 7
      %v878 = vsub.s32 4, %v877
      %v879 = vrot.slane %v727, %v878
      %v880 = vmul.f32 %v703, %v879
      %v881 = vmul.f32 %v704, %v879
      %v882 = vmul.f32 %v705, %v879
      %v883 = vmul.f32 %v706, %v879
      %v884 = vmul.f32 %v707, %v879
      %v885 = vmul.f32 %v708, %v879
      %v886 = vmul.f32 %v709, %v879
      %v887 = vmul.f32 %v710, %v879
      %v888 = vmul.f32 %v711, %v879
      %v889 = vmul.f32 %v712, %v879
      %v890 = vmul.f32 %v713, %v879
      %v891 = vmul.f32 %v714, %v879
      %v892 = vmul.f32 %v715, %v879
      %v893 = vmul.f32 %v716, %v879
      %v894 = vmul.f32 %v717, %v879
      %v895 = vmul.f32 %v718, %v879
      %v896 = vadd.f32 %v860, %v880
      %v897 = vadd.f32 %v861, %v881
      %v898 = vadd.f32 %v862, %v882
      %v899 = vadd.f32 %v863, %v883
      %v900 = vadd.f32 %v864, %v884
      %v901 = vadd.f32 %v865, %v885
      %v902 = vadd.f32 %v866, %v886
      %v903 = vadd.f32 %v867, %v887
      %v904 = vadd.f32 %v868, %v888
      %v905 = vadd.f32 %v869, %v889
      %v906 = vadd.f32 %v870, %v890
      %v907 = vadd.f32 %v871, %v891
      %v908 = vadd.f32 %v872, %v892
      %v909 = vadd.f32 %v873, %v893
      %v910 = vadd.f32 %v874, %v894
      %v911 = vadd.f32 %v875, %v895
      %v912 = vlaneseq
      %v913 = vshrl.u32 %v912, 7
      %v914 = vsub.s32 0, %v913
      %v915 = vrot.slane %v728, %v914
      %v916 = vmul.f32 %v609, %v915
      %v917 = vmul.f32 %v610, %v915
      %v918 = vmul.f32 %v611, %v915
      %v919 = vmul.f32 %v612, %v915
      %v920 = vmul.f32 %v613, %v915
      %v921 = vmul.f32 %v614, %v915
      %v922 = vmul.f32 %v615, %v915
      %v923 = vmul.f32 %v616, %v915
      %v924 = vmul.f32 %v617, %v915
      %v925 = vmul.f32 %v618, %v915
      %v926 = vmul.f32 %v619, %v915
      %v927 = vmul.f32 %v620, %v915
      %v928 = vmul.f32 %v621, %v915
      %v929 = vmul.f32 %v622, %v915
      %v930 = vmul.f32 %v623, %v915
      %v931 = vmul.f32 %v624, %v915
      %v932 = vadd.f32 %v896, %v916
      %v933 = vadd.f32 %v897, %v917
      %v934 = vadd.f32 %v898, %v918
      %v935 = vadd.f32 %v899, %v919
      %v936 = vadd.f32 %v900, %v920
      %v937 = vadd.f32 %v901, %v921
      %v938 = vadd.f32 %v902, %v922
      %v939 = vadd.f32 %v903, %v923
      %v940 = vadd.f32 %v904, %v924
      %v941 = vadd.f32 %v905, %v925
      %v942 = vadd.f32 %v906, %v926
      %v943 = vadd.f32 %v907, %v927
      %v944 = vadd.f32 %v908, %v928
      %v945 = vadd.f32 %v909, %v929
      %v946 = vadd.f32 %v910, %v930
      %v947 = vadd.f32 %v911, %v931
      %v948 = vlaneseq
      %v949 = vshrl.u32 %v948, 7
      %v950 = vsub.s32 1, %v949
      %v951 = vrot.slane %v728, %v950
      %v952 = vmul.f32 %v633, %v951
      %v953 = vmul.f32 %v634, %v951
      %v954 = vmul.f32 %v635, %v951
      %v955 = vmul.f32 %v636, %v951
      %v956 = vmul.f32 %v637, %v951
      %v957 = vmul.f32 %v638, %v951
      %v958 = vmul.f32 %v639, %v951
      %v959 = vmul.f32 %v640, %v951
      %v960 = vmul.f32 %v641, %v951
      %v961 = vmul.f32 %v642, %v951
      %v962 = vmul.f32 %v643, %v951
      %v963 = vmul.f32 %v644, %v951
      %v964 = vmul.f32 %v645, %v951
      %v965 = vmul.f32 %v646, %v951
      %v966 = vmul.f32 %v647, %v951
      %v967 = vmul.f32 %v648, %v951
      %v968 = vadd.f32 %v932, %v952
      %v969 = vadd.f32 %v933, %v953
      %v970 = vadd.f32 %v934, %v954
      %v971 = vadd.f32 %v935, %v955
      %v972 = vadd.f32 %v936, %v956
      %v973 = vadd.f32 %v937, %v957
      %v974 = vadd.f32 %v938, %v958
      %v975 = vadd.f32 %v939, %v959
      %v976 = vadd.f32 %v940, %v960
      %v977 = vadd.f32 %v941, %v961
      %v978 = vadd.f32 %v942, %v962
      %v979 = vadd.f32 %v943, %v963
      %v980 = vadd.f32 %v944, %v964
      %v981 = vadd.f32 %v945, %v965
      %v982 = vadd.f32 %v946, %v966
      %v983 = vadd.f32 %v947, %v967
      %v984 = vlaneseq
      %v985 = vshrl.u32 %v984, 7
      %v986 = vsub.s32 2, %v985
      %v987 = vrot.slane %v728, %v986
      %v988 = vmul.f32 %v657, %v987
      %v989 = vmul.f32 %v658, %v987
      %v990 = vmul.f32 %v659, %v987
      %v991 = vmul.f32 %v660, %v987
      %v992 = vmul.f32 %v661, %v987
      %v993 = vmul.f32 %v662, %v987
      %v994 = vmul.f32 %v663, %v987
      %v995 = vmul.f32 %v664, %v987
      %v996 = vmul.f32 %v665, %v987
      %v997 = vmul.f32 %v666, %v987
      %v998 = vmul.f32 %v667, %v987
      %v999 = vmul.f32 %v668, %v987
      %v1000 = vmul.f32 %v669, %v987
      %v1001 = vmul.f32 %v670, %v987
      %v1002 = vmul.f32 %v671, %v987
      %v1003 = vmul.f32 %v672, %v987
      %v1004 = vadd.f32 %v968, %v988
      %v1005 = vadd.f32 %v969, %v989
      %v1006 = vadd.f32 %v970, %v990
      %v1007 = vadd.f32 %v971, %v991
      %v1008 = vadd.f32 %v972, %v992
      %v1009 = vadd.f32 %v973, %v993
      %v1010 = vadd.f32 %v974, %v994
      %v1011 = vadd.f32 %v975, %v995
      %v1012 = vadd.f32 %v976, %v996
      %v1013 = vadd.f32 %v977, %v997
      %v1014 = vadd.f32 %v978, %v998
      %v1015 = vadd.f32 %v979, %v999
      %v1016 = vadd.f32 %v980, %v1000
      %v1017 = vadd.f32 %v981, %v1001
      %v1018 = vadd.f32 %v982, %v1002
      %v1019 = vadd.f32 %v983, %v1003
      %v1020 = vlaneseq
      %v1021 = vshrl.u32 %v1020, 7
      %v1022 = vsub.s32 3, %v1021
      %v1023 = vrot.slane %v728, %v1022
      %v1024 = vmul.f32 %v681, %v1023
      %v1025 = vmul.f32 %v682, %v1023
      %v1026 = vmul.f32 %v683, %v1023
      %v1027 = vmul.f32 %v684, %v1023
      %v1028 = vmul.f32 %v685, %v1023
      %v1029 = vmul.f32 %v686, %v1023
      %v1030 = vmul.f32 %v687, %v1023
      %v1031 = vmul.f32 %v688, %v1023
      %v1032 = vmul.f32 %v689, %v1023
      %v1033 = vmul.f32 %v690, %v1023
      %v1034 = vmul.f32 %v691, %v1023
      %v1035 = vmul.f32 %v692, %v1023
      %v1036 = vmul.f32 %v693, %v1023
      %v1037 = vmul.f32 %v694, %v1023
      %v1038 = vmul.f32 %v695, %v1023
      %v1039 = vmul.f32 %v696, %v1023
      %v1040 = vadd.f32 %v1004, %v1024
      %v1041 = vadd.f32 %v1005, %v1025
      %v1042 = vadd.f32 %v1006, %v1026
      %v1043 = vadd.f32 %v1007, %v1027
      %v1044 = vadd.f32 %v1008, %v1028
      %v1045 = vadd.f32 %v1009, %v1029
      %v1046 = vadd.f32 %v1010, %v1030
      %v1047 = vadd.f32 %v1011, %v1031
      %v1048 = vadd.f32 %v1012, %v1032
      %v1049 = vadd.f32 %v1013, %v1033
      %v1050 = vadd.f32 %v1014, %v1034
      %v1051 = vadd.f32 %v1015, %v1035
      %v1052 = vadd.f32 %v1016, %v1036
      %v1053 = vadd.f32 %v1017, %v1037
      %v1054 = vadd.f32 %v1018, %v1038
      %v1055 = vadd.f32 %v1019, %v1039
      %v1056 = vlaneseq
      %v1057 = vshrl.u32 %v1056, 7
      %v1058 = vsub.s32 4, %v1057
      %v1059 = vrot.slane %v728, %v1058
      %v1060 = vmul.f32 %v705, %v1059
      %v1061 = vmul.f32 %v706, %v1059
      %v1062 = vmul.f32 %v707, %v1059
      %v1063 = vmul.f32 %v708, %v1059
      %v1064 = vmul.f32 %v709, %v1059
      %v1065 = vmul.f32 %v710, %v1059
      %v1066 = vmul.f32 %v711, %v1059
      %v1067 = vmul.f32 %v712, %v1059
      %v1068 = vmul.f32 %v713, %v1059
      %v1069 = vmul.f32 %v714, %v1059
      %v1070 = vmul.f32 %v715, %v1059
      %v1071 = vmul.f32 %v716, %v1059
      %v1072 = vmul.f32 %v717, %v1059
      %v1073 = vmul.f32 %v718, %v1059
      %v1074 = vmul.f32 %v719, %v1059
      %v1075 = vmul.f32 %v720, %v1059
      %v1076 = vadd.f32 %v1040, %v1060
      %v1077 = vadd.f32 %v1041, %v1061
      %v1078 = vadd.f32 %v1042, %v1062
      %v1079 = vadd.f32 %v1043, %v1063
      %v1080 = vadd.f32 %v1044, %v1064
      %v1081 = vadd.f32 %v1045, %v1065
      %v1082 = vadd.f32 %v1046, %v1066
      %v1083 = vadd.f32 %v1047, %v1067
      %v1084 = vadd.f32 %v1048, %v1068
      %v1085 = vadd.f32 %v1049, %v1069
      %v1086 = vadd.f32 %v1050, %v1070
      %v1087 = vadd.f32 %v1051, %v1071
      %v1088 = vadd.f32 %v1052, %v1072
      %v1089 = vadd.f32 %v1053, %v1073
      %v1090 = vadd.f32 %v1054, %v1074
      %v1091 = vadd.f32 %v1055, %v1075
      %v1092 = vlaneseq
      %v1093 = vshrl.u32 %v1092, 7
      %v1094 = vsub.s32 0, %v1093
      %v1095 = vrot.slane %v729, %v1094
      %v1096 = vmul.f32 %v611, %v1095
      %v1097 = vmul.f32 %v612, %v1095
      %v1098 = vmul.f32 %v613, %v1095
      %v1099 = vmul.f32 %v614, %v1095
      %v1100 = vmul.f32 %v615, %v1095
      %v1101 = vmul.f32 %v616, %v1095
      %v1102 = vmul.f32 %v617, %v1095
      %v1103 = vmul.f32 %v618, %v1095
      %v1104 = vmul.f32 %v619, %v1095
      %v1105 = vmul.f32 %v620, %v1095
      %v1106 = vmul.f32 %v621, %v1095
      %v1107 = vmul.f32 %v622, %v1095
      %v1108 = vmul.f32 %v623, %v1095
      %v1109 = vmul.f32 %v624, %v1095
      %v1110 = vmul.f32 %v625, %v1095
      %v1111 = vmul.f32 %v626, %v1095
      %v1112 = vadd.f32 %v1076, %v1096
      %v1113 = vadd.f32 %v1077, %v1097
      %v1114 = vadd.f32 %v1078, %v1098
      %v1115 = vadd.f32 %v1079, %v1099
      %v1116 = vadd.f32 %v1080, %v1100
      %v1117 = vadd.f32 %v1081, %v1101
      %v1118 = vadd.f32 %v1082, %v1102
      %v1119 = vadd.f32 %v1083, %v1103
      %v1120 = vadd.f32 %v1084, %v1104
      %v1121 = vadd.f32 %v1085, %v1105
      %v1122 = vadd.f32 %v1086, %v1106
      %v1123 = vadd.f32 %v1087, %v1107
      %v1124 = vadd.f32 %v1088, %v1108
      %v1125 = vadd.f32 %v1089, %v1109
      %v1126 = vadd.f32 %v1090, %v1110
      %v1127 = vadd.f32 %v1091, %v1111
      %v1128 = vlaneseq
      %v1129 = vshrl.u32 %v1128, 7
      %v1130 = vsub.s32 1, %v1129
      %v1131 = vrot.slane %v729, %v1130
      %v1132 = vmul.f32 %v635, %v1131
      %v1133 = vmul.f32 %v636, %v1131
      %v1134 = vmul.f32 %v637, %v1131
      %v1135 = vmul.f32 %v638, %v1131
      %v1136 = vmul.f32 %v639, %v1131
      %v1137 = vmul.f32 %v640, %v1131
      %v1138 = vmul.f32 %v641, %v1131
      %v1139 = vmul.f32 %v642, %v1131
      %v1140 = vmul.f32 %v643, %v1131
      %v1141 = vmul.f32 %v644, %v1131
      %v1142 = vmul.f32 %v645, %v1131
      %v1143 = vmul.f32 %v646, %v1131
      %v1144 = vmul.f32 %v647, %v1131
      %v1145 = vmul.f32 %v648, %v1131
      %v1146 = vmul.f32 %v649, %v1131
      %v1147 = vmul.f32 %v650, %v1131
      %v1148 = vadd.f32 %v1112, %v1132
      %v1149 = vadd.f32 %v1113, %v1133
      %v1150 = vadd.f32 %v1114, %v1134
      %v1151 = vadd.f32 %v1115, %v1135
      %v1152 = vadd.f32 %v1116, %v1136
      %v1153 = vadd.f32 %v1117, %v1137
      %v1154 = vadd.f32 %v1118, %v1138
      %v1155 = vadd.f32 %v1119, %v1139
      %v1156 = vadd.f32 %v1120, %v1140
      %v1157 = vadd.f32 %v1121, %v1141
      %v1158 = vadd.f32 %v1122, %v1142
      %v1159 = vadd.f32 %v1123, %v1143
      %v1160 = vadd.f32 %v1124, %v1144
      %v1161 = vadd.f32 %v1125, %v1145
      %v1162 = vadd.f32 %v1126, %v1146
      %v1163 = vadd.f32 %v1127, %v1147
      %v1164 = vlaneseq
      %v1165 = vshrl.u32 %v1164, 7
      %v1166 = vsub.s32 2, %v1165
      %v1167 = vrot.slane %v729, %v1166
      %v1168 = vmul.f32 %v659, %v1167
      %v1169 = vmul.f32 %v660, %v1167
      %v1170 = vmul.f32 %v661, %v1167
      %v1171 = vmul.f32 %v662, %v1167
      %v1172 = vmul.f32 %v663, %v1167
      %v1173 = vmul.f32 %v664, %v1167
      %v1174 = vmul.f32 %v665, %v1167
      %v1175 = vmul.f32 %v666, %v1167
      %v1176 = vmul.f32 %v667, %v1167
      %v1177 = vmul.f32 %v668, %v1167
      %v1178 = vmul.f32 %v669, %v1167
      %v1179 = vmul.f32 %v670, %v1167
      %v1180 = vmul.f32 %v671, %v1167
      %v1181 = vmul.f32 %v672, %v1167
      %v1182 = vmul.f32 %v673, %v1167
      %v1183 = vmul.f32 %v674, %v1167
      %v1184 = vadd.f32 %v1148, %v1168
      %v1185 = vadd.f32 %v1149, %v1169
      %v1186 = vadd.f32 %v1150, %v1170
      %v1187 = vadd.f32 %v1151, %v1171
      %v1188 = vadd.f32 %v1152, %v1172
      %v1189 = vadd.f32 %v1153, %v1173
      %v1190 = vadd.f32 %v1154, %v1174
      %v1191 = vadd.f32 %v1155, %v1175
      %v1192 = vadd.f32 %v1156, %v1176
      %v1193 = vadd.f32 %v1157, %v1177
      %v1194 = vadd.f32 %v1158, %v1178
      %v1195 = vadd.f32 %v1159, %v1179
      %v1196 = vadd.f32 %v1160, %v1180
      %v1197 = vadd.f32 %v1161, %v1181
      %v1198 = vadd.f32 %v1162, %v1182
      %v1199 = vadd.f32 %v1163, %v1183
      %v1200 = vlaneseq
      %v1201 = vshrl.u32 %v1200, 7
      %v1202 = vsub.s32 3, %v1201
      %v1203 = vrot.slane %v729, %v1202
      %v1204 = vmul.f32 %v683, %v1203
      %v1205 = vmul.f32 %v684, %v1203
      %v1206 = vmul.f32 %v685, %v1203
      %v1207 = vmul.f32 %v686, %v1203
      %v1208 = vmul.f32 %v687, %v1203
      %v1209 = vmul.f32 %v688, %v1203
      %v1210 = vmul.f32 %v689, %v1203
      %v1211 = vmul.f32 %v690, %v1203
      %v1212 = vmul.f32 %v691, %v1203
      %v1213 = vmul.f32 %v692, %v1203
      %v1214 = vmul.f32 %v693, %v1203
      %v1215 = vmul.f32 %v694, %v1203
      %v1216 = vmul.f32 %v695, %v1203
      %v1217 = vmul.f32 %v696, %v1203
      %v1218 = vmul.f32 %v697, %v1203
      %v1219 = vmul.f32 %v698, %v1203
      %v1220 = vadd.f32 %v1184, %v1204
      %v1221 = vadd.f32 %v1185, %v1205
      %v1222 = vadd.f32 %v1186, %v1206
      %v1223 = vadd.f32 %v1187, %v1207
      %v1224 = vadd.f32 %v1188, %v1208
      %v1225 = vadd.f32 %v1189, %v1209
      %v1226 = vadd.f32 %v1190, %v1210
      %v1227 = vadd.f32 %v1191, %v1211
      %v1228 = vadd.f32 %v1192, %v1212
      %v1229 = vadd.f32 %v1193, %v1213
      %v1230 = vadd.f32 %v1194, %v1214
      %v1231 = vadd.f32 %v1195, %v1215
      %v1232 = vadd.f32 %v1196, %v1216
      %v1233 = vadd.f32 %v1197, %v1217
      %v1234 = vadd.f32 %v1198, %v1218
      %v1235 = vadd.f32 %v1199, %v1219
      %v1236 = vlaneseq
      %v1237 = vshrl.u32 %v1236, 7
      %v1238 = vsub.s32 4, %v1237
      %v1239 = vrot.slane %v729, %v1238
      %v1240 = vmul.f32 %v707, %v1239
      %v1241 = vmul.f32 %v708, %v1239
      %v1242 = vmul.f32 %v709, %v1239
      %v1243 = vmul.f32 %v710, %v1239
      %v1244 = vmul.f32 %v711, %v1239
      %v1245 = vmul.f32 %v712, %v1239
      %v1246 = vmul.f32 %v713, %v1239
      %v1247 = vmul.f32 %v714, %v1239
      %v1248 = vmul.f32 %v715, %v1239
      %v1249 = vmul.f32 %v716, %v1239
      %v1250 = vmul.f32 %v717, %v1239
      %v1251 = vmul.f32 %v718, %v1239
      %v1252 = vmul.f32 %v719, %v1239
      %v1253 = vmul.f32 %v720, %v1239
      %v1254 = vmul.f32 %v721, %v1239
      %v1255 = vmul.f32 %v722, %v1239
      %v1256 = vadd.f32 %v1220, %v1240
      %v1257 = vadd.f32 %v1221, %v1241
      %v1258 = vadd.f32 %v1222, %v1242
      %v1259 = vadd.f32 %v1223, %v1243
      %v1260 = vadd.f32 %v1224, %v1244
      %v1261 = vadd.f32 %v1225, %v1245
      %v1262 = vadd.f32 %v1226, %v1246
      %v1263 = vadd.f32 %v1227, %v1247
      %v1264 = vadd.f32 %v1228, %v1248
      %v1265 = vadd.f32 %v1229, %v1249
      %v1266 = vadd.f32 %v1230, %v1250
      %v1267 = vadd.f32 %v1231, %v1251
      %v1268 = vadd.f32 %v1232, %v1252
      %v1269 = vadd.f32 %v1233, %v1253
      %v1270 = vadd.f32 %v1234, %v1254
      %v1271 = vadd.f32 %v1235, %v1255
      %v1272 = vlaneseq
      %v1273 = vshrl.u32 %v1272, 7
      %v1274 = vsub.s32 0, %v1273
      %v1275 = vrot.slane %v730, %v1274
      %v1276 = vmul.f32 %v613, %v1275
      %v1277 = vmul.f32 %v614, %v1275
      %v1278 = vmul.f32 %v615, %v1275
      %v1279 = vmul.f32 %v616, %v1275
      %v1280 = vmul.f32 %v617, %v1275
      %v1281 = vmul.f32 %v618, %v1275
      %v1282 = vmul.f32 %v619, %v1275
      %v1283 = vmul.f32 %v620, %v1275
      %v1284 = vmul.f32 %v621, %v1275
      %v1285 = vmul.f32 %v622, %v1275
      %v1286 = vmul.f32 %v623, %v1275
      %v1287 = vmul.f32 %v624, %v1275
      %v1288 = vmul.f32 %v625, %v1275
      %v1289 = vmul.f32 %v626, %v1275
      %v1290 = vmul.f32 %v627, %v1275
      %v1291 = vmul.f32 %v628, %v1275
      %v1292 = vadd.f32 %v1256, %v1276
      %v1293 = vadd.f32 %v1257, %v1277
      %v1294 = vadd.f32 %v1258, %v1278
      %v1295 = vadd.f32 %v1259, %v1279
      %v1296 = vadd.f32 %v1260, %v1280
      %v1297 = vadd.f32 %v1261, %v1281
      %v1298 = vadd.f32 %v1262, %v1282
      %v1299 = vadd.f32 %v1263, %v1283
      %v1300 = vadd.f32 %v1264, %v1284
      %v1301 = vadd.f32 %v1265, %v1285
      %v1302 = vadd.f32 %v1266, %v1286
      %v1303 = vadd.f32 %v1267, %v1287
      %v1304 = vadd.f32 %v1268, %v1288
      %v1305 = vadd.f32 %v1269, %v1289
      %v1306 = vadd.f32 %v1270, %v1290
      %v1307 = vadd.f32 %v1271, %v1291
      %v1308 = vlaneseq
      %v1309 = vshrl.u32 %v1308, 7
      %v1310 = vsub.s32 1, %v1309
      %v1311 = vrot.slane %v730, %v1310
      %v1312 = vmul.f32 %v637, %v1311
      %v1313 = vmul.f32 %v638, %v1311
      %v1314 = vmul.f32 %v639, %v1311
      %v1315 = vmul.f32 %v640, %v1311
      %v1316 = vmul.f32 %v641, %v1311
      %v1317 = vmul.f32 %v642, %v1311
      %v1318 = vmul.f32 %v643, %v1311
      %v1319 = vmul.f32 %v644, %v1311
      %v1320 = vmul.f32 %v645, %v1311
      %v1321 = vmul.f32 %v646, %v1311
      %v1322 = vmul.f32 %v647, %v1311
      %v1323 = vmul.f32 %v648, %v1311
      %v1324 = vmul.f32 %v649, %v1311
      %v1325 = vmul.f32 %v650, %v1311
      %v1326 = vmul.f32 %v651, %v1311
      %v1327 = vmul.f32 %v652, %v1311
      %v1328 = vadd.f32 %v1292, %v1312
      %v1329 = vadd.f32 %v1293, %v1313
      %v1330 = vadd.f32 %v1294, %v1314
      %v1331 = vadd.f32 %v1295, %v1315
      %v1332 = vadd.f32 %v1296, %v1316
      %v1333 = vadd.f32 %v1297, %v1317
      %v1334 = vadd.f32 %v1298, %v1318
      %v1335 = vadd.f32 %v1299, %v1319
      %v1336 = vadd.f32 %v1300, %v1320
      %v1337 = vadd.f32 %v1301, %v1321
      %v1338 = vadd.f32 %v1302, %v1322
      %v1339 = vadd.f32 %v1303, %v1323
      %v1340 = vadd.f32 %v1304, %v1324
      %v1341 = vadd.f32 %v1305, %v1325
      %v1342 = vadd.f32 %v1306, %v1326
      %v1343 = vadd.f32 %v1307, %v1327
      %v1344 = vlaneseq
      %v1345 = vshrl.u32 %v1344, 7
      %v1346 = vsub.s32 2, %v1345
      %v1347 = vrot.slane %v730, %v1346
      %v1348 = vmul.f32 %v661, %v1347
      %v1349 = vmul.f32 %v662, %v1347
      %v1350 = vmul.f32 %v663, %v1347
      %v1351 = vmul.f32 %v664, %v1347
      %v1352 = vmul.f32 %v665, %v1347
      %v1353 = vmul.f32 %v666, %v1347
      %v1354 = vmul.f32 %v667, %v1347
      %v1355 = vmul.f32 %v668, %v1347
      %v1356 = vmul.f32 %v669, %v1347
      %v1357 = vmul.f32 %v670, %v1347
      %v1358 = vmul.f32 %v671, %v1347
      %v1359 = vmul.f32 %v672, %v1347
      %v1360 = vmul.f32 %v673, %v1347
      %v1361 = vmul.f32 %v674, %v1347
      %v1362 = vmul.f32 %v675, %v1347
      %v1363 = vmul.f32 %v676, %v1347
      %v1364 = vadd.f32 %v1328, %v1348
      %v1365 = vadd.f32 %v1329, %v1349
      %v1366 = vadd.f32 %v1330, %v1350
      %v1367 = vadd.f32 %v1331, %v1351
      %v1368 = vadd.f32 %v1332, %v1352
      %v1369 = vadd.f32 %v1333, %v1353
      %v1370 = vadd.f32 %v1334, %v1354
      %v1371 = vadd.f32 %v1335, %v1355
      %v1372 = vadd.f32 %v1336, %v1356
      %v1373 = vadd.f32 %v1337, %v1357
      %v1374 = vadd.f32 %v1338, %v1358
      %v1375 = vadd.f32 %v1339, %v1359
      %v1376 = vadd.f32 %v1340, %v1360
      %v1377 = vadd.f32 %v1341, %v1361
      %v1378 = vadd.f32 %v1342, %v1362
      %v1379 = vadd.f32 %v1343, %v1363
      %v1380 = vlaneseq
      %v1381 = vshrl.u32 %v1380, 7
      %v1382 = vsub.s32 3, %v1381
      %v1383 = vrot.slane %v730, %v1382
      %v1384 = vmul.f32 %v685, %v1383
      %v1385 = vmul.f32 %v686, %v1383
      %v1386 = vmul.f32 %v687, %v1383
      %v1387 = vmul.f32 %v688, %v1383
      %v1388 = vmul.f32 %v689, %v1383
      %v1389 = vmul.f32 %v690, %v1383
      %v1390 = vmul.f32 %v691, %v1383
      %v1391 = vmul.f32 %v692, %v1383
      %v1392 = vmul.f32 %v693, %v1383
      %v1393 = vmul.f32 %v694, %v1383
      %v1394 = vmul.f32 %v695, %v1383
      %v1395 = vmul.f32 %v696, %v1383
      %v1396 = vmul.f32 %v697, %v1383
      %v1397 = vmul.f32 %v698, %v1383
      %v1398 = vmul.f32 %v699, %v1383
      %v1399 = vmul.f32 %v700, %v1383
      %v1400 = vadd.f32 %v1364, %v1384
      %v1401 = vadd.f32 %v1365, %v1385
      %v1402 = vadd.f32 %v1366, %v1386
      %v1403 = vadd.f32 %v1367, %v1387
      %v1404 = vadd.f32 %v1368, %v1388
      %v1405 = vadd.f32 %v1369, %v1389
      %v1406 = vadd.f32 %v1370, %v1390
      %v1407 = vadd.f32 %v1371, %v1391
      %v1408 = vadd.f32 %v1372, %v1392
      %v1409 = vadd.f32 %v1373, %v1393
      %v1410 = vadd.f32 %v1374, %v1394
      %v1411 = vadd.f32 %v1375, %v1395
      %v1412 = vadd.f32 %v1376, %v1396
      %v1413 = vadd.f32 %v1377, %v1397
      %v1414 = vadd.f32 %v1378, %v1398
      %v1415 = vadd.f32 %v1379, %v1399
      %v1416 = vlaneseq
      %v1417 = vshrl.u32 %v1416, 7
      %v1418 = vsub.s32 4, %v1417
      %v1419 = vrot.slane %v730, %v1418
      %v1420 = vmul.f32 %v709, %v1419
      %v1421 = vmul.f32 %v710, %v1419
      %v1422 = vmul.f32 %v711, %v1419
      %v1423 = vmul.f32 %v712, %v1419
      %v1424 = vmul.f32 %v713, %v1419
      %v1425 = vmul.f32 %v714, %v1419
      %v1426 = vmul.f32 %v715, %v1419
      %v1427 = vmul.f32 %v716, %v1419
      %v1428 = vmul.f32 %v717, %v1419
      %v1429 = vmul.f32 %v718, %v1419
      %v1430 = vmul.f32 %v719, %v1419
      %v1431 = vmul.f32 %v720, %v1419
      %v1432 = vmul.f32 %v721, %v1419
      %v1433 = vmul.f32 %v722, %v1419
      %v1434 = vmul.f32 %v723, %v1419
      %v1435 = vmul.f32 %v724, %v1419
      %v1436 = vadd.f32 %v1400, %v1420
      %v1437 = vadd.f32 %v1401, %v1421
      %v1438 = vadd.f32 %v1402, %v1422
      %v1439 = vadd.f32 %v1403, %v1423
      %v1440 = vadd.f32 %v1404, %v1424
      %v1441 = vadd.f32 %v1405, %v1425
      %v1442 = vadd.f32 %v1406, %v1426
      %v1443 = vadd.f32 %v1407, %v1427
      %v1444 = vadd.f32 %v1408, %v1428
      %v1445 = vadd.f32 %v1409, %v1429
      %v1446 = vadd.f32 %v1410, %v1430
      %v1447 = vadd.f32 %v1411, %v1431
      %v1448 = vadd.f32 %v1412, %v1432
      %v1449 = vadd.f32 %v1413, %v1433
      %v1450 = vadd.f32 %v1414, %v1434
      %v1451 = vadd.f32 %v1415, %v1435
      %v1452 = vlaneseq
      %v1453 = vshrl.u32 %v1452, 7
      %v1454 = vsub.s32 0, %v1453
      %v1455 = vrot.slane %v731, %v1454
      %v1456 = vmul.f32 %v615, %v1455
      %v1457 = vmul.f32 %v616, %v1455
      %v1458 = vmul.f32 %v617, %v1455
      %v1459 = vmul.f32 %v618, %v1455
      %v1460 = vmul.f32 %v619, %v1455
      %v1461 = vmul.f32 %v620, %v1455
      %v1462 = vmul.f32 %v621, %v1455
      %v1463 = vmul.f32 %v622, %v1455
      %v1464 = vmul.f32 %v623, %v1455
      %v1465 = vmul.f32 %v624, %v1455
      %v1466 = vmul.f32 %v625, %v1455
      %v1467 = vmul.f32 %v626, %v1455
      %v1468 = vmul.f32 %v627, %v1455
      %v1469 = vmul.f32 %v628, %v1455
      %v1470 = vmul.f32 %v629, %v1455
      %v1471 = vmul.f32 %v630, %v1455
      %v1472 = vadd.f32 %v1436, %v1456
      %v1473 = vadd.f32 %v1437, %v1457
      %v1474 = vadd.f32 %v1438, %v1458
      %v1475 = vadd.f32 %v1439, %v1459
      %v1476 = vadd.f32 %v1440, %v1460
      %v1477 = vadd.f32 %v1441, %v1461
      %v1478 = vadd.f32 %v1442, %v1462
      %v1479 = vadd.f32 %v1443, %v1463
      %v1480 = vadd.f32 %v1444, %v1464
      %v1481 = vadd.f32 %v1445, %v1465
      %v1482 = vadd.f32 %v1446, %v1466
      %v1483 = vadd.f32 %v1447, %v1467
      %v1484 = vadd.f32 %v1448, %v1468
      %v1485 = vadd.f32 %v1449, %v1469
      %v1486 = vadd.f32 %v1450, %v1470
      %v1487 = vadd.f32 %v1451, %v1471
      %v1488 = vlaneseq
      %v1489 = vshrl.u32 %v1488, 7
      %v1490 = vsub.s32 1, %v1489
      %v1491 = vrot.slane %v731, %v1490
      %v1492 = vmul.f32 %v639, %v1491
      %v1493 = vmul.f32 %v640, %v1491
      %v1494 = vmul.f32 %v641, %v1491
      %v1495 = vmul.f32 %v642, %v1491
      %v1496 = vmul.f32 %v643, %v1491
      %v1497 = vmul.f32 %v644, %v1491
      %v1498 = vmul.f32 %v645, %v1491
      %v1499 = vmul.f32 %v646, %v1491
      %v1500 = vmul.f32 %v647, %v1491
      %v1501 = vmul.f32 %v648, %v1491
      %v1502 = vmul.f32 %v649, %v1491
      %v1503 = vmul.f32 %v650, %v1491
      %v1504 = vmul.f32 %v651, %v1491
      %v1505 = vmul.f32 %v652, %v1491
      %v1506 = vmul.f32 %v653, %v1491
      %v1507 = vmul.f32 %v654, %v1491
      %v1508 = vadd.f32 %v1472, %v1492
      %v1509 = vadd.f32 %v1473, %v1493
      %v1510 = vadd.f32 %v1474, %v1494
      %v1511 = vadd.f32 %v1475, %v1495
      %v1512 = vadd.f32 %v1476, %v1496
      %v1513 = vadd.f32 %v1477, %v1497
      %v1514 = vadd.f32 %v1478, %v1498
      %v1515 = vadd.f32 %v1479, %v1499
      %v1516 = vadd.f32 %v1480, %v1500
      %v1517 = vadd.f32 %v1481, %v1501
      %v1518 = vadd.f32 %v1482, %v1502
      %v1519 = vadd.f32 %v1483, %v1503
      %v1520 = vadd.f32 %v1484, %v1504
      %v1521 = vadd.f32 %v1485, %v1505
      %v1522 = vadd.f32 %v1486, %v1506
      %v1523 = vadd.f32 %v1487, %v1507
      %v1524 = vlaneseq
      %v1525 = vshrl.u32 %v1524, 7
      %v1526 = vsub.s32 2, %v1525
      %v1527 = vrot.slane %v731, %v1526
      %v1528 = vmul.f32 %v663, %v1527
      %v1529 = vmul.f32 %v664, %v1527
      %v1530 = vmul.f32 %v665, %v1527
      %v1531 = vmul.f32 %v666, %v1527
      %v1532 = vmul.f32 %v667, %v1527
      %v1533 = vmul.f32 %v668, %v1527
      %v1534 = vmul.f32 %v669, %v1527
      %v1535 = vmul.f32 %v670, %v1527
      %v1536 = vmul.f32 %v671, %v1527
      %v1537 = vmul.f32 %v672, %v1527
      %v1538 = vmul.f32 %v673, %v1527
      %v1539 = vmul.f32 %v674, %v1527
      %v1540 = vmul.f32 %v675, %v1527
      %v1541 = vmul.f32 %v676, %v1527
      %v1542 = vmul.f32 %v677, %v1527
      %v1543 = vmul.f32 %v678, %v1527
      %v1544 = vadd.f32 %v1508, %v1528
      %v1545 = vadd.f32 %v1509, %v1529
      %v1546 = vadd.f32 %v1510, %v1530
      %v1547 = vadd.f32 %v1511, %v1531
      %v1548 = vadd.f32 %v1512, %v1532
      %v1549 = vadd.f32 %v1513, %v1533
      %v1550 = vadd.f32 %v1514, %v1534
      %v1551 = vadd.f32 %v1515, %v1535
      %v1552 = vadd.f32 %v1516, %v1536
      %v1553 = vadd.f32 %v1517, %v1537
      %v1554 = vadd.f32 %v1518, %v1538
      %v1555 = vadd.f32 %v1519, %v1539
      %v1556 = vadd.f32 %v1520, %v1540
      %v1557 = vadd.f32 %v1521, %v1541
      %v1558 = vadd.f32 %v1522, %v1542
      %v1559 = vadd.f32 %v1523, %v1543
      %v1560 = vlaneseq
      %v1561 = vshrl.u32 %v1560, 7
      %v1562 = vsub.s32 3, %v1561
      %v1563 = vrot.slane %v731, %v1562
      %v1564 = vmul.f32 %v687, %v1563
      %v1565 = vmul.f32 %v688, %v1563
      %v1566 = vmul.f32 %v689, %v1563
      %v1567 = vmul.f32 %v690, %v1563
      %v1568 = vmul.f32 %v691, %v1563
      %v1569 = vmul.f32 %v692, %v1563
      %v1570 = vmul.f32 %v693, %v1563
      %v1571 = vmul.f32 %v694, %v1563
      %v1572 = vmul.f32 %v695, %v1563
      %v1573 = vmul.f32 %v696, %v1563
      %v1574 = vmul.f32 %v697, %v1563
      %v1575 = vmul.f32 %v698, %v1563
      %v1576 = vmul.f32 %v699, %v1563
      %v1577 = vmul.f32 %v700, %v1563
      %v1578 = vmul.f32 %v701, %v1563
      %v1579 = vmul.f32 %v702, %v1563
      %v1580 = vadd.f32 %v1544, %v1564
      %v1581 = vadd.f32 %v1545, %v1565
      %v1582 = vadd.f32 %v1546, %v1566
      %v1583 = vadd.f32 %v1547, %v1567
      %v1584 = vadd.f32 %v1548, %v1568
      %v1585 = vadd.f32 %v1549, %v1569
      %v1586 = vadd.f32 %v1550, %v1570
      %v1587 = vadd.f32 %v1551, %v1571
      %v1588 = vadd.f32 %v1552, %v1572
      %v1589 = vadd.f32 %v1553, %v1573
      %v1590 = vadd.f32 %v1554, %v1574
      %v1591 = vadd.f32 %v1555, %v1575
      %v1592 = vadd.f32 %v1556, %v1576
      %v1593 = vadd.f32 %v1557, %v1577
      %v1594 = vadd.f32 %v1558, %v1578
      %v1595 = vadd.f32 %v1559, %v1579
      %v1596 = vlaneseq
      %v1597 = vshrl.u32 %v1596, 7
      %v1598 = vsub.s32 4, %v1597
      %v1599 = vrot.slane %v731, %v1598
      %v1600 = vmul.f32 %v711, %v1599
      %v1601 = vmul.f32 %v712, %v1599
      %v1602 = vmul.f32 %v713, %v1599
      %v1603 = vmul.f32 %v714, %v1599
      %v1604 = vmul.f32 %v715, %v1599
      %v1605 = vmul.f32 %v716, %v1599
      %v1606 = vmul.f32 %v717, %v1599
      %v1607 = vmul.f32 %v718, %v1599
      %v1608 = vmul.f32 %v719, %v1599
      %v1609 = vmul.f32 %v720, %v1599
      %v1610 = vmul.f32 %v721, %v1599
      %v1611 = vmul.f32 %v722, %v1599
      %v1612 = vmul.f32 %v723, %v1599
      %v1613 = vmul.f32 %v724, %v1599
      %v1614 = vmul.f32 %v725, %v1599
      %v1615 = vmul.f32 %v726, %v1599
      %v1616 = vadd.f32 %v1580, %v1600
      %v1617 = vadd.f32 %v1581, %v1601
      %v1618 = vadd.f32 %v1582, %v1602
      %v1619 = vadd.f32 %v1583, %v1603
      %v1620 = vadd.f32 %v1584, %v1604
      %v1621 = vadd.f32 %v1585, %v1605
      %v1622 = vadd.f32 %v1586, %v1606
      %v1623 = vadd.f32 %v1587, %v1607
      %v1624 = vadd.f32 %v1588, %v1608
      %v1625 = vadd.f32 %v1589, %v1609
      %v1626 = vadd.f32 %v1590, %v1610
      %v1627 = vadd.f32 %v1591, %v1611
      %v1628 = vadd.f32 %v1592, %v1612
      %v1629 = vadd.f32 %v1593, %v1613
      %v1630 = vadd.f32 %v1594, %v1614
      %v1631 = vadd.f32 %v1595, %v1615
      %v1632 = vld [vmem:[%s4] sm:$0x1]
      %v1633 = vlaneseq
      %v1634 = vshrl.u32 %v1633, 7
      %v1635 = vsub.s32 0, %v1634
      %v1636 = vrot.slane %v1632, %v1635
      %v1637 = vadd.f32 %v1616, %v1636
      %v1638 = vadd.f32 %v1617, %v1636
      %v1639 = vadd.f32 %v1618, %v1636
      %v1640 = vadd.f32 %v1619, %v1636
      %v1641 = vadd.f32 %v1620, %v1636
      %v1642 = vadd.f32 %v1621, %v1636
      %v1643 = vadd.f32 %v1622, %v1636
      %v1644 = vadd.f32 %v1623, %v1636
      %v1645 = vadd.f32 %v1624, %v1636
      %v1646 = vadd.f32 %v1625, %v1636
      %v1647 = vadd.f32 %v1626, %v1636
      %v1648 = vadd.f32 %v1627, %v1636
      %v1649 = vadd.f32 %v1628, %v1636
      %v1650 = vadd.f32 %v1629, %v1636
      %v1651 = vadd.f32 %v1630, %v1636
      %v1652 = vadd.f32 %v1631, %v1636
      %v1653 = vmax.f32 %v1637, 0.0
      %v1654 = vmax.f32 %v1638, 0.0
      %v1655 = vmax.f32 %v1639, 0.0
      %v1656 = vmax.f32 %v1640, 0.0
      %v1657 = vmax.f32 %v1641, 0.0
      %v1658 = vmax.f32 %v1642, 0.0
      %v1659 = vmax.f32 %v1643, 0.0
      %v1660 = vmax.f32 %v1644, 0.0
      %v1661 = vmax.f32 %v1645, 0.0
      %v1662 = vmax.f32 %v1646, 0.0
      %v1663 = vmax.f32 %v1647, 0.0
      %v1664 = vmax.f32 %v1648, 0.0
      %v1665 = vmax.f32 %v1649, 0.0
      %v1666 = vmax.f32 %v1650, 0.0
      %v1667 = vmax.f32 %v1651, 0.0
      %v1668 = vmax.f32 %v1652, 0.0
      %v1669 = vld [vmem:[%s5] sm:$0xff]
      %v1670 = vld [vmem:[%s5 + $0x8] sm:$0xff]
      %v1671 = vld [vmem:[%s6] sm:$0xff]
      %v1672 = vld [vmem:[%s6 + $0x8] sm:$0xff]
      %1674 = vset.pattern.permute.xlu0 0
      %1675 = vperm.xlu0 %1674, %v1671
      %v1676 = vpop.permute.xlu0 %1675
      %1679 = vset.pattern.permute.xlu0 0
      %1680 = vperm.xlu0 %1679, %v1672
      %v1681 = vpop.permute.xlu0 %1680
      %v1684 = vsel %vm548, %v1669, 0
      %v1687 = vsel %vm548, %v1670, 0
      %v1690 = vsel %vm548, %v1653, 0
      %v1693 = vsel %vm548, %v1654, 0
      %v1696 = vsel %vm548, %v1655, 0
      %v1699 = vsel %vm548, %v1656, 0
      %v1702 = vsel %vm548, %v1657, 0
      %v1705 = vsel %vm548, %v1658, 0
      %v1708 = vsel %vm548, %v1659, 0
      %v1711 = vsel %vm548, %v1660, 0
      %v1714 = vsel %vm548, %v1661, 0
      %v1717 = vsel %vm548, %v1662, 0
      %v1720 = vsel %vm548, %v1663, 0
      %v1723 = vsel %vm548, %v1664, 0
      %v1726 = vsel %vm548, %v1665, 0
      %v1729 = vsel %vm548, %v1666, 0
      %v1732 = vsel %vm548, %v1667, 0
      %v1735 = vsel %vm548, %v1668, 0
      %1737 = vmatprep.subr.mxu0 0.0
      %1738 = vmatpush1.xpose.msra.mxu0 %v1735
      %1739 = vmatprep.subr.mxu0 0.0
      %1740 = vmatpush1.xpose.msra.mxu0 %v1732
      %1741 = vmatprep.subr.mxu0 0.0
      %1742 = vmatpush1.xpose.msra.mxu0 %v1729
      %1743 = vmatprep.subr.mxu0 0.0
      %1744 = vmatpush1.xpose.msra.mxu0 %v1726
      %1745 = vmatprep.subr.mxu0 0.0
      %1746 = vmatpush1.xpose.msra.mxu0 %v1723
      %1747 = vmatprep.subr.mxu0 0.0
      %1748 = vmatpush1.xpose.msra.mxu0 %v1720
      %1749 = vmatprep.subr.mxu0 0.0
      %1750 = vmatpush1.xpose.msra.mxu0 %v1717
      %1751 = vmatprep.subr.mxu0 0.0
      %1752 = vmatpush1.xpose.msra.mxu0 %v1714
      %1753 = vmatprep.subr.mxu0 0.0
      %1754 = vmatpush1.xpose.msra.mxu0 %v1711
      %1755 = vmatprep.subr.mxu0 0.0
      %1756 = vmatpush1.xpose.msra.mxu0 %v1708
      %1757 = vmatprep.subr.mxu0 0.0
      %1758 = vmatpush1.xpose.msra.mxu0 %v1705
      %1759 = vmatprep.subr.mxu0 0.0
      %1760 = vmatpush1.xpose.msra.mxu0 %v1702
      %1761 = vmatprep.subr.mxu0 0.0
      %1762 = vmatpush1.xpose.msra.mxu0 %v1699
      %1763 = vmatprep.subr.mxu0 0.0
      %1764 = vmatpush1.xpose.msra.mxu0 %v1696
      %1765 = vmatprep.subr.mxu0 0.0
      %1766 = vmatpush1.xpose.msra.mxu0 %v1693
      %1767 = vmatprep.subr.mxu0 0.0
      %1768 = vmatpush1.xpose.msra.mxu0 %v1690
      %1769 = vmatprep.subr.mxu0 0.0
      %1770 = vmatpush2.xpose.msra.mxu0 0.0
      %1771 = vmatprep.subr.mxu0 0.0
      %1772 = vmatpush2.xpose.msra.mxu0 0.0
      %1773 = vmatprep.subr.mxu0 0.0
      %1774 = vmatpush2.xpose.msra.mxu0 0.0
      %1775 = vmatprep.subr.mxu0 0.0
      %1776 = vmatpush2.xpose.msra.mxu0 0.0
      %1777 = vmatprep.subr.mxu0 0.0
      %1778 = vmatpush2.xpose.msra.mxu0 0.0
      %1779 = vmatprep.subr.mxu0 0.0
      %1780 = vmatpush2.xpose.msra.mxu0 0.0
      %1781 = vmatprep.subr.mxu0 0.0
      %1782 = vmatpush2.xpose.msra.mxu0 0.0
      %1783 = vmatprep.subr.mxu0 0.0
      %1784 = vmatpush2.xpose.msra.mxu0 0.0
      %1785 = vmatprep.subr.mxu0 0.0
      %1786 = vmatpush2.xpose.msra.mxu0 0.0
      %1787 = vmatprep.subr.mxu0 0.0
      %1788 = vmatpush2.xpose.msra.mxu0 0.0
      %1789 = vmatprep.subr.mxu0 0.0
      %1790 = vmatpush2.xpose.msra.mxu0 0.0
      %1791 = vmatprep.subr.mxu0 0.0
      %1792 = vmatpush2.xpose.msra.mxu0 0.0
      %1793 = vmatprep.subr.mxu0 0.0
      %1794 = vmatpush2.xpose.msra.mxu0 0.0
      %1795 = vmatprep.subr.mxu0 0.0
      %1796 = vmatpush2.xpose.msra.mxu0 0.0
      %1797 = vmatprep.subr.mxu0 0.0
      %1798 = vmatpush2.xpose.msra.mxu0 0.0
      %1799 = vmatprep.subr.mxu0 0.0
      %1800 = vmatpush2.xpose.msra.mxu0 0.0
      %1801 = vmatprep.mubr.f32.mxu0 0.0
      %1802 = vmatmul.mubr.f32.gmra.mxu0 %v1684
      %v1803 = vpop.f32.mrf.mxu0
      %v1804 = vadd.f32 %v1676, %v1803
      %v1805 = vpop.f32.mrf.mxu0
      %1806 = vmatprep.mubr.f32.mxu0 0.0
      %1807 = vmatmul.mubr.f32.gmra.mxu0 %v1687
      %v1808 = vpop.f32.mrf.mxu0
      %v1809 = vadd.f32 %v1681, %v1808
      %v1810 = vpop.f32.mrf.mxu0
      %1811 = vdwg.mxu0
      %v1812 = vmax.f32 %v1804, 0.0
      %v1813 = vmax.f32 %v1809, 0.0
      %v1814 = vld [vmem:[%s7] sm:$0x7]
      %v1815 = vld [vmem:[%s8] sm:$0x7]
      %1817 = vset.pattern.permute.xlu0 0
      %1818 = vperm.xlu0 %1817, %v1815
      %v1819 = vpop.permute.xlu0 %1818
      %vm1821 = vcmask 130048
      %v1823 = vsel %vm1821, %v1814, 0
      %1825 = vmatprep.subr.mxu0 0.0
      %1826 = vmatpush1.msra.mxu0 0.0
      %1827 = vmatprep.subr.mxu0 0.0
      %1828 = vmatpush1.msra.mxu0 0.0
      %1829 = vmatprep.subr.mxu0 0.0
      %1830 = vmatpush1.msra.mxu0 0.0
      %1831 = vmatprep.subr.mxu0 0.0
      %1832 = vmatpush1.msra.mxu0 0.0
      %1833 = vmatprep.subr.mxu0 0.0
      %1834 = vmatpush1.msra.mxu0 0.0
      %1835 = vmatprep.subr.mxu0 0.0
      %1836 = vmatpush1.msra.mxu0 0.0
      %1837 = vmatprep.subr.mxu0 0.0
      %1838 = vmatpush1.msra.mxu0 0.0
      %1839 = vmatprep.subr.mxu0 0.0
      %1840 = vmatpush1.msra.mxu0 0.0
      %1841 = vmatprep.subr.mxu0 0.0
      %1842 = vmatpush1.msra.mxu0 0.0
      %1843 = vmatprep.subr.mxu0 0.0
      %1844 = vmatpush1.msra.mxu0 0.0
      %1845 = vmatprep.subr.mxu0 0.0
      %1846 = vmatpush1.msra.mxu0 0.0
      %1847 = vmatprep.subr.mxu0 0.0
      %1848 = vmatpush1.msra.mxu0 0.0
      %1849 = vmatprep.subr.mxu0 0.0
      %1850 = vmatpush1.msra.mxu0 0.0
      %1851 = vmatprep.subr.mxu0 0.0
      %1852 = vmatpush1.msra.mxu0 0.0
      %1853 = vmatprep.subr.mxu0 0.0
      %1854 = vmatpush1.msra.mxu0 %v1813
      %1855 = vmatprep.subr.mxu0 0.0
      %1856 = vmatpush1.msra.mxu0 %v1812
      %1857 = vmatprep.subr.mxu0 0.0
      %1858 = vmatpush2.msra.mxu0 0.0
      %1859 = vmatprep.subr.mxu0 0.0
      %1860 = vmatpush2.msra.mxu0 0.0
      %1861 = vmatprep.subr.mxu0 0.0
      %1862 = vmatpush2.msra.mxu0 0.0
      %1863 = vmatprep.subr.mxu0 0.0
      %1864 = vmatpush2.msra.mxu0 0.0
      %1865 = vmatprep.subr.mxu0 0.0
      %1866 = vmatpush2.msra.mxu0 0.0
      %1867 = vmatprep.subr.mxu0 0.0
      %1868 = vmatpush2.msra.mxu0 0.0
      %1869 = vmatprep.subr.mxu0 0.0
      %1870 = vmatpush2.msra.mxu0 0.0
      %1871 = vmatprep.subr.mxu0 0.0
      %1872 = vmatpush2.msra.mxu0 0.0
      %1873 = vmatprep.subr.mxu0 0.0
      %1874 = vmatpush2.msra.mxu0 0.0
      %1875 = vmatprep.subr.mxu0 0.0
      %1876 = vmatpush2.msra.mxu0 0.0
      %1877 = vmatprep.subr.mxu0 0.0
      %1878 = vmatpush2.msra.mxu0 0.0
      %1879 = vmatprep.subr.mxu0 0.0
      %1880 = vmatpush2.msra.mxu0 0.0
      %1881 = vmatprep.subr.mxu0 0.0
      %1882 = vmatpush2.msra.mxu0 0.0
      %1883 = vmatprep.subr.mxu0 0.0
      %1884 = vmatpush2.msra.mxu0 0.0
      %1885 = vmatprep.subr.mxu0 0.0
      %1886 = vmatpush2.msra.mxu0 0.0
      %1887 = vmatprep.subr.mxu0 0.0
      %1888 = vmatpush2.msra.mxu0 0.0
      %1889 = vmatprep.mubr.f32.mxu0 0.0
      %1890 = vmatmul.mubr.f32.gmra.mxu0 %v1823
      %v1891 = vpop.f32.mrf.mxu0
      %v1892 = vadd.f32 %v1819, %v1891
      %v1893 = vpop.f32.mrf.mxu0
      %1894 = vdwg.mxu0
      %1895 = vst [vmem:[%s505] sm:$0x7] %v1892
      %s1896 = scalar_lea.vmem %s3, 40
      %v1897 = vld [vmem:[%s1896] sm:$0x1f]
      %v1898 = vld [vmem:[%s1896 + $0x8] sm:$0x1f]
      %v1899 = vld [vmem:[%s1896 + $0x10] sm:$0x1f]
      %v1900 = vld [vmem:[%s1896 + $0x18] sm:$0x1f]
      %v1901 = vld [vmem:[%s1896 + $0x20] sm:$0x1f]
      %v1902 = vlaneseq
      %v1903 = vshrl.u32 %v1902, 7
      %v1904 = vsub.s32 0, %v1903
      %v1905 = vrot.slane %v1897, %v1904
      %v1906 = vmul.f32 %v607, %v1905
      %v1907 = vmul.f32 %v608, %v1905
      %v1908 = vmul.f32 %v609, %v1905
      %v1909 = vmul.f32 %v610, %v1905
      %v1910 = vmul.f32 %v611, %v1905
      %v1911 = vmul.f32 %v612, %v1905
      %v1912 = vmul.f32 %v613, %v1905
      %v1913 = vmul.f32 %v614, %v1905
      %v1914 = vmul.f32 %v615, %v1905
      %v1915 = vmul.f32 %v616, %v1905
      %v1916 = vmul.f32 %v617, %v1905
      %v1917 = vmul.f32 %v618, %v1905
      %v1918 = vmul.f32 %v619, %v1905
      %v1919 = vmul.f32 %v620, %v1905
      %v1920 = vmul.f32 %v621, %v1905
      %v1921 = vmul.f32 %v622, %v1905
      %v1922 = vadd.f32 %v1906, 0.0
      %v1923 = vadd.f32 %v1907, 0.0
      %v1924 = vadd.f32 %v1908, 0.0
      %v1925 = vadd.f32 %v1909, 0.0
      %v1926 = vadd.f32 %v1910, 0.0
      %v1927 = vadd.f32 %v1911, 0.0
      %v1928 = vadd.f32 %v1912, 0.0
      %v1929 = vadd.f32 %v1913, 0.0
      %v1930 = vadd.f32 %v1914, 0.0
      %v1931 = vadd.f32 %v1915, 0.0
      %v1932 = vadd.f32 %v1916, 0.0
      %v1933 = vadd.f32 %v1917, 0.0
      %v1934 = vadd.f32 %v1918, 0.0
      %v1935 = vadd.f32 %v1919, 0.0
      %v1936 = vadd.f32 %v1920, 0.0
      %v1937 = vadd.f32 %v1921, 0.0
      %v1938 = vlaneseq
      %v1939 = vshrl.u32 %v1938, 7
      %v1940 = vsub.s32 1, %v1939
      %v1941 = vrot.slane %v1897, %v1940
      %v1942 = vmul.f32 %v631, %v1941
      %v1943 = vmul.f32 %v632, %v1941
      %v1944 = vmul.f32 %v633, %v1941
      %v1945 = vmul.f32 %v634, %v1941
      %v1946 = vmul.f32 %v635, %v1941
      %v1947 = vmul.f32 %v636, %v1941
      %v1948 = vmul.f32 %v637, %v1941
      %v1949 = vmul.f32 %v638, %v1941
      %v1950 = vmul.f32 %v639, %v1941
      %v1951 = vmul.f32 %v640, %v1941
      %v1952 = vmul.f32 %v641, %v1941
      %v1953 = vmul.f32 %v642, %v1941
      %v1954 = vmul.f32 %v643, %v1941
      %v1955 = vmul.f32 %v644, %v1941
      %v1956 = vmul.f32 %v645, %v1941
      %v1957 = vmul.f32 %v646, %v1941
      %v1958 = vadd.f32 %v1922, %v1942
      %v1959 = vadd.f32 %v1923, %v1943
      %v1960 = vadd.f32 %v1924, %v1944
      %v1961 = vadd.f32 %v1925, %v1945
      %v1962 = vadd.f32 %v1926, %v1946
      %v1963 = vadd.f32 %v1927, %v1947
      %v1964 = vadd.f32 %v1928, %v1948
      %v1965 = vadd.f32 %v1929, %v1949
      %v1966 = vadd.f32 %v1930, %v1950
      %v1967 = vadd.f32 %v1931, %v1951
      %v1968 = vadd.f32 %v1932, %v1952
      %v1969 = vadd.f32 %v1933, %v1953
      %v1970 = vadd.f32 %v1934, %v1954
      %v1971 = vadd.f32 %v1935, %v1955
      %v1972 = vadd.f32 %v1936, %v1956
      %v1973 = vadd.f32 %v1937, %v1957
      %v1974 = vlaneseq
      %v1975 = vshrl.u32 %v1974, 7
      %v1976 = vsub.s32 2, %v1975
      %v1977 = vrot.slane %v1897, %v1976
      %v1978 = vmul.f32 %v655, %v1977
      %v1979 = vmul.f32 %v656, %v1977
      %v1980 = vmul.f32 %v657, %v1977
      %v1981 = vmul.f32 %v658, %v1977
      %v1982 = vmul.f32 %v659, %v1977
      %v1983 = vmul.f32 %v660, %v1977
      %v1984 = vmul.f32 %v661, %v1977
      %v1985 = vmul.f32 %v662, %v1977
      %v1986 = vmul.f32 %v663, %v1977
      %v1987 = vmul.f32 %v664, %v1977
      %v1988 = vmul.f32 %v665, %v1977
      %v1989 = vmul.f32 %v666, %v1977
      %v1990 = vmul.f32 %v667, %v1977
      %v1991 = vmul.f32 %v668, %v1977
      %v1992 = vmul.f32 %v669, %v1977
      %v1993 = vmul.f32 %v670, %v1977
      %v1994 = vadd.f32 %v1958, %v1978
      %v1995 = vadd.f32 %v1959, %v1979
      %v1996 = vadd.f32 %v1960, %v1980
      %v1997 = vadd.f32 %v1961, %v1981
      %v1998 = vadd.f32 %v1962, %v1982
      %v1999 = vadd.f32 %v1963, %v1983
      %v2000 = vadd.f32 %v1964, %v1984
      %v2001 = vadd.f32 %v1965, %v1985
      %v2002 = vadd.f32 %v1966, %v1986
      %v2003 = vadd.f32 %v1967, %v1987
      %v2004 = vadd.f32 %v1968, %v1988
      %v2005 = vadd.f32 %v1969, %v1989
      %v2006 = vadd.f32 %v1970, %v1990
      %v2007 = vadd.f32 %v1971, %v1991
      %v2008 = vadd.f32 %v1972, %v1992
      %v2009 = vadd.f32 %v1973, %v1993
      %v2010 = vlaneseq
      %v2011 = vshrl.u32 %v2010, 7
      %v2012 = vsub.s32 3, %v2011
      %v2013 = vrot.slane %v1897, %v2012
      %v2014 = vmul.f32 %v679, %v2013
      %v2015 = vmul.f32 %v680, %v2013
      %v2016 = vmul.f32 %v681, %v2013
      %v2017 = vmul.f32 %v682, %v2013
      %v2018 = vmul.f32 %v683, %v2013
      %v2019 = vmul.f32 %v684, %v2013
      %v2020 = vmul.f32 %v685, %v2013
      %v2021 = vmul.f32 %v686, %v2013
      %v2022 = vmul.f32 %v687, %v2013
      %v2023 = vmul.f32 %v688, %v2013
      %v2024 = vmul.f32 %v689, %v2013
      %v2025 = vmul.f32 %v690, %v2013
      %v2026 = vmul.f32 %v691, %v2013
      %v2027 = vmul.f32 %v692, %v2013
      %v2028 = vmul.f32 %v693, %v2013
      %v2029 = vmul.f32 %v694, %v2013
      %v2030 = vadd.f32 %v1994, %v2014
      %v2031 = vadd.f32 %v1995, %v2015
      %v2032 = vadd.f32 %v1996, %v2016
      %v2033 = vadd.f32 %v1997, %v2017
      %v2034 = vadd.f32 %v1998, %v2018
      %v2035 = vadd.f32 %v1999, %v2019
      %v2036 = vadd.f32 %v2000, %v2020
      %v2037 = vadd.f32 %v2001, %v2021
      %v2038 = vadd.f32 %v2002, %v2022
      %v2039 = vadd.f32 %v2003, %v2023
      %v2040 = vadd.f32 %v2004, %v2024
      %v2041 = vadd.f32 %v2005, %v2025
      %v2042 = vadd.f32 %v2006, %v2026
      %v2043 = vadd.f32 %v2007, %v2027
      %v2044 = vadd.f32 %v2008, %v2028
      %v2045 = vadd.f32 %v2009, %v2029
      %v2046 = vlaneseq
      %v2047 = vshrl.u32 %v2046, 7
      %v2048 = vsub.s32 4, %v2047
      %v2049 = vrot.slane %v1897, %v2048
      %v2050 = vmul.f32 %v703, %v2049
      %v2051 = vmul.f32 %v704, %v2049
      %v2052 = vmul.f32 %v705, %v2049
      %v2053 = vmul.f32 %v706, %v2049
      %v2054 = vmul.f32 %v707, %v2049
      %v2055 = vmul.f32 %v708, %v2049
      %v2056 = vmul.f32 %v709, %v2049
      %v2057 = vmul.f32 %v710, %v2049
      %v2058 = vmul.f32 %v711, %v2049
      %v2059 = vmul.f32 %v712, %v2049
      %v2060 = vmul.f32 %v713, %v2049
      %v2061 = vmul.f32 %v714, %v2049
      %v2062 = vmul.f32 %v715, %v2049
      %v2063 = vmul.f32 %v716, %v2049
      %v2064 = vmul.f32 %v717, %v2049
      %v2065 = vmul.f32 %v718, %v2049
      %v2066 = vadd.f32 %v2030, %v2050
      %v2067 = vadd.f32 %v2031, %v2051
      %v2068 = vadd.f32 %v2032, %v2052
      %v2069 = vadd.f32 %v2033, %v2053
      %v2070 = vadd.f32 %v2034, %v2054
      %v2071 = vadd.f32 %v2035, %v2055
      %v2072 = vadd.f32 %v2036, %v2056
      %v2073 = vadd.f32 %v2037, %v2057
      %v2074 = vadd.f32 %v2038, %v2058
      %v2075 = vadd.f32 %v2039, %v2059
      %v2076 = vadd.f32 %v2040, %v2060
      %v2077 = vadd.f32 %v2041, %v2061
      %v2078 = vadd.f32 %v2042, %v2062
      %v2079 = vadd.f32 %v2043, %v2063
      %v2080 = vadd.f32 %v2044, %v2064
      %v2081 = vadd.f32 %v2045, %v2065
      %v2082 = vlaneseq
      %v2083 = vshrl.u32 %v2082, 7
      %v2084 = vsub.s32 0, %v2083
      %v2085 = vrot.slane %v1898, %v2084
      %v2086 = vmul.f32 %v609, %v2085
      %v2087 = vmul.f32 %v610, %v2085
      %v2088 = vmul.f32 %v611, %v2085
      %v2089 = vmul.f32 %v612, %v2085
      %v2090 = vmul.f32 %v613, %v2085
      %v2091 = vmul.f32 %v614, %v2085
      %v2092 = vmul.f32 %v615, %v2085
      %v2093 = vmul.f32 %v616, %v2085
      %v2094 = vmul.f32 %v617, %v2085
      %v2095 = vmul.f32 %v618, %v2085
      %v2096 = vmul.f32 %v619, %v2085
      %v2097 = vmul.f32 %v620, %v2085
      %v2098 = vmul.f32 %v621, %v2085
      %v2099 = vmul.f32 %v622, %v2085
      %v2100 = vmul.f32 %v623, %v2085
      %v2101 = vmul.f32 %v624, %v2085
      %v2102 = vadd.f32 %v2066, %v2086
      %v2103 = vadd.f32 %v2067, %v2087
      %v2104 = vadd.f32 %v2068, %v2088
      %v2105 = vadd.f32 %v2069, %v2089
      %v2106 = vadd.f32 %v2070, %v2090
      %v2107 = vadd.f32 %v2071, %v2091
      %v2108 = vadd.f32 %v2072, %v2092
      %v2109 = vadd.f32 %v2073, %v2093
      %v2110 = vadd.f32 %v2074, %v2094
      %v2111 = vadd.f32 %v2075, %v2095
      %v2112 = vadd.f32 %v2076, %v2096
      %v2113 = vadd.f32 %v2077, %v2097
      %v2114 = vadd.f32 %v2078, %v2098
      %v2115 = vadd.f32 %v2079, %v2099
      %v2116 = vadd.f32 %v2080, %v2100
      %v2117 = vadd.f32 %v2081, %v2101
      %v2118 = vlaneseq
      %v2119 = vshrl.u32 %v2118, 7
      %v2120 = vsub.s32 1, %v2119
      %v2121 = vrot.slane %v1898, %v2120
      %v2122 = vmul.f32 %v633, %v2121
      %v2123 = vmul.f32 %v634, %v2121
      %v2124 = vmul.f32 %v635, %v2121
      %v2125 = vmul.f32 %v636, %v2121
      %v2126 = vmul.f32 %v637, %v2121
      %v2127 = vmul.f32 %v638, %v2121
      %v2128 = vmul.f32 %v639, %v2121
      %v2129 = vmul.f32 %v640, %v2121
      %v2130 = vmul.f32 %v641, %v2121
      %v2131 = vmul.f32 %v642, %v2121
      %v2132 = vmul.f32 %v643, %v2121
      %v2133 = vmul.f32 %v644, %v2121
      %v2134 = vmul.f32 %v645, %v2121
      %v2135 = vmul.f32 %v646, %v2121
      %v2136 = vmul.f32 %v647, %v2121
      %v2137 = vmul.f32 %v648, %v2121
      %v2138 = vadd.f32 %v2102, %v2122
      %v2139 = vadd.f32 %v2103, %v2123
      %v2140 = vadd.f32 %v2104, %v2124
      %v2141 = vadd.f32 %v2105, %v2125
      %v2142 = vadd.f32 %v2106, %v2126
      %v2143 = vadd.f32 %v2107, %v2127
      %v2144 = vadd.f32 %v2108, %v2128
      %v2145 = vadd.f32 %v2109, %v2129
      %v2146 = vadd.f32 %v2110, %v2130
      %v2147 = vadd.f32 %v2111, %v2131
      %v2148 = vadd.f32 %v2112, %v2132
      %v2149 = vadd.f32 %v2113, %v2133
      %v2150 = vadd.f32 %v2114, %v2134
      %v2151 = vadd.f32 %v2115, %v2135
      %v2152 = vadd.f32 %v2116, %v2136
      %v2153 = vadd.f32 %v2117, %v2137
      %v2154 = vlaneseq
      %v2155 = vshrl.u32 %v2154, 7
      %v2156 = vsub.s32 2, %v2155
      %v2157 = vrot.slane %v1898, %v2156
      %v2158 = vmul.f32 %v657, %v2157
      %v2159 = vmul.f32 %v658, %v2157
      %v2160 = vmul.f32 %v659, %v2157
      %v2161 = vmul.f32 %v660, %v2157
      %v2162 = vmul.f32 %v661, %v2157
      %v2163 = vmul.f32 %v662, %v2157
      %v2164 = vmul.f32 %v663, %v2157
      %v2165 = vmul.f32 %v664, %v2157
      %v2166 = vmul.f32 %v665, %v2157
      %v2167 = vmul.f32 %v666, %v2157
      %v2168 = vmul.f32 %v667, %v2157
      %v2169 = vmul.f32 %v668, %v2157
      %v2170 = vmul.f32 %v669, %v2157
      %v2171 = vmul.f32 %v670, %v2157
      %v2172 = vmul.f32 %v671, %v2157
      %v2173 = vmul.f32 %v672, %v2157
      %v2174 = vadd.f32 %v2138, %v2158
      %v2175 = vadd.f32 %v2139, %v2159
      %v2176 = vadd.f32 %v2140, %v2160
      %v2177 = vadd.f32 %v2141, %v2161
      %v2178 = vadd.f32 %v2142, %v2162
      %v2179 = vadd.f32 %v2143, %v2163
      %v2180 = vadd.f32 %v2144, %v2164
      %v2181 = vadd.f32 %v2145, %v2165
      %v2182 = vadd.f32 %v2146, %v2166
      %v2183 = vadd.f32 %v2147, %v2167
      %v2184 = vadd.f32 %v2148, %v2168
      %v2185 = vadd.f32 %v2149, %v2169
      %v2186 = vadd.f32 %v2150, %v2170
      %v2187 = vadd.f32 %v2151, %v2171
      %v2188 = vadd.f32 %v2152, %v2172
      %v2189 = vadd.f32 %v2153, %v2173
      %v2190 = vlaneseq
      %v2191 = vshrl.u32 %v2190, 7
      %v2192 = vsub.s32 3, %v2191
      %v2193 = vrot.slane %v1898, %v2192
      %v2194 = vmul.f32 %v681, %v2193
      %v2195 = vmul.f32 %v682, %v2193
      %v2196 = vmul.f32 %v683, %v2193
      %v2197 = vmul.f32 %v684, %v2193
      %v2198 = vmul.f32 %v685, %v2193
      %v2199 = vmul.f32 %v686, %v2193
      %v2200 = vmul.f32 %v687, %v2193
      %v2201 = vmul.f32 %v688, %v2193
      %v2202 = vmul.f32 %v689, %v2193
      %v2203 = vmul.f32 %v690, %v2193
      %v2204 = vmul.f32 %v691, %v2193
      %v2205 = vmul.f32 %v692, %v2193
      %v2206 = vmul.f32 %v693, %v2193
      %v2207 = vmul.f32 %v694, %v2193
      %v2208 = vmul.f32 %v695, %v2193
      %v2209 = vmul.f32 %v696, %v2193
      %v2210 = vadd.f32 %v2174, %v2194
      %v2211 = vadd.f32 %v2175, %v2195
      %v2212 = vadd.f32 %v2176, %v2196
      %v2213 = vadd.f32 %v2177, %v2197
      %v2214 = vadd.f32 %v2178, %v2198
      %v2215 = vadd.f32 %v2179, %v2199
      %v2216 = vadd.f32 %v2180, %v2200
      %v2217 = vadd.f32 %v2181, %v2201
      %v2218 = vadd.f32 %v2182, %v2202
      %v2219 = vadd.f32 %v2183, %v2203
      %v2220 = vadd.f32 %v2184, %v2204
      %v2221 = vadd.f32 %v2185, %v2205
      %v2222 = vadd.f32 %v2186, %v2206
      %v2223 = vadd.f32 %v2187, %v2207
      %v2224 = vadd.f32 %v2188, %v2208
      %v2225 = vadd.f32 %v2189, %v2209
      %v2226 = vlaneseq
      %v2227 = vshrl.u32 %v2226, 7
      %v2228 = vsub.s32 4, %v2227
      %v2229 = vrot.slane %v1898, %v2228
      %v2230 = vmul.f32 %v705, %v2229
      %v2231 = vmul.f32 %v706, %v2229
      %v2232 = vmul.f32 %v707, %v2229
      %v2233 = vmul.f32 %v708, %v2229
      %v2234 = vmul.f32 %v709, %v2229
      %v2235 = vmul.f32 %v710, %v2229
      %v2236 = vmul.f32 %v711, %v2229
      %v2237 = vmul.f32 %v712, %v2229
      %v2238 = vmul.f32 %v713, %v2229
      %v2239 = vmul.f32 %v714, %v2229
      %v2240 = vmul.f32 %v715, %v2229
      %v2241 = vmul.f32 %v716, %v2229
      %v2242 = vmul.f32 %v717, %v2229
      %v2243 = vmul.f32 %v718, %v2229
      %v2244 = vmul.f32 %v719, %v2229
      %v2245 = vmul.f32 %v720, %v2229
      %v2246 = vadd.f32 %v2210, %v2230
      %v2247 = vadd.f32 %v2211, %v2231
      %v2248 = vadd.f32 %v2212, %v2232
      %v2249 = vadd.f32 %v2213, %v2233
      %v2250 = vadd.f32 %v2214, %v2234
      %v2251 = vadd.f32 %v2215, %v2235
      %v2252 = vadd.f32 %v2216, %v2236
      %v2253 = vadd.f32 %v2217, %v2237
      %v2254 = vadd.f32 %v2218, %v2238
      %v2255 = vadd.f32 %v2219, %v2239
      %v2256 = vadd.f32 %v2220, %v2240
      %v2257 = vadd.f32 %v2221, %v2241
      %v2258 = vadd.f32 %v2222, %v2242
      %v2259 = vadd.f32 %v2223, %v2243
      %v2260 = vadd.f32 %v2224, %v2244
      %v2261 = vadd.f32 %v2225, %v2245
      %v2262 = vlaneseq
      %v2263 = vshrl.u32 %v2262, 7
      %v2264 = vsub.s32 0, %v2263
      %v2265 = vrot.slane %v1899, %v2264
      %v2266 = vmul.f32 %v611, %v2265
      %v2267 = vmul.f32 %v612, %v2265
      %v2268 = vmul.f32 %v613, %v2265
      %v2269 = vmul.f32 %v614, %v2265
      %v2270 = vmul.f32 %v615, %v2265
      %v2271 = vmul.f32 %v616, %v2265
      %v2272 = vmul.f32 %v617, %v2265
      %v2273 = vmul.f32 %v618, %v2265
      %v2274 = vmul.f32 %v619, %v2265
      %v2275 = vmul.f32 %v620, %v2265
      %v2276 = vmul.f32 %v621, %v2265
      %v2277 = vmul.f32 %v622, %v2265
      %v2278 = vmul.f32 %v623, %v2265
      %v2279 = vmul.f32 %v624, %v2265
      %v2280 = vmul.f32 %v625, %v2265
      %v2281 = vmul.f32 %v626, %v2265
      %v2282 = vadd.f32 %v2246, %v2266
      %v2283 = vadd.f32 %v2247, %v2267
      %v2284 = vadd.f32 %v2248, %v2268
      %v2285 = vadd.f32 %v2249, %v2269
      %v2286 = vadd.f32 %v2250, %v2270
      %v2287 = vadd.f32 %v2251, %v2271
      %v2288 = vadd.f32 %v2252, %v2272
      %v2289 = vadd.f32 %v2253, %v2273
      %v2290 = vadd.f32 %v2254, %v2274
      %v2291 = vadd.f32 %v2255, %v2275
      %v2292 = vadd.f32 %v2256, %v2276
      %v2293 = vadd.f32 %v2257, %v2277
      %v2294 = vadd.f32 %v2258, %v2278
      %v2295 = vadd.f32 %v2259, %v2279
      %v2296 = vadd.f32 %v2260, %v2280
      %v2297 = vadd.f32 %v2261, %v2281
      %v2298 = vlaneseq
      %v2299 = vshrl.u32 %v2298, 7
      %v2300 = vsub.s32 1, %v2299
      %v2301 = vrot.slane %v1899, %v2300
      %v2302 = vmul.f32 %v635, %v2301
      %v2303 = vmul.f32 %v636, %v2301
      %v2304 = vmul.f32 %v637, %v2301
      %v2305 = vmul.f32 %v638, %v2301
      %v2306 = vmul.f32 %v639, %v2301
      %v2307 = vmul.f32 %v640, %v2301
      %v2308 = vmul.f32 %v641, %v2301
      %v2309 = vmul.f32 %v642, %v2301
      %v2310 = vmul.f32 %v643, %v2301
      %v2311 = vmul.f32 %v644, %v2301
      %v2312 = vmul.f32 %v645, %v2301
      %v2313 = vmul.f32 %v646, %v2301
      %v2314 = vmul.f32 %v647, %v2301
      %v2315 = vmul.f32 %v648, %v2301
      %v2316 = vmul.f32 %v649, %v2301
      %v2317 = vmul.f32 %v650, %v2301
      %v2318 = vadd.f32 %v2282, %v2302
      %v2319 = vadd.f32 %v2283, %v2303
      %v2320 = vadd.f32 %v2284, %v2304
      %v2321 = vadd.f32 %v2285, %v2305
      %v2322 = vadd.f32 %v2286, %v2306
      %v2323 = vadd.f32 %v2287, %v2307
      %v2324 = vadd.f32 %v2288, %v2308
      %v2325 = vadd.f32 %v2289, %v2309
      %v2326 = vadd.f32 %v2290, %v2310
      %v2327 = vadd.f32 %v2291, %v2311
      %v2328 = vadd.f32 %v2292, %v2312
      %v2329 = vadd.f32 %v2293, %v2313
      %v2330 = vadd.f32 %v2294, %v2314
      %v2331 = vadd.f32 %v2295, %v2315
      %v2332 = vadd.f32 %v2296, %v2316
      %v2333 = vadd.f32 %v2297, %v2317
      %v2334 = vlaneseq
      %v2335 = vshrl.u32 %v2334, 7
      %v2336 = vsub.s32 2, %v2335
      %v2337 = vrot.slane %v1899, %v2336
      %v2338 = vmul.f32 %v659, %v2337
      %v2339 = vmul.f32 %v660, %v2337
      %v2340 = vmul.f32 %v661, %v2337
      %v2341 = vmul.f32 %v662, %v2337
      %v2342 = vmul.f32 %v663, %v2337
      %v2343 = vmul.f32 %v664, %v2337
      %v2344 = vmul.f32 %v665, %v2337
      %v2345 = vmul.f32 %v666, %v2337
      %v2346 = vmul.f32 %v667, %v2337
      %v2347 = vmul.f32 %v668, %v2337
      %v2348 = vmul.f32 %v669, %v2337
      %v2349 = vmul.f32 %v670, %v2337
      %v2350 = vmul.f32 %v671, %v2337
      %v2351 = vmul.f32 %v672, %v2337
      %v2352 = vmul.f32 %v673, %v2337
      %v2353 = vmul.f32 %v674, %v2337
      %v2354 = vadd.f32 %v2318, %v2338
      %v2355 = vadd.f32 %v2319, %v2339
      %v2356 = vadd.f32 %v2320, %v2340
      %v2357 = vadd.f32 %v2321, %v2341
      %v2358 = vadd.f32 %v2322, %v2342
      %v2359 = vadd.f32 %v2323, %v2343
      %v2360 = vadd.f32 %v2324, %v2344
      %v2361 = vadd.f32 %v2325, %v2345
      %v2362 = vadd.f32 %v2326, %v2346
      %v2363 = vadd.f32 %v2327, %v2347
      %v2364 = vadd.f32 %v2328, %v2348
      %v2365 = vadd.f32 %v2329, %v2349
      %v2366 = vadd.f32 %v2330, %v2350
      %v2367 = vadd.f32 %v2331, %v2351
      %v2368 = vadd.f32 %v2332, %v2352
      %v2369 = vadd.f32 %v2333, %v2353
      %v2370 = vlaneseq
      %v2371 = vshrl.u32 %v2370, 7
      %v2372 = vsub.s32 3, %v2371
      %v2373 = vrot.slane %v1899, %v2372
      %v2374 = vmul.f32 %v683, %v2373
      %v2375 = vmul.f32 %v684, %v2373
      %v2376 = vmul.f32 %v685, %v2373
      %v2377 = vmul.f32 %v686, %v2373
      %v2378 = vmul.f32 %v687, %v2373
      %v2379 = vmul.f32 %v688, %v2373
      %v2380 = vmul.f32 %v689, %v2373
      %v2381 = vmul.f32 %v690, %v2373
      %v2382 = vmul.f32 %v691, %v2373
      %v2383 = vmul.f32 %v692, %v2373
      %v2384 = vmul.f32 %v693, %v2373
      %v2385 = vmul.f32 %v694, %v2373
      %v2386 = vmul.f32 %v695, %v2373
      %v2387 = vmul.f32 %v696, %v2373
      %v2388 = vmul.f32 %v697, %v2373
      %v2389 = vmul.f32 %v698, %v2373
      %v2390 = vadd.f32 %v2354, %v2374
      %v2391 = vadd.f32 %v2355, %v2375
      %v2392 = vadd.f32 %v2356, %v2376
      %v2393 = vadd.f32 %v2357, %v2377
      %v2394 = vadd.f32 %v2358, %v2378
      %v2395 = vadd.f32 %v2359, %v2379
      %v2396 = vadd.f32 %v2360, %v2380
      %v2397 = vadd.f32 %v2361, %v2381
      %v2398 = vadd.f32 %v2362, %v2382
      %v2399 = vadd.f32 %v2363, %v2383
      %v2400 = vadd.f32 %v2364, %v2384
      %v2401 = vadd.f32 %v2365, %v2385
      %v2402 = vadd.f32 %v2366, %v2386
      %v2403 = vadd.f32 %v2367, %v2387
      %v2404 = vadd.f32 %v2368, %v2388
      %v2405 = vadd.f32 %v2369, %v2389
      %v2406 = vlaneseq
      %v2407 = vshrl.u32 %v2406, 7
      %v2408 = vsub.s32 4, %v2407
      %v2409 = vrot.slane %v1899, %v2408
      %v2410 = vmul.f32 %v707, %v2409
      %v2411 = vmul.f32 %v708, %v2409
      %v2412 = vmul.f32 %v709, %v2409
      %v2413 = vmul.f32 %v710, %v2409
      %v2414 = vmul.f32 %v711, %v2409
      %v2415 = vmul.f32 %v712, %v2409
      %v2416 = vmul.f32 %v713, %v2409
      %v2417 = vmul.f32 %v714, %v2409
      %v2418 = vmul.f32 %v715, %v2409
      %v2419 = vmul.f32 %v716, %v2409
      %v2420 = vmul.f32 %v717, %v2409
      %v2421 = vmul.f32 %v718, %v2409
      %v2422 = vmul.f32 %v719, %v2409
      %v2423 = vmul.f32 %v720, %v2409
      %v2424 = vmul.f32 %v721, %v2409
      %v2425 = vmul.f32 %v722, %v2409
      %v2426 = vadd.f32 %v2390, %v2410
      %v2427 = vadd.f32 %v2391, %v2411
      %v2428 = vadd.f32 %v2392, %v2412
      %v2429 = vadd.f32 %v2393, %v2413
      %v2430 = vadd.f32 %v2394, %v2414
      %v2431 = vadd.f32 %v2395, %v2415
      %v2432 = vadd.f32 %v2396, %v2416
      %v2433 = vadd.f32 %v2397, %v2417
      %v2434 = vadd.f32 %v2398, %v2418
      %v2435 = vadd.f32 %v2399, %v2419
      %v2436 = vadd.f32 %v2400, %v2420
      %v2437 = vadd.f32 %v2401, %v2421
      %v2438 = vadd.f32 %v2402, %v2422
      %v2439 = vadd.f32 %v2403, %v2423
      %v2440 = vadd.f32 %v2404, %v2424
      %v2441 = vadd.f32 %v2405, %v2425
      %v2442 = vlaneseq
      %v2443 = vshrl.u32 %v2442, 7
      %v2444 = vsub.s32 0, %v2443
      %v2445 = vrot.slane %v1900, %v2444
      %v2446 = vmul.f32 %v613, %v2445
      %v2447 = vmul.f32 %v614, %v2445
      %v2448 = vmul.f32 %v615, %v2445
      %v2449 = vmul.f32 %v616, %v2445
      %v2450 = vmul.f32 %v617, %v2445
      %v2451 = vmul.f32 %v618, %v2445
      %v2452 = vmul.f32 %v619, %v2445
      %v2453 = vmul.f32 %v620, %v2445
      %v2454 = vmul.f32 %v621, %v2445
      %v2455 = vmul.f32 %v622, %v2445
      %v2456 = vmul.f32 %v623, %v2445
      %v2457 = vmul.f32 %v624, %v2445
      %v2458 = vmul.f32 %v625, %v2445
      %v2459 = vmul.f32 %v626, %v2445
      %v2460 = vmul.f32 %v627, %v2445
      %v2461 = vmul.f32 %v628, %v2445
      %v2462 = vadd.f32 %v2426, %v2446
      %v2463 = vadd.f32 %v2427, %v2447
      %v2464 = vadd.f32 %v2428, %v2448
      %v2465 = vadd.f32 %v2429, %v2449
      %v2466 = vadd.f32 %v2430, %v2450
      %v2467 = vadd.f32 %v2431, %v2451
      %v2468 = vadd.f32 %v2432, %v2452
      %v2469 = vadd.f32 %v2433, %v2453
      %v2470 = vadd.f32 %v2434, %v2454
      %v2471 = vadd.f32 %v2435, %v2455
      %v2472 = vadd.f32 %v2436, %v2456
      %v2473 = vadd.f32 %v2437, %v2457
      %v2474 = vadd.f32 %v2438, %v2458
      %v2475 = vadd.f32 %v2439, %v2459
      %v2476 = vadd.f32 %v2440, %v2460
      %v2477 = vadd.f32 %v2441, %v2461
      %v2478 = vlaneseq
      %v2479 = vshrl.u32 %v2478, 7
      %v2480 = vsub.s32 1, %v2479
      %v2481 = vrot.slane %v1900, %v2480
      %v2482 = vmul.f32 %v637, %v2481
      %v2483 = vmul.f32 %v638, %v2481
      %v2484 = vmul.f32 %v639, %v2481
      %v2485 = vmul.f32 %v640, %v2481
      %v2486 = vmul.f32 %v641, %v2481
      %v2487 = vmul.f32 %v642, %v2481
      %v2488 = vmul.f32 %v643, %v2481
      %v2489 = vmul.f32 %v644, %v2481
      %v2490 = vmul.f32 %v645, %v2481
      %v2491 = vmul.f32 %v646, %v2481
      %v2492 = vmul.f32 %v647, %v2481
      %v2493 = vmul.f32 %v648, %v2481
      %v2494 = vmul.f32 %v649, %v2481
      %v2495 = vmul.f32 %v650, %v2481
      %v2496 = vmul.f32 %v651, %v2481
      %v2497 = vmul.f32 %v652, %v2481
      %v2498 = vadd.f32 %v2462, %v2482
      %v2499 = vadd.f32 %v2463, %v2483
      %v2500 = vadd.f32 %v2464, %v2484
      %v2501 = vadd.f32 %v2465, %v2485
      %v2502 = vadd.f32 %v2466, %v2486
      %v2503 = vadd.f32 %v2467, %v2487
      %v2504 = vadd.f32 %v2468, %v2488
      %v2505 = vadd.f32 %v2469, %v2489
      %v2506 = vadd.f32 %v2470, %v2490
      %v2507 = vadd.f32 %v2471, %v2491
      %v2508 = vadd.f32 %v2472, %v2492
      %v2509 = vadd.f32 %v2473, %v2493
      %v2510 = vadd.f32 %v2474, %v2494
      %v2511 = vadd.f32 %v2475, %v2495
      %v2512 = vadd.f32 %v2476, %v2496
      %v2513 = vadd.f32 %v2477, %v2497
      %v2514 = vlaneseq
      %v2515 = vshrl.u32 %v2514, 7
      %v2516 = vsub.s32 2, %v2515
      %v2517 = vrot.slane %v1900, %v2516
      %v2518 = vmul.f32 %v661, %v2517
      %v2519 = vmul.f32 %v662, %v2517
      %v2520 = vmul.f32 %v663, %v2517
      %v2521 = vmul.f32 %v664, %v2517
      %v2522 = vmul.f32 %v665, %v2517
      %v2523 = vmul.f32 %v666, %v2517
      %v2524 = vmul.f32 %v667, %v2517
      %v2525 = vmul.f32 %v668, %v2517
      %v2526 = vmul.f32 %v669, %v2517
      %v2527 = vmul.f32 %v670, %v2517
      %v2528 = vmul.f32 %v671, %v2517
      %v2529 = vmul.f32 %v672, %v2517
      %v2530 = vmul.f32 %v673, %v2517
      %v2531 = vmul.f32 %v674, %v2517
      %v2532 = vmul.f32 %v675, %v2517
      %v2533 = vmul.f32 %v676, %v2517
      %v2534 = vadd.f32 %v2498, %v2518
      %v2535 = vadd.f32 %v2499, %v2519
      %v2536 = vadd.f32 %v2500, %v2520
      %v2537 = vadd.f32 %v2501, %v2521
      %v2538 = vadd.f32 %v2502, %v2522
      %v2539 = vadd.f32 %v2503, %v2523
      %v2540 = vadd.f32 %v2504, %v2524
      %v2541 = vadd.f32 %v2505, %v2525
      %v2542 = vadd.f32 %v2506, %v2526
      %v2543 = vadd.f32 %v2507, %v2527
      %v2544 = vadd.f32 %v2508, %v2528
      %v2545 = vadd.f32 %v2509, %v2529
      %v2546 = vadd.f32 %v2510, %v2530
      %v2547 = vadd.f32 %v2511, %v2531
      %v2548 = vadd.f32 %v2512, %v2532
      %v2549 = vadd.f32 %v2513, %v2533
      %v2550 = vlaneseq
      %v2551 = vshrl.u32 %v2550, 7
      %v2552 = vsub.s32 3, %v2551
      %v2553 = vrot.slane %v1900, %v2552
      %v2554 = vmul.f32 %v685, %v2553
      %v2555 = vmul.f32 %v686, %v2553
      %v2556 = vmul.f32 %v687, %v2553
      %v2557 = vmul.f32 %v688, %v2553
      %v2558 = vmul.f32 %v689, %v2553
      %v2559 = vmul.f32 %v690, %v2553
      %v2560 = vmul.f32 %v691, %v2553
      %v2561 = vmul.f32 %v692, %v2553
      %v2562 = vmul.f32 %v693, %v2553
      %v2563 = vmul.f32 %v694, %v2553
      %v2564 = vmul.f32 %v695, %v2553
      %v2565 = vmul.f32 %v696, %v2553
      %v2566 = vmul.f32 %v697, %v2553
      %v2567 = vmul.f32 %v698, %v2553
      %v2568 = vmul.f32 %v699, %v2553
      %v2569 = vmul.f32 %v700, %v2553
      %v2570 = vadd.f32 %v2534, %v2554
      %v2571 = vadd.f32 %v2535, %v2555
      %v2572 = vadd.f32 %v2536, %v2556
      %v2573 = vadd.f32 %v2537, %v2557
      %v2574 = vadd.f32 %v2538, %v2558
      %v2575 = vadd.f32 %v2539, %v2559
      %v2576 = vadd.f32 %v2540, %v2560
      %v2577 = vadd.f32 %v2541, %v2561
      %v2578 = vadd.f32 %v2542, %v2562
      %v2579 = vadd.f32 %v2543, %v2563
      %v2580 = vadd.f32 %v2544, %v2564
      %v2581 = vadd.f32 %v2545, %v2565
      %v2582 = vadd.f32 %v2546, %v2566
      %v2583 = vadd.f32 %v2547, %v2567
      %v2584 = vadd.f32 %v2548, %v2568
      %v2585 = vadd.f32 %v2549, %v2569
      %v2586 = vlaneseq
      %v2587 = vshrl.u32 %v2586, 7
      %v2588 = vsub.s32 4, %v2587
      %v2589 = vrot.slane %v1900, %v2588
      %v2590 = vmul.f32 %v709, %v2589
      %v2591 = vmul.f32 %v710, %v2589
      %v2592 = vmul.f32 %v711, %v2589
      %v2593 = vmul.f32 %v712, %v2589
      %v2594 = vmul.f32 %v713, %v2589
      %v2595 = vmul.f32 %v714, %v2589
      %v2596 = vmul.f32 %v715, %v2589
      %v2597 = vmul.f32 %v716, %v2589
      %v2598 = vmul.f32 %v717, %v2589
      %v2599 = vmul.f32 %v718, %v2589
      %v2600 = vmul.f32 %v719, %v2589
      %v2601 = vmul.f32 %v720, %v2589
      %v2602 = vmul.f32 %v721, %v2589
      %v2603 = vmul.f32 %v722, %v2589
      %v2604 = vmul.f32 %v723, %v2589
      %v2605 = vmul.f32 %v724, %v2589
      %v2606 = vadd.f32 %v2570, %v2590
      %v2607 = vadd.f32 %v2571, %v2591
      %v2608 = vadd.f32 %v2572, %v2592
      %v2609 = vadd.f32 %v2573, %v2593
      %v2610 = vadd.f32 %v2574, %v2594
      %v2611 = vadd.f32 %v2575, %v2595
      %v2612 = vadd.f32 %v2576, %v2596
      %v2613 = vadd.f32 %v2577, %v2597
      %v2614 = vadd.f32 %v2578, %v2598
      %v2615 = vadd.f32 %v2579, %v2599
      %v2616 = vadd.f32 %v2580, %v2600
      %v2617 = vadd.f32 %v2581, %v2601
      %v2618 = vadd.f32 %v2582, %v2602
      %v2619 = vadd.f32 %v2583, %v2603
      %v2620 = vadd.f32 %v2584, %v2604
      %v2621 = vadd.f32 %v2585, %v2605
      %v2622 = vlaneseq
      %v2623 = vshrl.u32 %v2622, 7
      %v2624 = vsub.s32 0, %v2623
      %v2625 = vrot.slane %v1901, %v2624
      %v2626 = vmul.f32 %v615, %v2625
      %v2627 = vmul.f32 %v616, %v2625
      %v2628 = vmul.f32 %v617, %v2625
      %v2629 = vmul.f32 %v618, %v2625
      %v2630 = vmul.f32 %v619, %v2625
      %v2631 = vmul.f32 %v620, %v2625
      %v2632 = vmul.f32 %v621, %v2625
      %v2633 = vmul.f32 %v622, %v2625
      %v2634 = vmul.f32 %v623, %v2625
      %v2635 = vmul.f32 %v624, %v2625
      %v2636 = vmul.f32 %v625, %v2625
      %v2637 = vmul.f32 %v626, %v2625
      %v2638 = vmul.f32 %v627, %v2625
      %v2639 = vmul.f32 %v628, %v2625
      %v2640 = vmul.f32 %v629, %v2625
      %v2641 = vmul.f32 %v630, %v2625
      %v2642 = vadd.f32 %v2606, %v2626
      %v2643 = vadd.f32 %v2607, %v2627
      %v2644 = vadd.f32 %v2608, %v2628
      %v2645 = vadd.f32 %v2609, %v2629
      %v2646 = vadd.f32 %v2610, %v2630
      %v2647 = vadd.f32 %v2611, %v2631
      %v2648 = vadd.f32 %v2612, %v2632
      %v2649 = vadd.f32 %v2613, %v2633
      %v2650 = vadd.f32 %v2614, %v2634
      %v2651 = vadd.f32 %v2615, %v2635
      %v2652 = vadd.f32 %v2616, %v2636
      %v2653 = vadd.f32 %v2617, %v2637
      %v2654 = vadd.f32 %v2618, %v2638
      %v2655 = vadd.f32 %v2619, %v2639
      %v2656 = vadd.f32 %v2620, %v2640
      %v2657 = vadd.f32 %v2621, %v2641
      %v2658 = vlaneseq
      %v2659 = vshrl.u32 %v2658, 7
      %v2660 = vsub.s32 1, %v2659
      %v2661 = vrot.slane %v1901, %v2660
      %v2662 = vmul.f32 %v639, %v2661
      %v2663 = vmul.f32 %v640, %v2661
      %v2664 = vmul.f32 %v641, %v2661
      %v2665 = vmul.f32 %v642, %v2661
      %v2666 = vmul.f32 %v643, %v2661
      %v2667 = vmul.f32 %v644, %v2661
      %v2668 = vmul.f32 %v645, %v2661
      %v2669 = vmul.f32 %v646, %v2661
      %v2670 = vmul.f32 %v647, %v2661
      %v2671 = vmul.f32 %v648, %v2661
      %v2672 = vmul.f32 %v649, %v2661
      %v2673 = vmul.f32 %v650, %v2661
      %v2674 = vmul.f32 %v651, %v2661
      %v2675 = vmul.f32 %v652, %v2661
      %v2676 = vmul.f32 %v653, %v2661
      %v2677 = vmul.f32 %v654, %v2661
      %v2678 = vadd.f32 %v2642, %v2662
      %v2679 = vadd.f32 %v2643, %v2663
      %v2680 = vadd.f32 %v2644, %v2664
      %v2681 = vadd.f32 %v2645, %v2665
      %v2682 = vadd.f32 %v2646, %v2666
      %v2683 = vadd.f32 %v2647, %v2667
      %v2684 = vadd.f32 %v2648, %v2668
      %v2685 = vadd.f32 %v2649, %v2669
      %v2686 = vadd.f32 %v2650, %v2670
      %v2687 = vadd.f32 %v2651, %v2671
      %v2688 = vadd.f32 %v2652, %v2672
      %v2689 = vadd.f32 %v2653, %v2673
      %v2690 = vadd.f32 %v2654, %v2674
      %v2691 = vadd.f32 %v2655, %v2675
      %v2692 = vadd.f32 %v2656, %v2676
      %v2693 = vadd.f32 %v2657, %v2677
      %v2694 = vlaneseq
      %v2695 = vshrl.u32 %v2694, 7
      %v2696 = vsub.s32 2, %v2695
      %v2697 = vrot.slane %v1901, %v2696
      %v2698 = vmul.f32 %v663, %v2697
      %v2699 = vmul.f32 %v664, %v2697
      %v2700 = vmul.f32 %v665, %v2697
      %v2701 = vmul.f32 %v666, %v2697
      %v2702 = vmul.f32 %v667, %v2697
      %v2703 = vmul.f32 %v668, %v2697
      %v2704 = vmul.f32 %v669, %v2697
      %v2705 = vmul.f32 %v670, %v2697
      %v2706 = vmul.f32 %v671, %v2697
      %v2707 = vmul.f32 %v672, %v2697
      %v2708 = vmul.f32 %v673, %v2697
      %v2709 = vmul.f32 %v674, %v2697
      %v2710 = vmul.f32 %v675, %v2697
      %v2711 = vmul.f32 %v676, %v2697
      %v2712 = vmul.f32 %v677, %v2697
      %v2713 = vmul.f32 %v678, %v2697
      %v2714 = vadd.f32 %v2678, %v2698
      %v2715 = vadd.f32 %v2679, %v2699
      %v2716 = vadd.f32 %v2680, %v2700
      %v2717 = vadd.f32 %v2681, %v2701
      %v2718 = vadd.f32 %v2682, %v2702
      %v2719 = vadd.f32 %v2683, %v2703
      %v2720 = vadd.f32 %v2684, %v2704
      %v2721 = vadd.f32 %v2685, %v2705
      %v2722 = vadd.f32 %v2686, %v2706
      %v2723 = vadd.f32 %v2687, %v2707
      %v2724 = vadd.f32 %v2688, %v2708
      %v2725 = vadd.f32 %v2689, %v2709
      %v2726 = vadd.f32 %v2690, %v2710
      %v2727 = vadd.f32 %v2691, %v2711
      %v2728 = vadd.f32 %v2692, %v2712
      %v2729 = vadd.f32 %v2693, %v2713
      %v2730 = vlaneseq
      %v2731 = vshrl.u32 %v2730, 7
      %v2732 = vsub.s32 3, %v2731
      %v2733 = vrot.slane %v1901, %v2732
      %v2734 = vmul.f32 %v687, %v2733
      %v2735 = vmul.f32 %v688, %v2733
      %v2736 = vmul.f32 %v689, %v2733
      %v2737 = vmul.f32 %v690, %v2733
      %v2738 = vmul.f32 %v691, %v2733
      %v2739 = vmul.f32 %v692, %v2733
      %v2740 = vmul.f32 %v693, %v2733
      %v2741 = vmul.f32 %v694, %v2733
      %v2742 = vmul.f32 %v695, %v2733
      %v2743 = vmul.f32 %v696, %v2733
      %v2744 = vmul.f32 %v697, %v2733
      %v2745 = vmul.f32 %v698, %v2733
      %v2746 = vmul.f32 %v699, %v2733
      %v2747 = vmul.f32 %v700, %v2733
      %v2748 = vmul.f32 %v701, %v2733
      %v2749 = vmul.f32 %v702, %v2733
      %v2750 = vadd.f32 %v2714, %v2734
      %v2751 = vadd.f32 %v2715, %v2735
      %v2752 = vadd.f32 %v2716, %v2736
      %v2753 = vadd.f32 %v2717, %v2737
      %v2754 = vadd.f32 %v2718, %v2738
      %v2755 = vadd.f32 %v2719, %v2739
      %v2756 = vadd.f32 %v2720, %v2740
      %v2757 = vadd.f32 %v2721, %v2741
      %v2758 = vadd.f32 %v2722, %v2742
      %v2759 = vadd.f32 %v2723, %v2743
      %v2760 = vadd.f32 %v2724, %v2744
      %v2761 = vadd.f32 %v2725, %v2745
      %v2762 = vadd.f32 %v2726, %v2746
      %v2763 = vadd.f32 %v2727, %v2747
      %v2764 = vadd.f32 %v2728, %v2748
      %v2765 = vadd.f32 %v2729, %v2749
      %v2766 = vlaneseq
      %v2767 = vshrl.u32 %v2766, 7
      %v2768 = vsub.s32 4, %v2767
      %v2769 = vrot.slane %v1901, %v2768
      %v2770 = vmul.f32 %v711, %v2769
      %v2771 = vmul.f32 %v712, %v2769
      %v2772 = vmul.f32 %v713, %v2769
      %v2773 = vmul.f32 %v714, %v2769
      %v2774 = vmul.f32 %v715, %v2769
      %v2775 = vmul.f32 %v716, %v2769
      %v2776 = vmul.f32 %v717, %v2769
      %v2777 = vmul.f32 %v718, %v2769
      %v2778 = vmul.f32 %v719, %v2769
      %v2779 = vmul.f32 %v720, %v2769
      %v2780 = vmul.f32 %v721, %v2769
      %v2781 = vmul.f32 %v722, %v2769
      %v2782 = vmul.f32 %v723, %v2769
      %v2783 = vmul.f32 %v724, %v2769
      %v2784 = vmul.f32 %v725, %v2769
      %v2785 = vmul.f32 %v726, %v2769
      %v2786 = vadd.f32 %v2750, %v2770
      %v2787 = vadd.f32 %v2751, %v2771
      %v2788 = vadd.f32 %v2752, %v2772
      %v2789 = vadd.f32 %v2753, %v2773
      %v2790 = vadd.f32 %v2754, %v2774
      %v2791 = vadd.f32 %v2755, %v2775
      %v2792 = vadd.f32 %v2756, %v2776
      %v2793 = vadd.f32 %v2757, %v2777
      %v2794 = vadd.f32 %v2758, %v2778
      %v2795 = vadd.f32 %v2759, %v2779
      %v2796 = vadd.f32 %v2760, %v2780
      %v2797 = vadd.f32 %v2761, %v2781
      %v2798 = vadd.f32 %v2762, %v2782
      %v2799 = vadd.f32 %v2763, %v2783
      %v2800 = vadd.f32 %v2764, %v2784
      %v2801 = vadd.f32 %v2765, %v2785
      %v2802 = vld [vmem:[%s4 + $0x1] sm:$0x1]
      %v2803 = vlaneseq
      %v2804 = vshrl.u32 %v2803, 7
      %v2805 = vsub.s32 0, %v2804
      %v2806 = vrot.slane %v2802, %v2805
      %v2807 = vadd.f32 %v2786, %v2806
      %v2808 = vadd.f32 %v2787, %v2806
      %v2809 = vadd.f32 %v2788, %v2806
      %v2810 = vadd.f32 %v2789, %v2806
      %v2811 = vadd.f32 %v2790, %v2806
      %v2812 = vadd.f32 %v2791, %v2806
      %v2813 = vadd.f32 %v2792, %v2806
      %v2814 = vadd.f32 %v2793, %v2806
      %v2815 = vadd.f32 %v2794, %v2806
      %v2816 = vadd.f32 %v2795, %v2806
      %v2817 = vadd.f32 %v2796, %v2806
      %v2818 = vadd.f32 %v2797, %v2806
      %v2819 = vadd.f32 %v2798, %v2806
      %v2820 = vadd.f32 %v2799, %v2806
      %v2821 = vadd.f32 %v2800, %v2806
      %v2822 = vadd.f32 %v2801, %v2806
      %v2823 = vmax.f32 %v2807, 0.0
      %v2824 = vmax.f32 %v2808, 0.0
      %v2825 = vmax.f32 %v2809, 0.0
      %v2826 = vmax.f32 %v2810, 0.0
      %v2827 = vmax.f32 %v2811, 0.0
      %v2828 = vmax.f32 %v2812, 0.0
      %v2829 = vmax.f32 %v2813, 0.0
      %v2830 = vmax.f32 %v2814, 0.0
      %v2831 = vmax.f32 %v2815, 0.0
      %v2832 = vmax.f32 %v2816, 0.0
      %v2833 = vmax.f32 %v2817, 0.0
      %v2834 = vmax.f32 %v2818, 0.0
      %v2835 = vmax.f32 %v2819, 0.0
      %v2836 = vmax.f32 %v2820, 0.0
      %v2837 = vmax.f32 %v2821, 0.0
      %v2838 = vmax.f32 %v2822, 0.0
      %s2839 = scalar_lea.vmem %s5, 16
      %v2840 = vld [vmem:[%s2839] sm:$0xff]
      %v2841 = vld [vmem:[%s2839 + $0x8] sm:$0xff]
      %s2842 = scalar_lea.vmem %s6, 16
      %v2843 = vld [vmem:[%s2842] sm:$0xff]
      %v2844 = vld [vmem:[%s2842 + $0x8] sm:$0xff]
      %2846 = vset.pattern.permute.xlu0 0
      %2847 = vperm.xlu0 %2846, %v2843
      %v2848 = vpop.permute.xlu0 %2847
      %2851 = vset.pattern.permute.xlu0 0
      %2852 = vperm.xlu0 %2851, %v2844
      %v2853 = vpop.permute.xlu0 %2852
      %v2856 = vsel %vm548, %v2840, 0
      %v2859 = vsel %vm548, %v2841, 0
      %v2862 = vsel %vm548, %v2823, 0
      %v2865 = vsel %vm548, %v2824, 0
      %v2868 = vsel %vm548, %v2825, 0
      %v2871 = vsel %vm548, %v2826, 0
      %v2874 = vsel %vm548, %v2827, 0
      %v2877 = vsel %vm548, %v2828, 0
      %v2880 = vsel %vm548, %v2829, 0
      %v2883 = vsel %vm548, %v2830, 0
      %v2886 = vsel %vm548, %v2831, 0
      %v2889 = vsel %vm548, %v2832, 0
      %v2892 = vsel %vm548, %v2833, 0
      %v2895 = vsel %vm548, %v2834, 0
      %v2898 = vsel %vm548, %v2835, 0
      %v2901 = vsel %vm548, %v2836, 0
      %v2904 = vsel %vm548, %v2837, 0
      %v2907 = vsel %vm548, %v2838, 0
      %2909 = vmatprep.subr.mxu0 0.0
      %2910 = vmatpush1.xpose.msra.mxu0 %v2907
      %2911 = vmatprep.subr.mxu0 0.0
      %2912 = vmatpush1.xpose.msra.mxu0 %v2904
      %2913 = vmatprep.subr.mxu0 0.0
      %2914 = vmatpush1.xpose.msra.mxu0 %v2901
      %2915 = vmatprep.subr.mxu0 0.0
      %2916 = vmatpush1.xpose.msra.mxu0 %v2898
      %2917 = vmatprep.subr.mxu0 0.0
      %2918 = vmatpush1.xpose.msra.mxu0 %v2895
      %2919 = vmatprep.subr.mxu0 0.0
      %2920 = vmatpush1.xpose.msra.mxu0 %v2892
      %2921 = vmatprep.subr.mxu0 0.0
      %2922 = vmatpush1.xpose.msra.mxu0 %v2889
      %2923 = vmatprep.subr.mxu0 0.0
      %2924 = vmatpush1.xpose.msra.mxu0 %v2886
      %2925 = vmatprep.subr.mxu0 0.0
      %2926 = vmatpush1.xpose.msra.mxu0 %v2883
      %2927 = vmatprep.subr.mxu0 0.0
      %2928 = vmatpush1.xpose.msra.mxu0 %v2880
      %2929 = vmatprep.subr.mxu0 0.0
      %2930 = vmatpush1.xpose.msra.mxu0 %v2877
      %2931 = vmatprep.subr.mxu0 0.0
      %2932 = vmatpush1.xpose.msra.mxu0 %v2874
      %2933 = vmatprep.subr.mxu0 0.0
      %2934 = vmatpush1.xpose.msra.mxu0 %v2871
      %2935 = vmatprep.subr.mxu0 0.0
      %2936 = vmatpush1.xpose.msra.mxu0 %v2868
      %2937 = vmatprep.subr.mxu0 0.0
      %2938 = vmatpush1.xpose.msra.mxu0 %v2865
      %2939 = vmatprep.subr.mxu0 0.0
      %2940 = vmatpush1.xpose.msra.mxu0 %v2862
      %2941 = vmatprep.subr.mxu0 0.0
      %2942 = vmatpush2.xpose.msra.mxu0 0.0
      %2943 = vmatprep.subr.mxu0 0.0
      %2944 = vmatpush2.xpose.msra.mxu0 0.0
      %2945 = vmatprep.subr.mxu0 0.0
      %2946 = vmatpush2.xpose.msra.mxu0 0.0
      %2947 = vmatprep.subr.mxu0 0.0
      %2948 = vmatpush2.xpose.msra.mxu0 0.0
      %2949 = vmatprep.subr.mxu0 0.0
      %2950 = vmatpush2.xpose.msra.mxu0 0.0
      %2951 = vmatprep.subr.mxu0 0.0
      %2952 = vmatpush2.xpose.msra.mxu0 0.0
      %2953 = vmatprep.subr.mxu0 0.0
      %2954 = vmatpush2.xpose.msra.mxu0 0.0
      %2955 = vmatprep.subr.mxu0 0.0
      %2956 = vmatpush2.xpose.msra.mxu0 0.0
      %2957 = vmatprep.subr.mxu0 0.0
      %2958 = vmatpush2.xpose.msra.mxu0 0.0
      %2959 = vmatprep.subr.mxu0 0.0
      %2960 = vmatpush2.xpose.msra.mxu0 0.0
      %2961 = vmatprep.subr.mxu0 0.0
      %2962 = vmatpush2.xpose.msra.mxu0 0.0
      %2963 = vmatprep.subr.mxu0 0.0
      %2964 = vmatpush2.xpose.msra.mxu0 0.0
      %2965 = vmatprep.subr.mxu0 0.0
      %2966 = vmatpush2.xpose.msra.mxu0 0.0
      %2967 = vmatprep.subr.mxu0 0.0
      %2968 = vmatpush2.xpose.msra.mxu0 0.0
      %2969 = vmatprep.subr.mxu0 0.0
      %2970 = vmatpush2.xpose.msra.mxu0 0.0
      %2971 = vmatprep.subr.mxu0 0.0
      %2972 = vmatpush2.xpose.msra.mxu0 0.0
      %2973 = vmatprep.mubr.f32.mxu0 0.0
      %2974 = vmatmul.mubr.f32.gmra.mxu0 %v2856
      %v2975 = vpop.f32.mrf.mxu0
      %v2976 = vadd.f32 %v2848, %v2975
      %v2977 = vpop.f32.mrf.mxu0
      %2978 = vmatprep.mubr.f32.mxu0 0.0
      %2979 = vmatmul.mubr.f32.gmra.mxu0 %v2859
      %v2980 = vpop.f32.mrf.mxu0
      %v2981 = vadd.f32 %v2853, %v2980
      %v2982 = vpop.f32.mrf.mxu0
      %2983 = vdwg.mxu0
      %v2984 = vmax.f32 %v2976, 0.0
      %v2985 = vmax.f32 %v2981, 0.0
      %v2986 = vld [vmem:[%s7 + $0x3] sm:$0x3]
      %v2987 = vld [vmem:[%s8 + $0x3] sm:$0x3]
      %2989 = vset.pattern.permute.xlu0 0
      %2990 = vperm.xlu0 %2989, %v2987
      %v2991 = vpop.permute.xlu0 %2990
      %v2994 = vsel %vm1821, %v2986, 0
      %2996 = vmatprep.subr.mxu0 0.0
      %2997 = vmatpush1.msra.mxu0 0.0
      %2998 = vmatprep.subr.mxu0 0.0
      %2999 = vmatpush1.msra.mxu0 0.0
      %3000 = vmatprep.subr.mxu0 0.0
      %3001 = vmatpush1.msra.mxu0 0.0
      %3002 = vmatprep.subr.mxu0 0.0
      %3003 = vmatpush1.msra.mxu0 0.0
      %3004 = vmatprep.subr.mxu0 0.0
      %3005 = vmatpush1.msra.mxu0 0.0
      %3006 = vmatprep.subr.mxu0 0.0
      %3007 = vmatpush1.msra.mxu0 0.0
      %3008 = vmatprep.subr.mxu0 0.0
      %3009 = vmatpush1.msra.mxu0 0.0
      %3010 = vmatprep.subr.mxu0 0.0
      %3011 = vmatpush1.msra.mxu0 0.0
      %3012 = vmatprep.subr.mxu0 0.0
      %3013 = vmatpush1.msra.mxu0 0.0
      %3014 = vmatprep.subr.mxu0 0.0
      %3015 = vmatpush1.msra.mxu0 0.0
      %3016 = vmatprep.subr.mxu0 0.0
      %3017 = vmatpush1.msra.mxu0 0.0
      %3018 = vmatprep.subr.mxu0 0.0
      %3019 = vmatpush1.msra.mxu0 0.0
      %3020 = vmatprep.subr.mxu0 0.0
      %3021 = vmatpush1.msra.mxu0 0.0
      %3022 = vmatprep.subr.mxu0 0.0
      %3023 = vmatpush1.msra.mxu0 0.0
      %3024 = vmatprep.subr.mxu0 0.0
      %3025 = vmatpush1.msra.mxu0 %v2985
      %3026 = vmatprep.subr.mxu0 0.0
      %3027 = vmatpush1.msra.mxu0 %v2984
      %3028 = vmatprep.subr.mxu0 0.0
      %3029 = vmatpush2.msra.mxu0 0.0
      %3030 = vmatprep.subr.mxu0 0.0
      %3031 = vmatpush2.msra.mxu0 0.0
      %3032 = vmatprep.subr.mxu0 0.0
      %3033 = vmatpush2.msra.mxu0 0.0
      %3034 = vmatprep.subr.mxu0 0.0
      %3035 = vmatpush2.msra.mxu0 0.0
      %3036 = vmatprep.subr.mxu0 0.0
      %3037 = vmatpush2.msra.mxu0 0.0
      %3038 = vmatprep.subr.mxu0 0.0
      %3039 = vmatpush2.msra.mxu0 0.0
      %3040 = vmatprep.subr.mxu0 0.0
      %3041 = vmatpush2.msra.mxu0 0.0
      %3042 = vmatprep.subr.mxu0 0.0
      %3043 = vmatpush2.msra.mxu0 0.0
      %3044 = vmatprep.subr.mxu0 0.0
      %3045 = vmatpush2.msra.mxu0 0.0
      %3046 = vmatprep.subr.mxu0 0.0
      %3047 = vmatpush2.msra.mxu0 0.0
      %3048 = vmatprep.subr.mxu0 0.0
      %3049 = vmatpush2.msra.mxu0 0.0
      %3050 = vmatprep.subr.mxu0 0.0
      %3051 = vmatpush2.msra.mxu0 0.0
      %3052 = vmatprep.subr.mxu0 0.0
      %3053 = vmatpush2.msra.mxu0 0.0
      %3054 = vmatprep.subr.mxu0 0.0
      %3055 = vmatpush2.msra.mxu0 0.0
      %3056 = vmatprep.subr.mxu0 0.0
      %3057 = vmatpush2.msra.mxu0 0.0
      %3058 = vmatprep.subr.mxu0 0.0
      %3059 = vmatpush2.msra.mxu0 0.0
      %3060 = vmatprep.mubr.f32.mxu0 0.0
      %3061 = vmatmul.mubr.f32.gmra.mxu0 %v2994
      %v3062 = vpop.f32.mrf.mxu0
      %v3063 = vadd.f32 %v2991, %v3062
      %v3064 = vpop.f32.mrf.mxu0
      %3065 = vdwg.mxu0
      %3066 = vst [vmem:[%s505 + $0x3] sm:$0x3] %v3063
      %p3067 = scmp.lt.s32.totalorder %s24, 1
      %s3068 = scalar_select %p3067, %s24, 1
      %p3069 = scmp.lt.s32.totalorder %s25, 1
      %s3070 = scalar_select %p3069, %s25, 1
      %s3071 = smul.addr %s3068, 2
      %s3072 = sadd.s32 %s3070, %s3071
      %s3073 = smul.addr %s3072, 8
      %s3074 = scalar_lea.vmem %s9, %s3073
      // Predicated region
      $region73: #{tpu_custom_call.1} parent=55 // pred_check
        %p3075 = pneg %p278
      $region74: #{tpu_custom_call.1} parent=55 // pred_check_branch
        %3077 = sbr.rel (%p3075) target = $region76
      $region75: #{tpu_custom_call.1} parent=55 // pred_region
        _
      $region76: #{tpu_custom_call.1} parent=55 // pred_fallthru
        _
    $region56: #{tpu_custom_call.1} parent=5 // pred_fallthru
      _
    %p3078 = scmp.le.s32.totalorder 2, %s15
    // Predicated region
    $region77: #{tpu_custom_call.1} parent=5 // pred_check
      %p3079 = pneg %p3078
    $region78: #{tpu_custom_call.1} parent=5 // pred_check_branch
      %3081 = sbr.rel (%p3079) target = $region80
    $region79: #{tpu_custom_call.1} parent=5 // pred_region
      %s3082 = ssub.s32 %s15, 2
      // Predicated region
      $region81: #{tpu_custom_call.1} parent=79 // pred_check
        %p3083 = pneg %p284
      $region82: #{tpu_custom_call.1} parent=79 // pred_check_branch
        %3085 = sbr.rel (%p3083) target = $region84
      $region83: #{tpu_custom_call.1} parent=79 // pred_region
        %p3086 = scmp.lt.s32.totalorder %s26, 1
        %s3087 = scalar_select %p3086, %s26, 1
        %p3088 = scmp.lt.s32.totalorder %s27, 1
        %s3089 = scalar_select %p3088, %s27, 1
        %s3090 = smul.addr %s3087, 2
        %s3091 = sadd.s32 %s3089, %s3090
        %s3092 = smul.addr %s3091, 8
        %s3093 = scalar_lea.vmem %s9, %s3092
      $region84: #{tpu_custom_call.1} parent=79 // pred_fallthru
        _
    $region80: #{tpu_custom_call.1} parent=5 // pred_fallthru
      _
  $region6: #{tpu_custom_call.1} parent=0 // loop_footer
    %s19 = sadd.s32 1, %s15
  $region7: #{tpu_custom_call.1} parent=0 // loop_footer_branch
    %14 = sbr.rel target = $region3
  $region8: #{tpu_custom_call.1} parent=0 // loop_exit
    _

</llo_original>
